<compile_context>
chip_gen: v6e
topology: v6e:2x2x1
jax: 0.10.0
libtpu: 0.0.40
codegen_flags: <defaults>
</compile_context>

<pallas_src>
import functools

import jax
import jax.numpy as jnp
from jax.experimental import pallas as pl
from jax.experimental.pallas import tpu as pltpu

NUM_TARGETS = 4            # stand-in for len(settings.TARGET)

# synthetic backbone channel sizes (lane-friendly: expanded/head = 128 lanes)
C_IN = 3
C_STEM = 32
C_EXP = 128                # expanded MBConv channels -> full 128-lane vregs in dwconv
C_SE = 8
C_HEAD = 128
STEM_K_PAD = 128           # 3x3x3 im2col K=27 zero-padded to one full lane/MXU tile


# --------------------------------------------------------------------------
# small helpers
# --------------------------------------------------------------------------
def _vmem_limit_bytes(block_bytes):
    # Derive from actual block footprint (double-buffered input + headroom),
    # not a fixed fraction of physical capacity; clamp to v7x's 64 MiB/TC.
    need = 3 * int(block_bytes) + (8 << 20)
    return int(min(max(need, 16 << 20), 64 << 20))


def _pick_batch_tile(batch):
    # Keep >= 2 grid steps when possible (v7x shards the "parallel" batch axis
    # over its 2 TensorCores) while raising M per MXU call for larger batches.
    bt = max(1, batch // 2)
    while batch % bt:
        bt -= 1
    return bt


def _const_spec(shape):
    zeros = (0,) * len(shape)
    return pl.BlockSpec(shape, lambda b, _z=zeros: _z)


def _sigmoid(x):
    # 1 / (1 + exp(-x)) with the divide on the EUP (approx reciprocal), f32 math
    return pl.reciprocal(1.0 + jnp.exp(-x), approx=True)


def _swish(x):
    return x * _sigmoid(x)


# --------------------------------------------------------------------------
# Fused kernel: stem -> expand -> dwconv+SE+proj(+res) -> head+GAP -> fc -> out
# --------------------------------------------------------------------------
def _fused_backbone_kernel(cols_ref,
                           stem_w_ref, stem_b_ref, exp_w_ref, exp_b_ref, dw_w_ref,
                           se_rw_ref, se_rb_ref, se_ew_ref, se_eb_ref,
                           proj_w_ref, proj_b_ref, head_w_ref, head_b_ref,
                           fc_w_ref, fc_b_ref, out_w_ref, out_b_ref,
                           o_ref, pad_ref, *, ho, wo):
    bt, P, K = cols_ref.shape
    c_exp = exp_w_ref.shape[1]

    # ---- stem 3x3/s2 conv (host im2col, K zero-padded to 128) + swish --------
    cols = cols_ref[...].reshape(bt * P, K).astype(jnp.bfloat16)
    feat = jnp.dot(cols, stem_w_ref[...], preferred_element_type=jnp.float32)
    feat = _swish(feat + stem_b_ref[...])                      # (bt*P, 32), VMEM only

    # ---- MBConv expand 1x1 + swish -------------------------------------------
    expd = jnp.dot(feat.astype(jnp.bfloat16), exp_w_ref[...],
                   preferred_element_type=jnp.float32)
    expd = _swish(expd + exp_b_ref[...])                       # (bt*P, 128)

    # ---- 1-pixel halo pad in VMEM scratch (no host jnp.pad / HBM round trip) -
    pad_ref[...] = jnp.zeros_like(pad_ref)
    pad_ref[:, 1:1 + ho, 1:1 + wo, :] = expd.reshape(bt, ho, wo, c_exp)

    # ---- depthwise 3x3 + swish ------------------------------------------------
    # Precompute the 3 dx-(sublane)-shifted planes once and reuse across dy
    # (dy slices the untiled H axis -> free): 3 relayouts instead of 9.
    acc = jnp.zeros((bt, ho, wo, c_exp), jnp.float32)
    for dx in range(3):
        plane = pad_ref[:, :, dx:dx + wo, :]                   # (bt, ho+2, wo, C)
        for dy in range(3):
            idx = dy * 3 + dx
            w_tap = dw_w_ref[idx:idx + 1, :].reshape(1, 1, 1, c_exp)
            acc = acc + plane[:, dy:dy + ho, :, :] * w_tap
    dw = _swish(acc)                                           # (bt, ho, wo, 128)

    # ---- squeeze-and-excite: GAP -> reduce(+swish) -> expand(+sigmoid) --------
    gap = jnp.mean(dw.reshape(bt, P, c_exp), axis=1)           # (bt, 128)
    h = jnp.dot(gap.astype(jnp.bfloat16), se_rw_ref[...],
                preferred_element_type=jnp.float32) + se_rb_ref[...]
    h = _swish(h)
    gate = _sigmoid(jnp.dot(h.astype(jnp.bfloat16), se_ew_ref[...],
                            preferred_element_type=jnp.float32) + se_eb_ref[...])
    scaled = dw * gate.reshape(bt, 1, 1, c_exp)

    # ---- 1x1 projection + residual add ----------------------------------------
    proj = jnp.dot(scaled.reshape(bt * P, c_exp).astype(jnp.bfloat16),
                   proj_w_ref[...],
                   preferred_element_type=jnp.float32) + proj_b_ref[...]
    mb = proj + feat                                           # (bt*P, 32)

    # ---- head 1x1 + swish fused with global average pool ----------------------
    hfeat = jnp.dot(mb.astype(jnp.bfloat16), head_w_ref[...],
                    preferred_element_type=jnp.float32) + head_b_ref[...]
    pooled = jnp.mean(_swish(hfeat).reshape(bt, P, -1), axis=1)  # (bt, 128)

    # ---- backbone fc(->1000) + outlayer(1000 -> NUM_TARGETS), logits in VMEM --
    logits = jnp.dot(pooled.astype(jnp.bfloat16), fc_w_ref[...],
                     preferred_element_type=jnp.float32) + fc_b_ref[...]
    out = jnp.dot(logits, out_w_ref[...],
                  preferred_element_type=jnp.float32) + out_b_ref[...]
    o_ref[...] = out.reshape(bt, 1, -1).astype(o_ref.dtype)


def pallas_efficientnet(cols, params, *, ho, wo):
    B, P, K = cols.shape
    bt = _pick_batch_tile(B)
    grid = (B // bt,)

    weight_keys = ["stem_w", "stem_b", "exp_w", "exp_b", "dw_w",
                   "se_r_w", "se_r_b", "se_e_w", "se_e_b",
                   "proj_w", "proj_b", "head_w", "head_b",
                   "fc_w", "fc_b", "out_w", "out_b"]
    weights = [params[k] for k in weight_keys]

    in_specs = [pl.BlockSpec((bt, P, K), lambda b: (b, 0, 0))]
    in_specs += [_const_spec(w.shape) for w in weights]

    block_bytes = (bt * P * K * 4                              # cols block
                   + bt * (ho + 2) * (wo + 2) * C_EXP * 4      # halo scratch
                   + sum(int(w.size) * w.dtype.itemsize for w in weights))

    out = pl.pallas_call(
        functools.partial(_fused_backbone_kernel, ho=ho, wo=wo),
        out_shape=jax.ShapeDtypeStruct((B, 1, NUM_TARGETS), jnp.float32),
        grid=grid,
        in_specs=in_specs,
        out_specs=pl.BlockSpec((bt, 1, NUM_TARGETS), lambda b: (b, 0, 0)),
        scratch_shapes=[pltpu.VMEM((bt, ho + 2, wo + 2, C_EXP), jnp.float32)],
        compiler_params=pltpu.CompilerParams(
            dimension_semantics=("parallel",),
            vmem_limit_bytes=_vmem_limit_bytes(block_bytes)),
    )(cols, *weights)
    return out.reshape(B, NUM_TARGETS)


# --------------------------------------------------------------------------
# Parameter init (deterministic, synthetic; BN assumed folded into conv w/b)
# --------------------------------------------------------------------------
def init_params(key):
    ks = jax.random.split(key, 12)

    def w(k, shape, scale, dtype=jnp.bfloat16):
        return (scale * jax.random.normal(k, shape, jnp.float32)).astype(dtype)

    p = {}
    stem = 0.05 * jax.random.normal(ks[0], (9 * C_IN, C_STEM), jnp.float32)
    p["stem_w"] = jnp.pad(stem, ((0, STEM_K_PAD - 9 * C_IN), (0, 0))).astype(jnp.bfloat16)
    p["stem_b"] = jnp.zeros((1, C_STEM), jnp.float32)
    p["exp_w"] = w(ks[1], (C_STEM, C_EXP), 0.05)
    p["exp_b"] = jnp.zeros((1, C_EXP), jnp.float32)
    p["dw_w"] = 0.1 * jax.random.normal(ks[2], (9, C_EXP), jnp.float32)   # VPU taps: f32
    p["se_r_w"] = w(ks[3], (C_EXP, C_SE), 0.1)
    p["se_r_b"] = jnp.zeros((1, C_SE), jnp.float32)
    p["se_e_w"] = w(ks[4], (C_SE, C_EXP), 0.1)
    p["se_e_b"] = jnp.zeros((1, C_EXP), jnp.float32)
    p["proj_w"] = w(ks[5], (C_EXP, C_STEM), 0.05)
    p["proj_b"] = jnp.zeros((1, C_STEM), jnp.float32)
    p["head_w"] = w(ks[6], (C_STEM, C_HEAD), 0.05)
    p["head_b"] = jnp.zeros((1, C_HEAD), jnp.float32)
    p["fc_w"] = w(ks[7], (C_HEAD, 1000), 0.05)                 # backbone -> 1000 logits
    p["fc_b"] = jnp.zeros((1, 1000), jnp.float32)
    # self.outlayer = nn.Linear(1000, len(TARGET)) — kept exact in f32
    p["out_w"] = 0.05 * jax.random.normal(ks[8], (1000, NUM_TARGETS), jnp.float32)
    p["out_b"] = jnp.zeros((1, NUM_TARGETS), jnp.float32)
    return p


# --------------------------------------------------------------------------
# Forward pass (host glue: NCHW->NHWC, stride-2 im2col for the stem only)
# --------------------------------------------------------------------------
def efficientnet_pretrain_forward(params, x_nchw):
    # NCHW (PyTorch) -> NHWC (channels on the lane axis); assumes even H, W
    x = jnp.transpose(x_nchw, (0, 2, 3, 1)).astype(jnp.float32)
    N, H, W, C_in = x.shape
    ho, wo = H // 2, W // 2
    P = ho * wo

    # stem im2col (3x3, stride 2, pad 1); K zero-padded to a full 128-lane tile
    xp = jnp.pad(x, ((0, 0), (1, 1), (1, 1), (0, 0)))
    patches = [xp[:, dy:dy + H:2, dx:dx + W:2, :] for dy in range(3) for dx in range(3)]
    cols = jnp.concatenate(patches, axis=-1).reshape(N, P, 9 * C_in)
    cols = jnp.pad(cols, ((0, 0), (0, 0), (0, STEM_K_PAD - 9 * C_in)))
    # TODO(synk): at real resolutions move the stride-2 patch gather in-kernel
    # (Element blocks / strided pl.ds) and H-tile the fused kernel with a 2-row
    # halo + pl.Buffered(3) on the halo'd input so the input is only read once.

    return pallas_efficientnet(cols, params, ho=ho, wo=wo)     # (N, NUM_TARGETS)


if __name__ == "__main__":
    key = jax.random.PRNGKey(0)
    k_x, k_p = jax.random.split(key)
    x = jax.random.normal(k_x, (2, 3, 16, 16), jnp.float32)    # NCHW, as PyTorch feeds
    params = init_params(k_p)

    fwd = jax.jit(efficientnet_pretrain_forward)
    out = fwd(params, x)
    out = jax.block_until_ready(out)
    assert out.shape == (2, NUM_TARGETS) and out.dtype == jnp.float32
    print("KERNEL_OK")
</pallas_src>

<mosaic_0001>
module attributes {stable_mosaic.version = 11 : i64} {
  func.func @_fused_backbone_kernel(%arg0: i32, %arg1: memref<1x64x128xf32, #tpu.memory_space<vmem>>, %arg2: memref<128x32xbf16, #tpu.memory_space<vmem>>, %arg3: memref<1x32xf32, #tpu.memory_space<vmem>>, %arg4: memref<32x128xbf16, #tpu.memory_space<vmem>>, %arg5: memref<1x128xf32, #tpu.memory_space<vmem>>, %arg6: memref<9x128xf32, #tpu.memory_space<vmem>>, %arg7: memref<128x8xbf16, #tpu.memory_space<vmem>>, %arg8: memref<1x8xf32, #tpu.memory_space<vmem>>, %arg9: memref<8x128xbf16, #tpu.memory_space<vmem>>, %arg10: memref<1x128xf32, #tpu.memory_space<vmem>>, %arg11: memref<128x32xbf16, #tpu.memory_space<vmem>>, %arg12: memref<1x32xf32, #tpu.memory_space<vmem>>, %arg13: memref<32x128xbf16, #tpu.memory_space<vmem>>, %arg14: memref<1x128xf32, #tpu.memory_space<vmem>>, %arg15: memref<128x1000xbf16, #tpu.memory_space<vmem>>, %arg16: memref<1x1000xf32, #tpu.memory_space<vmem>>, %arg17: memref<1000x4xf32, #tpu.memory_space<vmem>>, %arg18: memref<1x4xf32, #tpu.memory_space<vmem>>, %arg19: memref<1x1x4xf32, #tpu.memory_space<vmem>>, %arg20: memref<1x10x10x128xf32, #tpu.memory_space<vmem>>) attributes {dimension_semantics = [#tpu.dimension_semantics<parallel>], iteration_bounds = array<i64: 2>, scalar_prefetch = 0 : i64, scratch_operands = 1 : i64, tpu.core_type = #tpu.core_type<tc>, window_params = [{transform_indices = @transform_0, window_bounds = array<i64: 1, 64, 128>}, {pipeline_mode = #tpu.pipeline_mode<synchronous>, transform_indices = @transform_1, window_bounds = array<i64: 128, 32>}, {pipeline_mode = #tpu.pipeline_mode<synchronous>, transform_indices = @transform_2, window_bounds = array<i64: 1, 32>}, {pipeline_mode = #tpu.pipeline_mode<synchronous>, transform_indices = @transform_3, window_bounds = array<i64: 32, 128>}, {pipeline_mode = #tpu.pipeline_mode<synchronous>, transform_indices = @transform_4, window_bounds = array<i64: 1, 128>}, {pipeline_mode = #tpu.pipeline_mode<synchronous>, transform_indices = @transform_5, window_bounds = array<i64: 9, 128>}, {pipeline_mode = #tpu.pipeline_mode<synchronous>, transform_indices = @transform_6, window_bounds = array<i64: 128, 8>}, {pipeline_mode = #tpu.pipeline_mode<synchronous>, transform_indices = @transform_7, window_bounds = array<i64: 1, 8>}, {pipeline_mode = #tpu.pipeline_mode<synchronous>, transform_indices = @transform_8, window_bounds = array<i64: 8, 128>}, {pipeline_mode = #tpu.pipeline_mode<synchronous>, transform_indices = @transform_9, window_bounds = array<i64: 1, 128>}, {pipeline_mode = #tpu.pipeline_mode<synchronous>, transform_indices = @transform_10, window_bounds = array<i64: 128, 32>}, {pipeline_mode = #tpu.pipeline_mode<synchronous>, transform_indices = @transform_11, window_bounds = array<i64: 1, 32>}, {pipeline_mode = #tpu.pipeline_mode<synchronous>, transform_indices = @transform_12, window_bounds = array<i64: 32, 128>}, {pipeline_mode = #tpu.pipeline_mode<synchronous>, transform_indices = @transform_13, window_bounds = array<i64: 1, 128>}, {pipeline_mode = #tpu.pipeline_mode<synchronous>, transform_indices = @transform_14, window_bounds = array<i64: 128, 1000>}, {pipeline_mode = #tpu.pipeline_mode<synchronous>, transform_indices = @transform_15, window_bounds = array<i64: 1, 1000>}, {pipeline_mode = #tpu.pipeline_mode<synchronous>, transform_indices = @transform_16, window_bounds = array<i64: 1000, 4>}, {pipeline_mode = #tpu.pipeline_mode<synchronous>, transform_indices = @transform_17, window_bounds = array<i64: 1, 4>}, {transform_indices = @transform_18, window_bounds = array<i64: 1, 1, 4>}]} {
    %c0 = arith.constant 0 : index
    %c0_0 = arith.constant 0 : index
    %c0_1 = arith.constant 0 : index
    %0 = vector.load %arg1[%c0, %c0_0, %c0_1] : memref<1x64x128xf32, #tpu.memory_space<vmem>>, vector<1x64x128xf32>
    %1 = vector.shape_cast %0 : vector<1x64x128xf32> to vector<64x128xf32>
    %2 = arith.truncf %1 : vector<64x128xf32> to vector<64x128xbf16>
    %c0_2 = arith.constant 0 : index
    %c0_3 = arith.constant 0 : index
    %3 = vector.load %arg2[%c0_2, %c0_3] : memref<128x32xbf16, #tpu.memory_space<vmem>>, vector<128x32xbf16>
    %cst = arith.constant dense<0.000000e+00> : vector<64x32xf32>
    %4 = tpu.matmul %2, %3, %cst {dimension_numbers = #tpu.dot_dimension_numbers<[1], [0], [0], [1], [0, 0, 1, 1], [], []>} : vector<64x128xbf16>, vector<128x32xbf16>, vector<64x32xf32> -> vector<64x32xf32>
    %c0_4 = arith.constant 0 : index
    %c0_5 = arith.constant 0 : index
    %5 = vector.load %arg3[%c0_4, %c0_5] : memref<1x32xf32, #tpu.memory_space<vmem>>, vector<1x32xf32>
    %6 = vector.broadcast %5 : vector<1x32xf32> to vector<64x32xf32>
    %7 = arith.addf %4, %6 : vector<64x32xf32>
    %cst_6 = arith.constant 0.000000e+00 : f32
    %8 = vector.broadcast %cst_6 : f32 to vector<64x32xf32>
    %9 = arith.subf %8, %7 : vector<64x32xf32>
    %10 = math.exp %9 : vector<64x32xf32>
    %cst_7 = arith.constant 1.000000e+00 : f32
    %11 = vector.broadcast %cst_7 : f32 to vector<64x32xf32>
    %12 = arith.addf %11, %10 : vector<64x32xf32>
    %13 = tpu.reciprocal %12 {approx = true} : vector<64x32xf32> -> vector<64x32xf32>
    %14 = arith.mulf %7, %13 : vector<64x32xf32>
    %15 = arith.truncf %14 : vector<64x32xf32> to vector<64x32xbf16>
    %c0_8 = arith.constant 0 : index
    %c0_9 = arith.constant 0 : index
    %16 = vector.load %arg4[%c0_8, %c0_9] : memref<32x128xbf16, #tpu.memory_space<vmem>>, vector<32x128xbf16>
    %cst_10 = arith.constant dense<0.000000e+00> : vector<64x128xf32>
    %17 = tpu.matmul %15, %16, %cst_10 {dimension_numbers = #tpu.dot_dimension_numbers<[1], [0], [0], [1], [0, 0, 1, 1], [], []>} : vector<64x32xbf16>, vector<32x128xbf16>, vector<64x128xf32> -> vector<64x128xf32>
    %c0_11 = arith.constant 0 : index
    %c0_12 = arith.constant 0 : index
    %18 = vector.load %arg5[%c0_11, %c0_12] : memref<1x128xf32, #tpu.memory_space<vmem>>, vector<1x128xf32>
    %19 = vector.broadcast %18 : vector<1x128xf32> to vector<64x128xf32>
    %20 = arith.addf %17, %19 : vector<64x128xf32>
    %cst_13 = arith.constant 0.000000e+00 : f32
    %21 = vector.broadcast %cst_13 : f32 to vector<64x128xf32>
    %22 = arith.subf %21, %20 : vector<64x128xf32>
    %23 = math.exp %22 : vector<64x128xf32>
    %cst_14 = arith.constant 1.000000e+00 : f32
    %24 = vector.broadcast %cst_14 : f32 to vector<64x128xf32>
    %25 = arith.addf %24, %23 : vector<64x128xf32>
    %26 = tpu.reciprocal %25 {approx = true} : vector<64x128xf32> -> vector<64x128xf32>
    %27 = arith.mulf %20, %26 : vector<64x128xf32>
    %cst_15 = arith.constant 0.000000e+00 : f32
    %28 = vector.broadcast %cst_15 : f32 to vector<1x10x10x128xf32>
    %c0_16 = arith.constant 0 : index
    %c0_17 = arith.constant 0 : index
    %c0_18 = arith.constant 0 : index
    %c0_19 = arith.constant 0 : index
    %29 = vector.load %arg20[%c0_16, %c0_17, %c0_18, %c0_19] : memref<1x10x10x128xf32, #tpu.memory_space<vmem>>, vector<1x10x10x128xf32>
    tpu.vector_store %arg20[%c0_16, %c0_17, %c0_18, %c0_19], %28 {strides = array<i32>} : memref<1x10x10x128xf32, #tpu.memory_space<vmem>>, vector<1x10x10x128xf32>,
    %30 = vector.shape_cast %27 : vector<64x128xf32> to vector<1x8x8x128xf32>
    %c0_20 = arith.constant 0 : index
    %c1 = arith.constant 1 : index
    %c1_21 = arith.constant 1 : index
    %c0_22 = arith.constant 0 : index
    %31 = vector.load %arg20[%c0_20, %c1, %c1_21, %c0_22] : memref<1x10x10x128xf32, #tpu.memory_space<vmem>>, vector<1x8x8x128xf32>
    tpu.vector_store %arg20[%c0_20, %c1, %c1_21, %c0_22], %30 {strides = array<i32>} : memref<1x10x10x128xf32, #tpu.memory_space<vmem>>, vector<1x8x8x128xf32>,
    %cst_23 = arith.constant 0.000000e+00 : f32
    %32 = vector.broadcast %cst_23 : f32 to vector<1x8x8x128xf32>
    %c0_24 = arith.constant 0 : index
    %c0_25 = arith.constant 0 : index
    %c0_26 = arith.constant 0 : index
    %c0_27 = arith.constant 0 : index
    %33 = vector.load %arg20[%c0_24, %c0_25, %c0_26, %c0_27] : memref<1x10x10x128xf32, #tpu.memory_space<vmem>>, vector<1x10x8x128xf32>
    %c0_28 = arith.constant 0 : index
    %c0_29 = arith.constant 0 : index
    %34 = vector.load %arg6[%c0_28, %c0_29] : memref<9x128xf32, #tpu.memory_space<vmem>>, vector<1x128xf32>
    %35 = vector.shape_cast %34 : vector<1x128xf32> to vector<1x1x1x128xf32>
    %36 = vector.extract_strided_slice %33 {offsets = [0, 0, 0, 0], sizes = [1, 8, 8, 128], strides = [1, 1, 1, 1]} : vector<1x10x8x128xf32> to vector<1x8x8x128xf32>
    %37 = vector.broadcast %35 : vector<1x1x1x128xf32> to vector<1x8x8x128xf32>
    %38 = arith.mulf %36, %37 : vector<1x8x8x128xf32>
    %39 = arith.addf %32, %38 : vector<1x8x8x128xf32>
    %c3 = arith.constant 3 : index
    %c0_30 = arith.constant 0 : index
    %40 = vector.load %arg6[%c3, %c0_30] : memref<9x128xf32, #tpu.memory_space<vmem>>, vector<1x128xf32>
    %41 = vector.shape_cast %40 : vector<1x128xf32> to vector<1x1x1x128xf32>
    %42 = vector.extract_strided_slice %33 {offsets = [0, 1, 0, 0], sizes = [1, 8, 8, 128], strides = [1, 1, 1, 1]} : vector<1x10x8x128xf32> to vector<1x8x8x128xf32>
    %43 = vector.broadcast %41 : vector<1x1x1x128xf32> to vector<1x8x8x128xf32>
    %44 = arith.mulf %42, %43 : vector<1x8x8x128xf32>
    %45 = arith.addf %39, %44 : vector<1x8x8x128xf32>
    %c6 = arith.constant 6 : index
    %c0_31 = arith.constant 0 : index
    %46 = vector.load %arg6[%c6, %c0_31] : memref<9x128xf32, #tpu.memory_space<vmem>>, vector<1x128xf32>
    %47 = vector.shape_cast %46 : vector<1x128xf32> to vector<1x1x1x128xf32>
    %48 = vector.extract_strided_slice %33 {offsets = [0, 2, 0, 0], sizes = [1, 8, 8, 128], strides = [1, 1, 1, 1]} : vector<1x10x8x128xf32> to vector<1x8x8x128xf32>
    %49 = vector.broadcast %47 : vector<1x1x1x128xf32> to vector<1x8x8x128xf32>
    %50 = arith.mulf %48, %49 : vector<1x8x8x128xf32>
    %51 = arith.addf %45, %50 : vector<1x8x8x128xf32>
    %c0_32 = arith.constant 0 : index
    %c0_33 = arith.constant 0 : index
    %c1_34 = arith.constant 1 : index
    %c0_35 = arith.constant 0 : index
    %52 = vector.load %arg20[%c0_32, %c0_33, %c1_34, %c0_35] : memref<1x10x10x128xf32, #tpu.memory_space<vmem>>, vector<1x10x8x128xf32>
    %c1_36 = arith.constant 1 : index
    %c0_37 = arith.constant 0 : index
    %53 = vector.load %arg6[%c1_36, %c0_37] : memref<9x128xf32, #tpu.memory_space<vmem>>, vector<1x128xf32>
    %54 = vector.shape_cast %53 : vector<1x128xf32> to vector<1x1x1x128xf32>
    %55 = vector.extract_strided_slice %52 {offsets = [0, 0, 0, 0], sizes = [1, 8, 8, 128], strides = [1, 1, 1, 1]} : vector<1x10x8x128xf32> to vector<1x8x8x128xf32>
    %56 = vector.broadcast %54 : vector<1x1x1x128xf32> to vector<1x8x8x128xf32>
    %57 = arith.mulf %55, %56 : vector<1x8x8x128xf32>
    %58 = arith.addf %51, %57 : vector<1x8x8x128xf32>
    %c4 = arith.constant 4 : index
    %c0_38 = arith.constant 0 : index
    %59 = vector.load %arg6[%c4, %c0_38] : memref<9x128xf32, #tpu.memory_space<vmem>>, vector<1x128xf32>
    %60 = vector.shape_cast %59 : vector<1x128xf32> to vector<1x1x1x128xf32>
    %61 = vector.extract_strided_slice %52 {offsets = [0, 1, 0, 0], sizes = [1, 8, 8, 128], strides = [1, 1, 1, 1]} : vector<1x10x8x128xf32> to vector<1x8x8x128xf32>
    %62 = vector.broadcast %60 : vector<1x1x1x128xf32> to vector<1x8x8x128xf32>
    %63 = arith.mulf %61, %62 : vector<1x8x8x128xf32>
    %64 = arith.addf %58, %63 : vector<1x8x8x128xf32>
    %c7 = arith.constant 7 : index
    %c0_39 = arith.constant 0 : index
    %65 = vector.load %arg6[%c7, %c0_39] : memref<9x128xf32, #tpu.memory_space<vmem>>, vector<1x128xf32>
    %66 = vector.shape_cast %65 : vector<1x128xf32> to vector<1x1x1x128xf32>
    %67 = vector.extract_strided_slice %52 {offsets = [0, 2, 0, 0], sizes = [1, 8, 8, 128], strides = [1, 1, 1, 1]} : vector<1x10x8x128xf32> to vector<1x8x8x128xf32>
    %68 = vector.broadcast %66 : vector<1x1x1x128xf32> to vector<1x8x8x128xf32>
    %69 = arith.mulf %67, %68 : vector<1x8x8x128xf32>
    %70 = arith.addf %64, %69 : vector<1x8x8x128xf32>
    %c0_40 = arith.constant 0 : index
    %c0_41 = arith.constant 0 : index
    %c2 = arith.constant 2 : index
    %c0_42 = arith.constant 0 : index
    %71 = vector.load %arg20[%c0_40, %c0_41, %c2, %c0_42] : memref<1x10x10x128xf32, #tpu.memory_space<vmem>>, vector<1x10x8x128xf32>
    %c2_43 = arith.constant 2 : index
    %c0_44 = arith.constant 0 : index
    %72 = vector.load %arg6[%c2_43, %c0_44] : memref<9x128xf32, #tpu.memory_space<vmem>>, vector<1x128xf32>
    %73 = vector.shape_cast %72 : vector<1x128xf32> to vector<1x1x1x128xf32>
    %74 = vector.extract_strided_slice %71 {offsets = [0, 0, 0, 0], sizes = [1, 8, 8, 128], strides = [1, 1, 1, 1]} : vector<1x10x8x128xf32> to vector<1x8x8x128xf32>
    %75 = vector.broadcast %73 : vector<1x1x1x128xf32> to vector<1x8x8x128xf32>
    %76 = arith.mulf %74, %75 : vector<1x8x8x128xf32>
    %77 = arith.addf %70, %76 : vector<1x8x8x128xf32>
    %c5 = arith.constant 5 : index
    %c0_45 = arith.constant 0 : index
    %78 = vector.load %arg6[%c5, %c0_45] : memref<9x128xf32, #tpu.memory_space<vmem>>, vector<1x128xf32>
    %79 = vector.shape_cast %78 : vector<1x128xf32> to vector<1x1x1x128xf32>
    %80 = vector.extract_strided_slice %71 {offsets = [0, 1, 0, 0], sizes = [1, 8, 8, 128], strides = [1, 1, 1, 1]} : vector<1x10x8x128xf32> to vector<1x8x8x128xf32>
    %81 = vector.broadcast %79 : vector<1x1x1x128xf32> to vector<1x8x8x128xf32>
    %82 = arith.mulf %80, %81 : vector<1x8x8x128xf32>
    %83 = arith.addf %77, %82 : vector<1x8x8x128xf32>
    %c8 = arith.constant 8 : index
    %c0_46 = arith.constant 0 : index
    %84 = vector.load %arg6[%c8, %c0_46] : memref<9x128xf32, #tpu.memory_space<vmem>>, vector<1x128xf32>
    %85 = vector.shape_cast %84 : vector<1x128xf32> to vector<1x1x1x128xf32>
    %86 = vector.extract_strided_slice %71 {offsets = [0, 2, 0, 0], sizes = [1, 8, 8, 128], strides = [1, 1, 1, 1]} : vector<1x10x8x128xf32> to vector<1x8x8x128xf32>
    %87 = vector.broadcast %85 : vector<1x1x1x128xf32> to vector<1x8x8x128xf32>
    %88 = arith.mulf %86, %87 : vector<1x8x8x128xf32>
    %89 = arith.addf %83, %88 : vector<1x8x8x128xf32>
    %cst_47 = arith.constant 0.000000e+00 : f32
    %90 = vector.broadcast %cst_47 : f32 to vector<1x8x8x128xf32>
    %91 = arith.subf %90, %89 : vector<1x8x8x128xf32>
    %92 = math.exp %91 : vector<1x8x8x128xf32>
    %cst_48 = arith.constant 1.000000e+00 : f32
    %93 = vector.broadcast %cst_48 : f32 to vector<1x8x8x128xf32>
    %94 = arith.addf %93, %92 : vector<1x8x8x128xf32>
    %95 = tpu.reciprocal %94 {approx = true} : vector<1x8x8x128xf32> -> vector<1x8x8x128xf32>
    %96 = arith.mulf %89, %95 : vector<1x8x8x128xf32>
    %97 = vector.shape_cast %96 : vector<1x8x8x128xf32> to vector<1x64x128xf32>
    %cst_49 = arith.constant dense<0.000000e+00> : vector<1x128xf32>
    %98 = vector.multi_reduction <add>, %97, %cst_49 [1] : vector<1x64x128xf32> to vector<1x128xf32>
    %cst_50 = arith.constant 6.400000e+01 : f32
    %99 = vector.broadcast %cst_50 : f32 to vector<1x128xf32>
    %100 = arith.divf %98, %99 : vector<1x128xf32>
    %101 = arith.truncf %100 : vector<1x128xf32> to vector<1x128xbf16>
    %c0_51 = arith.constant 0 : index
    %c0_52 = arith.constant 0 : index
    %102 = vector.load %arg7[%c0_51, %c0_52] : memref<128x8xbf16, #tpu.memory_space<vmem>>, vector<128x8xbf16>
    %cst_53 = arith.constant dense<0.000000e+00> : vector<1x8xf32>
    %103 = tpu.matmul %101, %102, %cst_53 {dimension_numbers = #tpu.dot_dimension_numbers<[1], [0], [0], [1], [0, 0, 1, 1], [], []>} : vector<1x128xbf16>, vector<128x8xbf16>, vector<1x8xf32> -> vector<1x8xf32>
    %c0_54 = arith.constant 0 : index
    %c0_55 = arith.constant 0 : index
    %104 = vector.load %arg8[%c0_54, %c0_55] : memref<1x8xf32, #tpu.memory_space<vmem>>, vector<1x8xf32>
    %105 = arith.addf %103, %104 : vector<1x8xf32>
    %cst_56 = arith.constant 0.000000e+00 : f32
    %106 = vector.broadcast %cst_56 : f32 to vector<1x8xf32>
    %107 = arith.subf %106, %105 : vector<1x8xf32>
    %108 = math.exp %107 : vector<1x8xf32>
    %cst_57 = arith.constant 1.000000e+00 : f32
    %109 = vector.broadcast %cst_57 : f32 to vector<1x8xf32>
    %110 = arith.addf %109, %108 : vector<1x8xf32>
    %111 = tpu.reciprocal %110 {approx = true} : vector<1x8xf32> -> vector<1x8xf32>
    %112 = arith.mulf %105, %111 : vector<1x8xf32>
    %113 = arith.truncf %112 : vector<1x8xf32> to vector<1x8xbf16>
    %c0_58 = arith.constant 0 : index
    %c0_59 = arith.constant 0 : index
    %114 = vector.load %arg9[%c0_58, %c0_59] : memref<8x128xbf16, #tpu.memory_space<vmem>>, vector<8x128xbf16>
    %cst_60 = arith.constant dense<0.000000e+00> : vector<1x128xf32>
    %115 = tpu.matmul %113, %114, %cst_60 {dimension_numbers = #tpu.dot_dimension_numbers<[1], [0], [0], [1], [0, 0, 1, 1], [], []>} : vector<1x8xbf16>, vector<8x128xbf16>, vector<1x128xf32> -> vector<1x128xf32>
    %c0_61 = arith.constant 0 : index
    %c0_62 = arith.constant 0 : index
    %116 = vector.load %arg10[%c0_61, %c0_62] : memref<1x128xf32, #tpu.memory_space<vmem>>, vector<1x128xf32>
    %117 = arith.addf %115, %116 : vector<1x128xf32>
    %cst_63 = arith.constant 0.000000e+00 : f32
    %118 = vector.broadcast %cst_63 : f32 to vector<1x128xf32>
    %119 = arith.subf %118, %117 : vector<1x128xf32>
    %120 = math.exp %119 : vector<1x128xf32>
    %cst_64 = arith.constant 1.000000e+00 : f32
    %121 = vector.broadcast %cst_64 : f32 to vector<1x128xf32>
    %122 = arith.addf %121, %120 : vector<1x128xf32>
    %123 = tpu.reciprocal %122 {approx = true} : vector<1x128xf32> -> vector<1x128xf32>
    %124 = vector.shape_cast %123 : vector<1x128xf32> to vector<1x1x1x128xf32>
    %125 = vector.broadcast %124 : vector<1x1x1x128xf32> to vector<1x8x8x128xf32>
    %126 = arith.mulf %96, %125 : vector<1x8x8x128xf32>
    %127 = vector.shape_cast %126 : vector<1x8x8x128xf32> to vector<64x128xf32>
    %128 = arith.truncf %127 : vector<64x128xf32> to vector<64x128xbf16>
    %c0_65 = arith.constant 0 : index
    %c0_66 = arith.constant 0 : index
    %129 = vector.load %arg11[%c0_65, %c0_66] : memref<128x32xbf16, #tpu.memory_space<vmem>>, vector<128x32xbf16>
    %cst_67 = arith.constant dense<0.000000e+00> : vector<64x32xf32>
    %130 = tpu.matmul %128, %129, %cst_67 {dimension_numbers = #tpu.dot_dimension_numbers<[1], [0], [0], [1], [0, 0, 1, 1], [], []>} : vector<64x128xbf16>, vector<128x32xbf16>, vector<64x32xf32> -> vector<64x32xf32>
    %c0_68 = arith.constant 0 : index
    %c0_69 = arith.constant 0 : index
    %131 = vector.load %arg12[%c0_68, %c0_69] : memref<1x32xf32, #tpu.memory_space<vmem>>, vector<1x32xf32>
    %132 = vector.broadcast %131 : vector<1x32xf32> to vector<64x32xf32>
    %133 = arith.addf %130, %132 : vector<64x32xf32>
    %134 = arith.addf %133, %14 : vector<64x32xf32>
    %135 = arith.truncf %134 : vector<64x32xf32> to vector<64x32xbf16>
    %c0_70 = arith.constant 0 : index
    %c0_71 = arith.constant 0 : index
    %136 = vector.load %arg13[%c0_70, %c0_71] : memref<32x128xbf16, #tpu.memory_space<vmem>>, vector<32x128xbf16>
    %cst_72 = arith.constant dense<0.000000e+00> : vector<64x128xf32>
    %137 = tpu.matmul %135, %136, %cst_72 {dimension_numbers = #tpu.dot_dimension_numbers<[1], [0], [0], [1], [0, 0, 1, 1], [], []>} : vector<64x32xbf16>, vector<32x128xbf16>, vector<64x128xf32> -> vector<64x128xf32>
    %c0_73 = arith.constant 0 : index
    %c0_74 = arith.constant 0 : index
    %138 = vector.load %arg14[%c0_73, %c0_74] : memref<1x128xf32, #tpu.memory_space<vmem>>, vector<1x128xf32>
    %139 = vector.broadcast %138 : vector<1x128xf32> to vector<64x128xf32>
    %140 = arith.addf %137, %139 : vector<64x128xf32>
    %cst_75 = arith.constant 0.000000e+00 : f32
    %141 = vector.broadcast %cst_75 : f32 to vector<64x128xf32>
    %142 = arith.subf %141, %140 : vector<64x128xf32>
    %143 = math.exp %142 : vector<64x128xf32>
    %cst_76 = arith.constant 1.000000e+00 : f32
    %144 = vector.broadcast %cst_76 : f32 to vector<64x128xf32>
    %145 = arith.addf %144, %143 : vector<64x128xf32>
    %146 = tpu.reciprocal %145 {approx = true} : vector<64x128xf32> -> vector<64x128xf32>
    %147 = arith.mulf %140, %146 : vector<64x128xf32>
    %148 = vector.shape_cast %147 : vector<64x128xf32> to vector<1x64x128xf32>
    %cst_77 = arith.constant dense<0.000000e+00> : vector<1x128xf32>
    %149 = vector.multi_reduction <add>, %148, %cst_77 [1] : vector<1x64x128xf32> to vector<1x128xf32>
    %cst_78 = arith.constant 6.400000e+01 : f32
    %150 = vector.broadcast %cst_78 : f32 to vector<1x128xf32>
    %151 = arith.divf %149, %150 : vector<1x128xf32>
    %152 = arith.truncf %151 : vector<1x128xf32> to vector<1x128xbf16>
    %c0_79 = arith.constant 0 : index
    %c0_80 = arith.constant 0 : index
    %153 = vector.load %arg15[%c0_79, %c0_80] : memref<128x1000xbf16, #tpu.memory_space<vmem>>, vector<128x1000xbf16>
    %cst_81 = arith.constant dense<0.000000e+00> : vector<1x1000xf32>
    %154 = tpu.matmul %152, %153, %cst_81 {dimension_numbers = #tpu.dot_dimension_numbers<[1], [0], [0], [1], [0, 0, 1, 1], [], []>} : vector<1x128xbf16>, vector<128x1000xbf16>, vector<1x1000xf32> -> vector<1x1000xf32>
    %c0_82 = arith.constant 0 : index
    %c0_83 = arith.constant 0 : index
    %155 = vector.load %arg16[%c0_82, %c0_83] : memref<1x1000xf32, #tpu.memory_space<vmem>>, vector<1x1000xf32>
    %156 = arith.addf %154, %155 : vector<1x1000xf32>
    %c0_84 = arith.constant 0 : index
    %c0_85 = arith.constant 0 : index
    %157 = vector.load %arg17[%c0_84, %c0_85] : memref<1000x4xf32, #tpu.memory_space<vmem>>, vector<1000x4xf32>
    %cst_86 = arith.constant dense<0.000000e+00> : vector<1x4xf32>
    %158 = tpu.matmul %156, %157, %cst_86 {dimension_numbers = #tpu.dot_dimension_numbers<[1], [0], [0], [1], [0, 0, 1, 1], [], []>} : vector<1x1000xf32>, vector<1000x4xf32>, vector<1x4xf32> -> vector<1x4xf32>
    %c0_87 = arith.constant 0 : index
    %c0_88 = arith.constant 0 : index
    %159 = vector.load %arg18[%c0_87, %c0_88] : memref<1x4xf32, #tpu.memory_space<vmem>>, vector<1x4xf32>
    %160 = arith.addf %158, %159 : vector<1x4xf32>
    %161 = vector.shape_cast %160 : vector<1x4xf32> to vector<1x1x4xf32>
    %c0_89 = arith.constant 0 : index
    %c0_90 = arith.constant 0 : index
    %c0_91 = arith.constant 0 : index
    %162 = vector.load %arg19[%c0_89, %c0_90, %c0_91] : memref<1x1x4xf32, #tpu.memory_space<vmem>>, vector<1x1x4xf32>
    tpu.vector_store %arg19[%c0_89, %c0_90, %c0_91], %161 {strides = array<i32>} : memref<1x1x4xf32, #tpu.memory_space<vmem>>, vector<1x1x4xf32>,
    return
  }
  func.func @transform_0(%arg0: i32) -> (i32, i32, i32) {
    %c0_i32 = arith.constant 0 : i32
    %c0_i32_0 = arith.constant 0 : i32
    %c0_i32_1 = arith.constant 0 : i32
    return %arg0, %c0_i32, %c0_i32_0 : i32, i32, i32
  }
  func.func @transform_1(%arg0: i32) -> (i32, i32) {
    %c0_i32 = arith.constant 0 : i32
    %c0_i32_0 = arith.constant 0 : i32
    %c0_i32_1 = arith.constant 0 : i32
    return %c0_i32, %c0_i32_0 : i32, i32
  }
  func.func @transform_2(%arg0: i32) -> (i32, i32) {
    %c0_i32 = arith.constant 0 : i32
    %c0_i32_0 = arith.constant 0 : i32
    %c0_i32_1 = arith.constant 0 : i32
    return %c0_i32, %c0_i32_0 : i32, i32
  }
  func.func @transform_3(%arg0: i32) -> (i32, i32) {
    %c0_i32 = arith.constant 0 : i32
    %c0_i32_0 = arith.constant 0 : i32
    %c0_i32_1 = arith.constant 0 : i32
    return %c0_i32, %c0_i32_0 : i32, i32
  }
  func.func @transform_4(%arg0: i32) -> (i32, i32) {
    %c0_i32 = arith.constant 0 : i32
    %c0_i32_0 = arith.constant 0 : i32
    %c0_i32_1 = arith.constant 0 : i32
    return %c0_i32, %c0_i32_0 : i32, i32
  }
  func.func @transform_5(%arg0: i32) -> (i32, i32) {
    %c0_i32 = arith.constant 0 : i32
    %c0_i32_0 = arith.constant 0 : i32
    %c0_i32_1 = arith.constant 0 : i32
    return %c0_i32, %c0_i32_0 : i32, i32
  }
  func.func @transform_6(%arg0: i32) -> (i32, i32) {
    %c0_i32 = arith.constant 0 : i32
    %c0_i32_0 = arith.constant 0 : i32
    %c0_i32_1 = arith.constant 0 : i32
    return %c0_i32, %c0_i32_0 : i32, i32
  }
  func.func @transform_7(%arg0: i32) -> (i32, i32) {
    %c0_i32 = arith.constant 0 : i32
    %c0_i32_0 = arith.constant 0 : i32
    %c0_i32_1 = arith.constant 0 : i32
    return %c0_i32, %c0_i32_0 : i32, i32
  }
  func.func @transform_8(%arg0: i32) -> (i32, i32) {
    %c0_i32 = arith.constant 0 : i32
    %c0_i32_0 = arith.constant 0 : i32
    %c0_i32_1 = arith.constant 0 : i32
    return %c0_i32, %c0_i32_0 : i32, i32
  }
  func.func @transform_9(%arg0: i32) -> (i32, i32) {
    %c0_i32 = arith.constant 0 : i32
    %c0_i32_0 = arith.constant 0 : i32
    %c0_i32_1 = arith.constant 0 : i32
    return %c0_i32, %c0_i32_0 : i32, i32
  }
  func.func @transform_10(%arg0: i32) -> (i32, i32) {
    %c0_i32 = arith.constant 0 : i32
    %c0_i32_0 = arith.constant 0 : i32
    %c0_i32_1 = arith.constant 0 : i32
    return %c0_i32, %c0_i32_0 : i32, i32
  }
  func.func @transform_11(%arg0: i32) -> (i32, i32) {
    %c0_i32 = arith.constant 0 : i32
    %c0_i32_0 = arith.constant 0 : i32
    %c0_i32_1 = arith.constant 0 : i32
    return %c0_i32, %c0_i32_0 : i32, i32
  }
  func.func @transform_12(%arg0: i32) -> (i32, i32) {
    %c0_i32 = arith.constant 0 : i32
    %c0_i32_0 = arith.constant 0 : i32
    %c0_i32_1 = arith.constant 0 : i32
    return %c0_i32, %c0_i32_0 : i32, i32
  }
  func.func @transform_13(%arg0: i32) -> (i32, i32) {
    %c0_i32 = arith.constant 0 : i32
    %c0_i32_0 = arith.constant 0 : i32
    %c0_i32_1 = arith.constant 0 : i32
    return %c0_i32, %c0_i32_0 : i32, i32
  }
  func.func @transform_14(%arg0: i32) -> (i32, i32) {
    %c0_i32 = arith.constant 0 : i32
    %c0_i32_0 = arith.constant 0 : i32
    %c0_i32_1 = arith.constant 0 : i32
    return %c0_i32, %c0_i32_0 : i32, i32
  }
  func.func @transform_15(%arg0: i32) -> (i32, i32) {
    %c0_i32 = arith.constant 0 : i32
    %c0_i32_0 = arith.constant 0 : i32
    %c0_i32_1 = arith.constant 0 : i32
    return %c0_i32, %c0_i32_0 : i32, i32
  }
  func.func @transform_16(%arg0: i32) -> (i32, i32) {
    %c0_i32 = arith.constant 0 : i32
    %c0_i32_0 = arith.constant 0 : i32
    %c0_i32_1 = arith.constant 0 : i32
    return %c0_i32, %c0_i32_0 : i32, i32
  }
  func.func @transform_17(%arg0: i32) -> (i32, i32) {
    %c0_i32 = arith.constant 0 : i32
    %c0_i32_0 = arith.constant 0 : i32
    %c0_i32_1 = arith.constant 0 : i32
    return %c0_i32, %c0_i32_0 : i32, i32
  }
  func.func @transform_18(%arg0: i32) -> (i32, i32, i32) {
    %c0_i32 = arith.constant 0 : i32
    %c0_i32_0 = arith.constant 0 : i32
    %c0_i32_1 = arith.constant 0 : i32
    return %arg0, %c0_i32, %c0_i32_0 : i32, i32, i32
  }
}

</mosaic_0001>

<llo_original>
// kernel: efficientnet_pretrain_forward.1
$region0: #{efficientnet_pretrain_forward.1}
  #allocation0 [shape = 'u32[]', space=smem, size = 0x4, offset = 0x4, fixed_abs, tag = 'smem constant byte address 0x4 - core index']
  #allocation1 [shape = 'u32[144,128]{1,0:T(1,128)}', space=vmem, size = 0x12000, scoped, tag = 'internal scratch']
  #allocation2 [shape = 'f32[1,10,10,128]{3,2,1,0:T(8,128)}', space=vmem, size = 0x14000, scoped, tag = 'scratch operand']
  %s0 = inlined_call_operand.vmem [shape: f32[2,64,128], index: 0, kind: input, shape index: {}]
  %s1 = inlined_call_operand.vmem [shape: bf16[128,32], index: 1, kind: input, shape index: {}]
  %s2 = inlined_call_operand.vmem [shape: f32[1,32], index: 2, kind: input, shape index: {}]
  %s3 = inlined_call_operand.vmem [shape: bf16[32,128], index: 3, kind: input, shape index: {}]
  %s4 = inlined_call_operand.vmem [shape: f32[1,128], index: 4, kind: input, shape index: {}]
  %s5 = inlined_call_operand.vmem [shape: f32[9,128], index: 5, kind: input, shape index: {}]
  %s6 = inlined_call_operand.vmem [shape: bf16[128,8], index: 6, kind: input, shape index: {}]
  %s7 = inlined_call_operand.vmem [shape: f32[1,8], index: 7, kind: input, shape index: {}]
  %s8 = inlined_call_operand.vmem [shape: bf16[8,128], index: 8, kind: input, shape index: {}]
  %s9 = inlined_call_operand.vmem [shape: f32[1,128], index: 9, kind: input, shape index: {}]
  %s10 = inlined_call_operand.vmem [shape: bf16[128,32], index: 10, kind: input, shape index: {}]
  %s11 = inlined_call_operand.vmem [shape: f32[1,32], index: 11, kind: input, shape index: {}]
  %s12 = inlined_call_operand.vmem [shape: bf16[32,128], index: 12, kind: input, shape index: {}]
  %s13 = inlined_call_operand.vmem [shape: f32[1,128], index: 13, kind: input, shape index: {}]
  %s14 = inlined_call_operand.vmem [shape: bf16[128,1000], index: 14, kind: input, shape index: {}]
  %s15 = inlined_call_operand.vmem [shape: f32[1,1000], index: 15, kind: input, shape index: {}]
  %s16 = inlined_call_operand.vmem [shape: f32[1000,4], index: 16, kind: input, shape index: {}]
  %s17 = inlined_call_operand.vmem [shape: f32[1,4], index: 17, kind: input, shape index: {}]
  %s18 = inlined_call_operand.hbm [shape: f32[2,1,4], index: 18, kind: output, shape index: {}]
  %s19 = sld [smem:[#allocation0]]
  $region105: #{efficientnet_pretrain_forward.1} parent=0
    _
  %s21 = ssub.s32 1, %s19
  %s22 = scalar_select 0, %s21, %s19
  $region1: #{efficientnet_pretrain_forward.1} parent=0
    #allocation3 [shape = 'u8[1024]{0}', space=vmem, size = 0x400, scoped, tag = 'output window, operand 0']
    #allocation4 [shape = 's32[2]{0}', space=sflag, size = 0x8, scoped, tag = 'scoped memory for efficientnet_pretrain_forward.1']
    %23 = vsyncpa [#allocation4], 0
    %s24 = scalar_lea.sflag [#allocation4], 1
    %25 = vsyncpa %s24, 0
    loop: start=0, step=1, limit=4
    $region2: #{efficientnet_pretrain_forward.1} parent=1 // loop_pre_header
      _
    $region3: #{efficientnet_pretrain_forward.1} parent=1 // loop_header
      %s27 = sphi 0, %s31
      %p28 = scmp.ge.s32.totalorder %s27, 4
      %s37 = sphi 0, %s39
      %s40 = sphi 0, %s37
      %s41 = sphi 0, %s40
      %s57 = sphi 0, %s41
      %s61 = sphi 0, %s61
      %s63 = sphi 0, %s61
      %s64 = sphi 0, %s63
      %s78 = sphi 0, %s64
      %s82 = sphi 0, %s82
      %s84 = sphi 0, %s82
      %s85 = sphi 0, %s84
      %s99 = sphi 0, %s85
      %s103 = sphi 0, %s103
      %s105 = sphi 0, %s103
      %s106 = sphi 0, %s105
      %s120 = sphi 0, %s106
      %s124 = sphi 0, %s124
      %s126 = sphi 0, %s124
      %s127 = sphi 0, %s126
      %s141 = sphi 0, %s127
      %s145 = sphi 0, %s145
      %s147 = sphi 0, %s145
      %s148 = sphi 0, %s147
      %s162 = sphi 0, %s148
      %s166 = sphi 0, %s166
      %s168 = sphi 0, %s166
      %s169 = sphi 0, %s168
      %s183 = sphi 0, %s169
      %s187 = sphi 0, %s187
      %s189 = sphi 0, %s187
      %s190 = sphi 0, %s189
      %s204 = sphi 0, %s190
      %s208 = sphi 0, %s208
      %s210 = sphi 0, %s208
      %s211 = sphi 0, %s210
      %s225 = sphi 0, %s211
      %s229 = sphi 0, %s229
      %s231 = sphi 0, %s229
      %s232 = sphi 0, %s231
      %s246 = sphi 0, %s232
      %s250 = sphi 0, %s250
      %s252 = sphi 0, %s250
      %s253 = sphi 0, %s252
      %s267 = sphi 0, %s253
      %s271 = sphi 0, %s271
      %s273 = sphi 0, %s271
      %s274 = sphi 0, %s273
      %s288 = sphi 0, %s274
      %s292 = sphi 0, %s292
      %s294 = sphi 0, %s292
      %s295 = sphi 0, %s294
      %s309 = sphi 0, %s295
      %s313 = sphi 0, %s313
      %s315 = sphi 0, %s313
      %s316 = sphi 0, %s315
      %s330 = sphi 0, %s316
      %s334 = sphi 0, %s334
      %s336 = sphi 0, %s334
      %s337 = sphi 0, %s336
      %s351 = sphi 0, %s337
      %s355 = sphi 0, %s355
      %s357 = sphi 0, %s355
      %s358 = sphi 0, %s357
      %s372 = sphi 0, %s358
      %s376 = sphi 0, %s376
      %s378 = sphi 0, %s376
      %s379 = sphi 0, %s378
      %s393 = sphi 0, %s379
      %s397 = sphi 0, %s397
      %s399 = sphi 0, %s397
      %s400 = sphi 0, %s399
      %s414 = sphi 0, %s400
      %s420 = sphi 0, %s422
      %s423 = sphi 0, %s420
      %s424 = sphi 0, %s423
      %s440 = sphi 0, %s424
    $region4: #{efficientnet_pretrain_forward.1} parent=1 // loop_header_branch
      %30 = sbr.rel (%p28) target = $region8
    $region5: #{efficientnet_pretrain_forward.1} parent=1 // loop_body
      %s32 = ssub.s32 %s27, 1
      %s33 = ssub.s32 %s27, 2
      %s34 = sadd.s32 %s27, 1
      %s35 = ssub.s32 %s27, %s34
      %p36 = scmp.eq.s32.totalorder %s35, 0
      %s38 = sadd.s32 %s37, 1
      %s39 = scalar_select %p36, %s37, %s38
      %p42 = pneg %p36
      %p43 = scmp.eq.s32.totalorder %s27, 1
      %p44 = por %p42, %p43
      %p45 = scmp.ne.s32.totalorder %s37, %s40
      %p46 = scmp.eq.s32.totalorder %s27, 0
      %p47 = por %p45, %p46
      %p48 = scmp.ne.s32.totalorder %s37, %s40
      %p49 = scmp.eq.s32.totalorder %s32, 1
      %p50 = por %p48, %p49
      %p51 = scmp.ne.s32.totalorder %s40, %s41
      %p52 = scmp.eq.s32.totalorder %s32, 0
      %p53 = por %p51, %p52
      %p54 = scmp.ne.s32.totalorder %s40, %s41
      %p55 = scmp.eq.s32.totalorder %s33, 1
      %p56 = por %p54, %p55
      %p58 = scmp.ne.s32.totalorder %s41, %s57
      %p59 = scmp.eq.s32.totalorder %s33, 0
      %p60 = por %p58, %p59
      %s62 = sadd.s32 %s61, 1
      %p65 = scmp.eq.s32.totalorder %s27, 1
      %p66 = scmp.ne.s32.totalorder %s61, %s63
      %p67 = scmp.eq.s32.totalorder %s27, 0
      %p68 = por %p66, %p67
      %p69 = scmp.ne.s32.totalorder %s61, %s63
      %p70 = scmp.eq.s32.totalorder %s32, 1
      %p71 = por %p69, %p70
      %p72 = scmp.ne.s32.totalorder %s63, %s64
      %p73 = scmp.eq.s32.totalorder %s32, 0
      %p74 = por %p72, %p73
      %p75 = scmp.ne.s32.totalorder %s63, %s64
      %p76 = scmp.eq.s32.totalorder %s33, 1
      %p77 = por %p75, %p76
      %p79 = scmp.ne.s32.totalorder %s64, %s78
      %p80 = scmp.eq.s32.totalorder %s33, 0
      %p81 = por %p79, %p80
      %s83 = sadd.s32 %s82, 1
      %p86 = scmp.eq.s32.totalorder %s27, 1
      %p87 = scmp.ne.s32.totalorder %s82, %s84
      %p88 = scmp.eq.s32.totalorder %s27, 0
      %p89 = por %p87, %p88
      %p90 = scmp.ne.s32.totalorder %s82, %s84
      %p91 = scmp.eq.s32.totalorder %s32, 1
      %p92 = por %p90, %p91
      %p93 = scmp.ne.s32.totalorder %s84, %s85
      %p94 = scmp.eq.s32.totalorder %s32, 0
      %p95 = por %p93, %p94
      %p96 = scmp.ne.s32.totalorder %s84, %s85
      %p97 = scmp.eq.s32.totalorder %s33, 1
      %p98 = por %p96, %p97
      %p100 = scmp.ne.s32.totalorder %s85, %s99
      %p101 = scmp.eq.s32.totalorder %s33, 0
      %p102 = por %p100, %p101
      %s104 = sadd.s32 %s103, 1
      %p107 = scmp.eq.s32.totalorder %s27, 1
      %p108 = scmp.ne.s32.totalorder %s103, %s105
      %p109 = scmp.eq.s32.totalorder %s27, 0
      %p110 = por %p108, %p109
      %p111 = scmp.ne.s32.totalorder %s103, %s105
      %p112 = scmp.eq.s32.totalorder %s32, 1
      %p113 = por %p111, %p112
      %p114 = scmp.ne.s32.totalorder %s105, %s106
      %p115 = scmp.eq.s32.totalorder %s32, 0
      %p116 = por %p114, %p115
      %p117 = scmp.ne.s32.totalorder %s105, %s106
      %p118 = scmp.eq.s32.totalorder %s33, 1
      %p119 = por %p117, %p118
      %p121 = scmp.ne.s32.totalorder %s106, %s120
      %p122 = scmp.eq.s32.totalorder %s33, 0
      %p123 = por %p121, %p122
      %s125 = sadd.s32 %s124, 1
      %p128 = scmp.eq.s32.totalorder %s27, 1
      %p129 = scmp.ne.s32.totalorder %s124, %s126
      %p130 = scmp.eq.s32.totalorder %s27, 0
      %p131 = por %p129, %p130
      %p132 = scmp.ne.s32.totalorder %s124, %s126
      %p133 = scmp.eq.s32.totalorder %s32, 1
      %p134 = por %p132, %p133
      %p135 = scmp.ne.s32.totalorder %s126, %s127
      %p136 = scmp.eq.s32.totalorder %s32, 0
      %p137 = por %p135, %p136
      %p138 = scmp.ne.s32.totalorder %s126, %s127
      %p139 = scmp.eq.s32.totalorder %s33, 1
      %p140 = por %p138, %p139
      %p142 = scmp.ne.s32.totalorder %s127, %s141
      %p143 = scmp.eq.s32.totalorder %s33, 0
      %p144 = por %p142, %p143
      %s146 = sadd.s32 %s145, 1
      %p149 = scmp.eq.s32.totalorder %s27, 1
      %p150 = scmp.ne.s32.totalorder %s145, %s147
      %p151 = scmp.eq.s32.totalorder %s27, 0
      %p152 = por %p150, %p151
      %p153 = scmp.ne.s32.totalorder %s145, %s147
      %p154 = scmp.eq.s32.totalorder %s32, 1
      %p155 = por %p153, %p154
      %p156 = scmp.ne.s32.totalorder %s147, %s148
      %p157 = scmp.eq.s32.totalorder %s32, 0
      %p158 = por %p156, %p157
      %p159 = scmp.ne.s32.totalorder %s147, %s148
      %p160 = scmp.eq.s32.totalorder %s33, 1
      %p161 = por %p159, %p160
      %p163 = scmp.ne.s32.totalorder %s148, %s162
      %p164 = scmp.eq.s32.totalorder %s33, 0
      %p165 = por %p163, %p164
      %s167 = sadd.s32 %s166, 1
      %p170 = scmp.eq.s32.totalorder %s27, 1
      %p171 = scmp.ne.s32.totalorder %s166, %s168
      %p172 = scmp.eq.s32.totalorder %s27, 0
      %p173 = por %p171, %p172
      %p174 = scmp.ne.s32.totalorder %s166, %s168
      %p175 = scmp.eq.s32.totalorder %s32, 1
      %p176 = por %p174, %p175
      %p177 = scmp.ne.s32.totalorder %s168, %s169
      %p178 = scmp.eq.s32.totalorder %s32, 0
      %p179 = por %p177, %p178
      %p180 = scmp.ne.s32.totalorder %s168, %s169
      %p181 = scmp.eq.s32.totalorder %s33, 1
      %p182 = por %p180, %p181
      %p184 = scmp.ne.s32.totalorder %s169, %s183
      %p185 = scmp.eq.s32.totalorder %s33, 0
      %p186 = por %p184, %p185
      %s188 = sadd.s32 %s187, 1
      %p191 = scmp.eq.s32.totalorder %s27, 1
      %p192 = scmp.ne.s32.totalorder %s187, %s189
      %p193 = scmp.eq.s32.totalorder %s27, 0
      %p194 = por %p192, %p193
      %p195 = scmp.ne.s32.totalorder %s187, %s189
      %p196 = scmp.eq.s32.totalorder %s32, 1
      %p197 = por %p195, %p196
      %p198 = scmp.ne.s32.totalorder %s189, %s190
      %p199 = scmp.eq.s32.totalorder %s32, 0
      %p200 = por %p198, %p199
      %p201 = scmp.ne.s32.totalorder %s189, %s190
      %p202 = scmp.eq.s32.totalorder %s33, 1
      %p203 = por %p201, %p202
      %p205 = scmp.ne.s32.totalorder %s190, %s204
      %p206 = scmp.eq.s32.totalorder %s33, 0
      %p207 = por %p205, %p206
      %s209 = sadd.s32 %s208, 1
      %p212 = scmp.eq.s32.totalorder %s27, 1
      %p213 = scmp.ne.s32.totalorder %s208, %s210
      %p214 = scmp.eq.s32.totalorder %s27, 0
      %p215 = por %p213, %p214
      %p216 = scmp.ne.s32.totalorder %s208, %s210
      %p217 = scmp.eq.s32.totalorder %s32, 1
      %p218 = por %p216, %p217
      %p219 = scmp.ne.s32.totalorder %s210, %s211
      %p220 = scmp.eq.s32.totalorder %s32, 0
      %p221 = por %p219, %p220
      %p222 = scmp.ne.s32.totalorder %s210, %s211
      %p223 = scmp.eq.s32.totalorder %s33, 1
      %p224 = por %p222, %p223
      %p226 = scmp.ne.s32.totalorder %s211, %s225
      %p227 = scmp.eq.s32.totalorder %s33, 0
      %p228 = por %p226, %p227
      %s230 = sadd.s32 %s229, 1
      %p233 = scmp.eq.s32.totalorder %s27, 1
      %p234 = scmp.ne.s32.totalorder %s229, %s231
      %p235 = scmp.eq.s32.totalorder %s27, 0
      %p236 = por %p234, %p235
      %p237 = scmp.ne.s32.totalorder %s229, %s231
      %p238 = scmp.eq.s32.totalorder %s32, 1
      %p239 = por %p237, %p238
      %p240 = scmp.ne.s32.totalorder %s231, %s232
      %p241 = scmp.eq.s32.totalorder %s32, 0
      %p242 = por %p240, %p241
      %p243 = scmp.ne.s32.totalorder %s231, %s232
      %p244 = scmp.eq.s32.totalorder %s33, 1
      %p245 = por %p243, %p244
      %p247 = scmp.ne.s32.totalorder %s232, %s246
      %p248 = scmp.eq.s32.totalorder %s33, 0
      %p249 = por %p247, %p248
      %s251 = sadd.s32 %s250, 1
      %p254 = scmp.eq.s32.totalorder %s27, 1
      %p255 = scmp.ne.s32.totalorder %s250, %s252
      %p256 = scmp.eq.s32.totalorder %s27, 0
      %p257 = por %p255, %p256
      %p258 = scmp.ne.s32.totalorder %s250, %s252
      %p259 = scmp.eq.s32.totalorder %s32, 1
      %p260 = por %p258, %p259
      %p261 = scmp.ne.s32.totalorder %s252, %s253
      %p262 = scmp.eq.s32.totalorder %s32, 0
      %p263 = por %p261, %p262
      %p264 = scmp.ne.s32.totalorder %s252, %s253
      %p265 = scmp.eq.s32.totalorder %s33, 1
      %p266 = por %p264, %p265
      %p268 = scmp.ne.s32.totalorder %s253, %s267
      %p269 = scmp.eq.s32.totalorder %s33, 0
      %p270 = por %p268, %p269
      %s272 = sadd.s32 %s271, 1
      %p275 = scmp.eq.s32.totalorder %s27, 1
      %p276 = scmp.ne.s32.totalorder %s271, %s273
      %p277 = scmp.eq.s32.totalorder %s27, 0
      %p278 = por %p276, %p277
      %p279 = scmp.ne.s32.totalorder %s271, %s273
      %p280 = scmp.eq.s32.totalorder %s32, 1
      %p281 = por %p279, %p280
      %p282 = scmp.ne.s32.totalorder %s273, %s274
      %p283 = scmp.eq.s32.totalorder %s32, 0
      %p284 = por %p282, %p283
      %p285 = scmp.ne.s32.totalorder %s273, %s274
      %p286 = scmp.eq.s32.totalorder %s33, 1
      %p287 = por %p285, %p286
      %p289 = scmp.ne.s32.totalorder %s274, %s288
      %p290 = scmp.eq.s32.totalorder %s33, 0
      %p291 = por %p289, %p290
      %s293 = sadd.s32 %s292, 1
      %p296 = scmp.eq.s32.totalorder %s27, 1
      %p297 = scmp.ne.s32.totalorder %s292, %s294
      %p298 = scmp.eq.s32.totalorder %s27, 0
      %p299 = por %p297, %p298
      %p300 = scmp.ne.s32.totalorder %s292, %s294
      %p301 = scmp.eq.s32.totalorder %s32, 1
      %p302 = por %p300, %p301
      %p303 = scmp.ne.s32.totalorder %s294, %s295
      %p304 = scmp.eq.s32.totalorder %s32, 0
      %p305 = por %p303, %p304
      %p306 = scmp.ne.s32.totalorder %s294, %s295
      %p307 = scmp.eq.s32.totalorder %s33, 1
      %p308 = por %p306, %p307
      %p310 = scmp.ne.s32.totalorder %s295, %s309
      %p311 = scmp.eq.s32.totalorder %s33, 0
      %p312 = por %p310, %p311
      %s314 = sadd.s32 %s313, 1
      %p317 = scmp.eq.s32.totalorder %s27, 1
      %p318 = scmp.ne.s32.totalorder %s313, %s315
      %p319 = scmp.eq.s32.totalorder %s27, 0
      %p320 = por %p318, %p319
      %p321 = scmp.ne.s32.totalorder %s313, %s315
      %p322 = scmp.eq.s32.totalorder %s32, 1
      %p323 = por %p321, %p322
      %p324 = scmp.ne.s32.totalorder %s315, %s316
      %p325 = scmp.eq.s32.totalorder %s32, 0
      %p326 = por %p324, %p325
      %p327 = scmp.ne.s32.totalorder %s315, %s316
      %p328 = scmp.eq.s32.totalorder %s33, 1
      %p329 = por %p327, %p328
      %p331 = scmp.ne.s32.totalorder %s316, %s330
      %p332 = scmp.eq.s32.totalorder %s33, 0
      %p333 = por %p331, %p332
      %s335 = sadd.s32 %s334, 1
      %p338 = scmp.eq.s32.totalorder %s27, 1
      %p339 = scmp.ne.s32.totalorder %s334, %s336
      %p340 = scmp.eq.s32.totalorder %s27, 0
      %p341 = por %p339, %p340
      %p342 = scmp.ne.s32.totalorder %s334, %s336
      %p343 = scmp.eq.s32.totalorder %s32, 1
      %p344 = por %p342, %p343
      %p345 = scmp.ne.s32.totalorder %s336, %s337
      %p346 = scmp.eq.s32.totalorder %s32, 0
      %p347 = por %p345, %p346
      %p348 = scmp.ne.s32.totalorder %s336, %s337
      %p349 = scmp.eq.s32.totalorder %s33, 1
      %p350 = por %p348, %p349
      %p352 = scmp.ne.s32.totalorder %s337, %s351
      %p353 = scmp.eq.s32.totalorder %s33, 0
      %p354 = por %p352, %p353
      %s356 = sadd.s32 %s355, 1
      %p359 = scmp.eq.s32.totalorder %s27, 1
      %p360 = scmp.ne.s32.totalorder %s355, %s357
      %p361 = scmp.eq.s32.totalorder %s27, 0
      %p362 = por %p360, %p361
      %p363 = scmp.ne.s32.totalorder %s355, %s357
      %p364 = scmp.eq.s32.totalorder %s32, 1
      %p365 = por %p363, %p364
      %p366 = scmp.ne.s32.totalorder %s357, %s358
      %p367 = scmp.eq.s32.totalorder %s32, 0
      %p368 = por %p366, %p367
      %p369 = scmp.ne.s32.totalorder %s357, %s358
      %p370 = scmp.eq.s32.totalorder %s33, 1
      %p371 = por %p369, %p370
      %p373 = scmp.ne.s32.totalorder %s358, %s372
      %p374 = scmp.eq.s32.totalorder %s33, 0
      %p375 = por %p373, %p374
      %s377 = sadd.s32 %s376, 1
      %p380 = scmp.eq.s32.totalorder %s27, 1
      %p381 = scmp.ne.s32.totalorder %s376, %s378
      %p382 = scmp.eq.s32.totalorder %s27, 0
      %p383 = por %p381, %p382
      %p384 = scmp.ne.s32.totalorder %s376, %s378
      %p385 = scmp.eq.s32.totalorder %s32, 1
      %p386 = por %p384, %p385
      %p387 = scmp.ne.s32.totalorder %s378, %s379
      %p388 = scmp.eq.s32.totalorder %s32, 0
      %p389 = por %p387, %p388
      %p390 = scmp.ne.s32.totalorder %s378, %s379
      %p391 = scmp.eq.s32.totalorder %s33, 1
      %p392 = por %p390, %p391
      %p394 = scmp.ne.s32.totalorder %s379, %s393
      %p395 = scmp.eq.s32.totalorder %s33, 0
      %p396 = por %p394, %p395
      %s398 = sadd.s32 %s397, 1
      %p401 = scmp.eq.s32.totalorder %s27, 1
      %p402 = scmp.ne.s32.totalorder %s397, %s399
      %p403 = scmp.eq.s32.totalorder %s27, 0
      %p404 = por %p402, %p403
      %p405 = scmp.ne.s32.totalorder %s397, %s399
      %p406 = scmp.eq.s32.totalorder %s32, 1
      %p407 = por %p405, %p406
      %p408 = scmp.ne.s32.totalorder %s399, %s400
      %p409 = scmp.eq.s32.totalorder %s32, 0
      %p410 = por %p408, %p409
      %p411 = scmp.ne.s32.totalorder %s399, %s400
      %p412 = scmp.eq.s32.totalorder %s33, 1
      %p413 = por %p411, %p412
      %p415 = scmp.ne.s32.totalorder %s400, %s414
      %p416 = scmp.eq.s32.totalorder %s33, 0
      %p417 = por %p415, %p416
      %s418 = ssub.s32 %s27, %s34
      %p419 = scmp.eq.s32.totalorder %s418, 0
      %s421 = sadd.s32 %s420, 1
      %s422 = scalar_select %p419, %s420, %s421
      %p425 = pneg %p419
      %p426 = scmp.eq.s32.totalorder %s27, 1
      %p427 = por %p425, %p426
      %p428 = scmp.ne.s32.totalorder %s420, %s423
      %p429 = scmp.eq.s32.totalorder %s27, 0
      %p430 = por %p428, %p429
      %p431 = scmp.ne.s32.totalorder %s420, %s423
      %p432 = scmp.eq.s32.totalorder %s32, 1
      %p433 = por %p431, %p432
      %p434 = scmp.ne.s32.totalorder %s423, %s424
      %p435 = scmp.eq.s32.totalorder %s32, 0
      %p436 = por %p434, %p435
      %p437 = scmp.ne.s32.totalorder %s423, %s424
      %p438 = scmp.eq.s32.totalorder %s33, 1
      %p439 = por %p437, %p438
      %p441 = scmp.ne.s32.totalorder %s424, %s440
      %p442 = scmp.eq.s32.totalorder %s33, 0
      %p443 = por %p441, %p442
      %p444 = scmp.le.s32.totalorder 1, %s27
      %p445 = scmp.lt.s32.totalorder %s27, 3
      %p446 = pnand %p444, %p445
      %p447 = pneg %p446
      // Predicated region
      $region9: #{efficientnet_pretrain_forward.1} parent=5 // pred_check
        _
      $region10: #{efficientnet_pretrain_forward.1} parent=5 // pred_check_branch
        %449 = sbr.rel (%p446) target = $region12
      $region11: #{efficientnet_pretrain_forward.1} parent=5 // pred_region
        %s450 = ssub.s32 %s27, 1
        // Predicated region
        $region13: #{efficientnet_pretrain_forward.1} parent=11 // pred_check
          %p451 = pneg %p74
        $region14: #{efficientnet_pretrain_forward.1} parent=11 // pred_check_branch
          %453 = sbr.rel (%p451) target = $region16
        $region15: #{efficientnet_pretrain_forward.1} parent=11 // pred_region
          _
        $region16: #{efficientnet_pretrain_forward.1} parent=11 // pred_fallthru
          _
        // Predicated region
        $region17: #{efficientnet_pretrain_forward.1} parent=11 // pred_check
          %p454 = pneg %p95
        $region18: #{efficientnet_pretrain_forward.1} parent=11 // pred_check_branch
          %456 = sbr.rel (%p454) target = $region20
        $region19: #{efficientnet_pretrain_forward.1} parent=11 // pred_region
          _
        $region20: #{efficientnet_pretrain_forward.1} parent=11 // pred_fallthru
          _
        // Predicated region
        $region21: #{efficientnet_pretrain_forward.1} parent=11 // pred_check
          %p457 = pneg %p116
        $region22: #{efficientnet_pretrain_forward.1} parent=11 // pred_check_branch
          %459 = sbr.rel (%p457) target = $region24
        $region23: #{efficientnet_pretrain_forward.1} parent=11 // pred_region
          _
        $region24: #{efficientnet_pretrain_forward.1} parent=11 // pred_fallthru
          _
        // Predicated region
        $region25: #{efficientnet_pretrain_forward.1} parent=11 // pred_check
          %p460 = pneg %p137
        $region26: #{efficientnet_pretrain_forward.1} parent=11 // pred_check_branch
          %462 = sbr.rel (%p460) target = $region28
        $region27: #{efficientnet_pretrain_forward.1} parent=11 // pred_region
          _
        $region28: #{efficientnet_pretrain_forward.1} parent=11 // pred_fallthru
          _
        // Predicated region
        $region29: #{efficientnet_pretrain_forward.1} parent=11 // pred_check
          %p463 = pneg %p158
        $region30: #{efficientnet_pretrain_forward.1} parent=11 // pred_check_branch
          %465 = sbr.rel (%p463) target = $region32
        $region31: #{efficientnet_pretrain_forward.1} parent=11 // pred_region
          _
        $region32: #{efficientnet_pretrain_forward.1} parent=11 // pred_fallthru
          _
        // Predicated region
        $region33: #{efficientnet_pretrain_forward.1} parent=11 // pred_check
          %p466 = pneg %p179
        $region34: #{efficientnet_pretrain_forward.1} parent=11 // pred_check_branch
          %468 = sbr.rel (%p466) target = $region36
        $region35: #{efficientnet_pretrain_forward.1} parent=11 // pred_region
          _
        $region36: #{efficientnet_pretrain_forward.1} parent=11 // pred_fallthru
          _
        // Predicated region
        $region37: #{efficientnet_pretrain_forward.1} parent=11 // pred_check
          %p469 = pneg %p200
        $region38: #{efficientnet_pretrain_forward.1} parent=11 // pred_check_branch
          %471 = sbr.rel (%p469) target = $region40
        $region39: #{efficientnet_pretrain_forward.1} parent=11 // pred_region
          _
        $region40: #{efficientnet_pretrain_forward.1} parent=11 // pred_fallthru
          _
        // Predicated region
        $region41: #{efficientnet_pretrain_forward.1} parent=11 // pred_check
          %p472 = pneg %p221
        $region42: #{efficientnet_pretrain_forward.1} parent=11 // pred_check_branch
          %474 = sbr.rel (%p472) target = $region44
        $region43: #{efficientnet_pretrain_forward.1} parent=11 // pred_region
          _
        $region44: #{efficientnet_pretrain_forward.1} parent=11 // pred_fallthru
          _
        // Predicated region
        $region45: #{efficientnet_pretrain_forward.1} parent=11 // pred_check
          %p475 = pneg %p242
        $region46: #{efficientnet_pretrain_forward.1} parent=11 // pred_check_branch
          %477 = sbr.rel (%p475) target = $region48
        $region47: #{efficientnet_pretrain_forward.1} parent=11 // pred_region
          _
        $region48: #{efficientnet_pretrain_forward.1} parent=11 // pred_fallthru
          _
        // Predicated region
        $region49: #{efficientnet_pretrain_forward.1} parent=11 // pred_check
          %p478 = pneg %p263
        $region50: #{efficientnet_pretrain_forward.1} parent=11 // pred_check_branch
          %480 = sbr.rel (%p478) target = $region52
        $region51: #{efficientnet_pretrain_forward.1} parent=11 // pred_region
          _
        $region52: #{efficientnet_pretrain_forward.1} parent=11 // pred_fallthru
          _
        // Predicated region
        $region53: #{efficientnet_pretrain_forward.1} parent=11 // pred_check
          %p481 = pneg %p284
        $region54: #{efficientnet_pretrain_forward.1} parent=11 // pred_check_branch
          %483 = sbr.rel (%p481) target = $region56
        $region55: #{efficientnet_pretrain_forward.1} parent=11 // pred_region
          _
        $region56: #{efficientnet_pretrain_forward.1} parent=11 // pred_fallthru
          _
        // Predicated region
        $region57: #{efficientnet_pretrain_forward.1} parent=11 // pred_check
          %p484 = pneg %p305
        $region58: #{efficientnet_pretrain_forward.1} parent=11 // pred_check_branch
          %486 = sbr.rel (%p484) target = $region60
        $region59: #{efficientnet_pretrain_forward.1} parent=11 // pred_region
          _
        $region60: #{efficientnet_pretrain_forward.1} parent=11 // pred_fallthru
          _
        // Predicated region
        $region61: #{efficientnet_pretrain_forward.1} parent=11 // pred_check
          %p487 = pneg %p326
        $region62: #{efficientnet_pretrain_forward.1} parent=11 // pred_check_branch
          %489 = sbr.rel (%p487) target = $region64
        $region63: #{efficientnet_pretrain_forward.1} parent=11 // pred_region
          _
        $region64: #{efficientnet_pretrain_forward.1} parent=11 // pred_fallthru
          _
        // Predicated region
        $region65: #{efficientnet_pretrain_forward.1} parent=11 // pred_check
          %p490 = pneg %p347
        $region66: #{efficientnet_pretrain_forward.1} parent=11 // pred_check_branch
          %492 = sbr.rel (%p490) target = $region68
        $region67: #{efficientnet_pretrain_forward.1} parent=11 // pred_region
          _
        $region68: #{efficientnet_pretrain_forward.1} parent=11 // pred_fallthru
          _
        // Predicated region
        $region69: #{efficientnet_pretrain_forward.1} parent=11 // pred_check
          %p493 = pneg %p368
        $region70: #{efficientnet_pretrain_forward.1} parent=11 // pred_check_branch
          %495 = sbr.rel (%p493) target = $region72
        $region71: #{efficientnet_pretrain_forward.1} parent=11 // pred_region
          _
        $region72: #{efficientnet_pretrain_forward.1} parent=11 // pred_fallthru
          _
        // Predicated region
        $region73: #{efficientnet_pretrain_forward.1} parent=11 // pred_check
          %p496 = pneg %p389
        $region74: #{efficientnet_pretrain_forward.1} parent=11 // pred_check_branch
          %498 = sbr.rel (%p496) target = $region76
        $region75: #{efficientnet_pretrain_forward.1} parent=11 // pred_region
          _
        $region76: #{efficientnet_pretrain_forward.1} parent=11 // pred_fallthru
          _
        // Predicated region
        $region77: #{efficientnet_pretrain_forward.1} parent=11 // pred_check
          %p499 = pneg %p410
        $region78: #{efficientnet_pretrain_forward.1} parent=11 // pred_check_branch
          %501 = sbr.rel (%p499) target = $region80
        $region79: #{efficientnet_pretrain_forward.1} parent=11 // pred_region
          _
        $region80: #{efficientnet_pretrain_forward.1} parent=11 // pred_fallthru
          _
      $region12: #{efficientnet_pretrain_forward.1} parent=5 // pred_fallthru
        _
      %p502 = scmp.lt.s32.totalorder %s27, 2
      // Predicated region
      $region81: #{efficientnet_pretrain_forward.1} parent=5 // pred_check
        %p503 = pneg %p502
      $region82: #{efficientnet_pretrain_forward.1} parent=5 // pred_check_branch
        %505 = sbr.rel (%p503) target = $region84
      $region83: #{efficientnet_pretrain_forward.1} parent=5 // pred_region
        // Predicated region
        $region85: #{efficientnet_pretrain_forward.1} parent=83 // pred_check
          %p506 = pneg %p47
        $region86: #{efficientnet_pretrain_forward.1} parent=83 // pred_check_branch
          %508 = sbr.rel (%p506) target = $region88
        $region87: #{efficientnet_pretrain_forward.1} parent=83 // pred_region
          %p509 = scmp.lt.s32.totalorder %s27, 1
          %s510 = scalar_select %p509, %s27, 1
          %s511 = smul.addr %s510, 8
          %s512 = smul.addr %s511, 8
          %s513 = scalar_lea.vmem %s0, %s512
        $region88: #{efficientnet_pretrain_forward.1} parent=83 // pred_fallthru
          _
      $region84: #{efficientnet_pretrain_forward.1} parent=5 // pred_fallthru
        _
      %p514 = scmp.le.s32.totalorder 1, %s27
      %p515 = scmp.lt.s32.totalorder %s27, 3
      %p516 = pnand %p514, %p515
      %p517 = pneg %p516
      // Predicated region
      $region89: #{efficientnet_pretrain_forward.1} parent=5 // pred_check
        _
      $region90: #{efficientnet_pretrain_forward.1} parent=5 // pred_check_branch
        %519 = sbr.rel (%p516) target = $region92
      $region91: #{efficientnet_pretrain_forward.1} parent=5 // pred_region
        %s520 = ssub.s32 %s27, 1
        %p521 = scmp.lt.s32.totalorder %s32, 1
        %s522 = scalar_select %p521, %s32, 1
        %s523 = smul.addr %s522, 8
        %s524 = smul.addr %s523, 8
        %s525 = scalar_lea.vmem %s0, %s524
        %p526 = pneg %p53
        %p527 = pneg %p50
        %p528 = pneg %p74
        %p529 = pneg %p71
        %p530 = pneg %p95
        %p531 = pneg %p92
        %p532 = pneg %p116
        %p533 = pneg %p113
        %p534 = pneg %p137
        %p535 = pneg %p134
        %p536 = pneg %p158
        %p537 = pneg %p155
        %p538 = pneg %p179
        %p539 = pneg %p176
        %p540 = pneg %p200
        %p541 = pneg %p197
        %p542 = pneg %p221
        %p543 = pneg %p218
        %p544 = pneg %p242
        %p545 = pneg %p239
        %p546 = pneg %p263
        %p547 = pneg %p260
        %p548 = pneg %p284
        %p549 = pneg %p281
        %p550 = pneg %p305
        %p551 = pneg %p302
        %p552 = pneg %p326
        %p553 = pneg %p323
        %p554 = pneg %p347
        %p555 = pneg %p344
        %p556 = pneg %p368
        %p557 = pneg %p365
        %p558 = pneg %p389
        %p559 = pneg %p386
        %p560 = pneg %p410
        %p561 = pneg %p407
        %p562 = pneg %p436
        %p563 = pneg %p433
        %s564 = sand.u32 %s423, 1
        %s565 = scalar_lea.sflag [#allocation4], %s564
        %s566 = sand.u32 %s423, 1
        %s567 = scalar_lea.vmem [#allocation3], %s566
        %p568 = scmp.lt.s32.totalorder %s32, 1
        %s569 = scalar_select %p568, %s32, 1
        %s570 = smul.addr %s569, 8
        %s571 = smul.addr %s570, 8
        %s572 = scalar_lea.vmem %s0, %s571
        %v574 = vld [vmem:[%s572] sm:$0xff]
        %v575 = vld [vmem:[%s572 + $0x8] sm:$0xff]
        %v576 = vld [vmem:[%s572 + $0x10] sm:$0xff]
        %v577 = vld [vmem:[%s572 + $0x18] sm:$0xff]
        %v578 = vld [vmem:[%s572 + $0x20] sm:$0xff]
        %v579 = vld [vmem:[%s572 + $0x28] sm:$0xff]
        %v580 = vld [vmem:[%s572 + $0x30] sm:$0xff]
        %v581 = vld [vmem:[%s572 + $0x38] sm:$0xff]
        %v582 = vpack.c.bf16 %v575, %v574
        %v583 = vpack.c.bf16 %v577, %v576
        %v584 = vpack.c.bf16 %v579, %v578
        %v585 = vpack.c.bf16 %v581, %v580
        %v586 = vld [vmem:[%s1] sm:$0xf]
        %v587 = vld [vmem:[%s1 + $0x4] sm:$0xf]
        %v588 = vld [vmem:[%s1 + $0x8] sm:$0xf]
        %v589 = vld [vmem:[%s1 + $0xc] sm:$0xf]
        %v590 = vld [vmem:[%s1 + $0x10] sm:$0xf]
        %v591 = vld [vmem:[%s1 + $0x14] sm:$0xf]
        %v592 = vld [vmem:[%s1 + $0x18] sm:$0xf]
        %v593 = vld [vmem:[%s1 + $0x1c] sm:$0xf]
        %v594 = vld [vmem:[%s1 + $0x20] sm:$0xf]
        %v595 = vld [vmem:[%s1 + $0x24] sm:$0xf]
        %v596 = vld [vmem:[%s1 + $0x28] sm:$0xf]
        %v597 = vld [vmem:[%s1 + $0x2c] sm:$0xf]
        %v598 = vld [vmem:[%s1 + $0x30] sm:$0xf]
        %v599 = vld [vmem:[%s1 + $0x34] sm:$0xf]
        %v600 = vld [vmem:[%s1 + $0x38] sm:$0xf]
        %v601 = vld [vmem:[%s1 + $0x3c] sm:$0xf]
        %v602 = vld [vmem:[%s2] sm:$0x1]
        %v604 = vlaneseq
        %v605 = vshrl.u32 %v604, 7
        %v606 = vsub.s32 0, %v605
        %v607 = vrot.slane %v602, %v606
        %v625 = vunpack.c.l.b16 %v586
        %v626 = vunpack.c.l.b16 %v587
        %v627 = vunpack.c.l.b16 %v588
        %v628 = vunpack.c.l.b16 %v589
        %v629 = vunpack.c.l.b16 %v590
        %v630 = vunpack.c.l.b16 %v591
        %v631 = vunpack.c.l.b16 %v592
        %v632 = vunpack.c.l.b16 %v593
        %v633 = vunpack.c.l.b16 %v594
        %v634 = vunpack.c.l.b16 %v595
        %v635 = vunpack.c.l.b16 %v596
        %v636 = vunpack.c.l.b16 %v597
        %v637 = vunpack.c.l.b16 %v598
        %v638 = vunpack.c.l.b16 %v599
        %v639 = vunpack.c.l.b16 %v600
        %v640 = vunpack.c.l.b16 %v601
        %v641 = vpack.c.b16 %v626, %v625
        %v642 = vpack.c.b16 %v628, %v627
        %v643 = vpack.c.b16 %v630, %v629
        %v644 = vpack.c.b16 %v632, %v631
        %v645 = vpack.c.b16 %v634, %v633
        %v646 = vpack.c.b16 %v636, %v635
        %v647 = vpack.c.b16 %v638, %v637
        %v648 = vpack.c.b16 %v640, %v639
        %657 = vmatprep.subr.bf16.mxu0 0
        %658 = vmatpush1.bf16.msra.mxu0 %v648
        %659 = vmatprep.subr.bf16.mxu0 0
        %660 = vmatpush1.bf16.msra.mxu0 %v647
        %661 = vmatprep.subr.bf16.mxu0 0
        %662 = vmatpush1.bf16.msra.mxu0 %v646
        %663 = vmatprep.subr.bf16.mxu0 0
        %664 = vmatpush1.bf16.msra.mxu0 %v645
        %665 = vmatprep.subr.bf16.mxu0 0
        %666 = vmatpush1.bf16.msra.mxu0 %v644
        %667 = vmatprep.subr.bf16.mxu0 0
        %668 = vmatpush1.bf16.msra.mxu0 %v643
        %669 = vmatprep.subr.bf16.mxu0 0
        %670 = vmatpush1.bf16.msra.mxu0 %v642
        %671 = vmatprep.subr.bf16.mxu0 0
        %672 = vmatpush1.bf16.msra.mxu0 %v641
        %673 = vmatprep.subr.bf16.mxu0 0
        %674 = vmatpush2.bf16.msra.mxu0 0
        %675 = vmatprep.subr.bf16.mxu0 0
        %676 = vmatpush2.bf16.msra.mxu0 0
        %677 = vmatprep.subr.bf16.mxu0 0
        %678 = vmatpush2.bf16.msra.mxu0 0
        %679 = vmatprep.subr.bf16.mxu0 0
        %680 = vmatpush2.bf16.msra.mxu0 0
        %681 = vmatprep.subr.bf16.mxu0 0
        %682 = vmatpush2.bf16.msra.mxu0 0
        %683 = vmatprep.subr.bf16.mxu0 0
        %684 = vmatpush2.bf16.msra.mxu0 0
        %685 = vmatprep.subr.bf16.mxu0 0
        %686 = vmatpush2.bf16.msra.mxu0 0
        %687 = vmatprep.subr.bf16.mxu0 0
        %688 = vmatpush2.bf16.msra.mxu0 0
        %689 = vmatprep.mubr.bf16.mxu0 0
        %690 = vmatmul.mubr.bf16.gmra.mxu0 %v582
        %v691 = vpop.f32.mrf.mxu0
        %v692 = vadd.f32 %v607, %v691
        %v693 = vpop.f32.mrf.mxu0
        %v694 = vpop.f32.mrf.mxu0
        %v695 = vadd.f32 %v607, %v694
        %v696 = vpop.f32.mrf.mxu0
        %697 = vmatprep.mubr.bf16.mxu0 0
        %698 = vmatmul.mubr.bf16.gmra.mxu0 %v583
        %v699 = vpop.f32.mrf.mxu0
        %v700 = vadd.f32 %v607, %v699
        %v701 = vpop.f32.mrf.mxu0
        %v702 = vpop.f32.mrf.mxu0
        %v703 = vadd.f32 %v607, %v702
        %v704 = vpop.f32.mrf.mxu0
        %705 = vmatprep.mubr.bf16.mxu0 0
        %706 = vmatmul.mubr.bf16.gmra.mxu0 %v584
        %v707 = vpop.f32.mrf.mxu0
        %v708 = vadd.f32 %v607, %v707
        %v709 = vpop.f32.mrf.mxu0
        %v710 = vpop.f32.mrf.mxu0
        %v711 = vadd.f32 %v607, %v710
        %v712 = vpop.f32.mrf.mxu0
        %713 = vmatprep.mubr.bf16.mxu0 0
        %714 = vmatmul.mubr.bf16.gmra.mxu0 %v585
        %v715 = vpop.f32.mrf.mxu0
        %v716 = vadd.f32 %v607, %v715
        %v717 = vpop.f32.mrf.mxu0
        %v718 = vpop.f32.mrf.mxu0
        %v719 = vadd.f32 %v607, %v718
        %v720 = vpop.f32.mrf.mxu0
        %721 = vdwg.mxu0
        %v722 = vsub.f32 0.0, %v692
        %v723 = vsub.f32 0.0, %v695
        %v724 = vsub.f32 0.0, %v700
        %v725 = vsub.f32 0.0, %v703
        %v726 = vsub.f32 0.0, %v708
        %v727 = vsub.f32 0.0, %v711
        %v728 = vsub.f32 0.0, %v716
        %v729 = vsub.f32 0.0, %v719
        %v730 = vmul.f32 %v722, 1.442695
        %v731 = vpow.pop %v730
        %v732 = vmul.f32 %v723, 1.442695
        %v733 = vpow.pop %v732
        %v734 = vmul.f32 %v724, 1.442695
        %v735 = vpow.pop %v734
        %v736 = vmul.f32 %v725, 1.442695
        %v737 = vpow.pop %v736
        %v738 = vmul.f32 %v726, 1.442695
        %v739 = vpow.pop %v738
        %v740 = vmul.f32 %v727, 1.442695
        %v741 = vpow.pop %v740
        %v742 = vmul.f32 %v728, 1.442695
        %v743 = vpow.pop %v742
        %v744 = vmul.f32 %v729, 1.442695
        %v745 = vpow.pop %v744
        %v746 = vadd.f32 %v731, 1.0
        %v747 = vadd.f32 %v733, 1.0
        %v748 = vadd.f32 %v735, 1.0
        %v749 = vadd.f32 %v737, 1.0
        %v750 = vadd.f32 %v739, 1.0
        %v751 = vadd.f32 %v741, 1.0
        %v752 = vadd.f32 %v743, 1.0
        %v753 = vadd.f32 %v745, 1.0
        %v754 = vrcp.pop %v746
        %v755 = vrcp.pop %v747
        %v756 = vrcp.pop %v748
        %v757 = vrcp.pop %v749
        %v758 = vrcp.pop %v750
        %v759 = vrcp.pop %v751
        %v760 = vrcp.pop %v752
        %v761 = vrcp.pop %v753
        %v762 = vmul.f32 %v692, %v754
        %v763 = vmul.f32 %v695, %v755
        %v764 = vmul.f32 %v700, %v756
        %v765 = vmul.f32 %v703, %v757
        %v766 = vmul.f32 %v708, %v758
        %v767 = vmul.f32 %v711, %v759
        %v768 = vmul.f32 %v716, %v760
        %v769 = vmul.f32 %v719, %v761
        %v770 = vpack.c.bf16 %v763, %v762
        %v771 = vpack.c.bf16 %v765, %v764
        %v772 = vpack.c.bf16 %v767, %v766
        %v773 = vpack.c.bf16 %v769, %v768
        %v774 = vld [vmem:[%s3] sm:$0xf]
        %v775 = vld [vmem:[%s3 + $0x4] sm:$0xf]
        %v776 = vld [vmem:[%s3 + $0x8] sm:$0xf]
        %v777 = vld [vmem:[%s3 + $0xc] sm:$0xf]
        %v778 = vld [vmem:[%s4] sm:$0x1]
        %v780 = vlaneseq
        %v781 = vshrl.u32 %v780, 7
        %v782 = vsub.s32 0, %v781
        %v783 = vrot.slane %v778, %v782
        %v789 = vunpack.c.l.b16 %v774
        %v790 = vunpack.c.l.b16 %v775
        %v791 = vunpack.c.l.b16 %v776
        %v792 = vunpack.c.l.b16 %v777
        %v793 = vpack.c.b16 %v790, %v789
        %v794 = vpack.c.b16 %v792, %v791
        %vm797 = vcmask 261120
        %v799 = vsel %vm797, %v770, 0
        %v802 = vsel %vm797, %v771, 0
        %v805 = vsel %vm797, %v772, 0
        %v808 = vsel %vm797, %v773, 0
        %810 = vmatprep.subr.bf16.mxu0 0
        %811 = vmatpush1.bf16.msra.mxu0 0
        %812 = vmatprep.subr.bf16.mxu0 0
        %813 = vmatpush1.bf16.msra.mxu0 0
        %814 = vmatprep.subr.bf16.mxu0 0
        %815 = vmatpush1.bf16.msra.mxu0 0
        %816 = vmatprep.subr.bf16.mxu0 0
        %817 = vmatpush1.bf16.msra.mxu0 0
        %818 = vmatprep.subr.bf16.mxu0 0
        %819 = vmatpush1.bf16.msra.mxu0 0
        %820 = vmatprep.subr.bf16.mxu0 0
        %821 = vmatpush1.bf16.msra.mxu0 0
        %822 = vmatprep.subr.bf16.mxu0 0
        %823 = vmatpush1.bf16.msra.mxu0 %v794
        %824 = vmatprep.subr.bf16.mxu0 0
        %825 = vmatpush1.bf16.msra.mxu0 %v793
        %826 = vmatprep.subr.bf16.mxu0 0
        %827 = vmatpush2.bf16.msra.mxu0 0
        %828 = vmatprep.subr.bf16.mxu0 0
        %829 = vmatpush2.bf16.msra.mxu0 0
        %830 = vmatprep.subr.bf16.mxu0 0
        %831 = vmatpush2.bf16.msra.mxu0 0
        %832 = vmatprep.subr.bf16.mxu0 0
        %833 = vmatpush2.bf16.msra.mxu0 0
        %834 = vmatprep.subr.bf16.mxu0 0
        %835 = vmatpush2.bf16.msra.mxu0 0
        %836 = vmatprep.subr.bf16.mxu0 0
        %837 = vmatpush2.bf16.msra.mxu0 0
        %838 = vmatprep.subr.bf16.mxu0 0
        %839 = vmatpush2.bf16.msra.mxu0 0
        %840 = vmatprep.subr.bf16.mxu0 0
        %841 = vmatpush2.bf16.msra.mxu0 0
        %842 = vmatprep.mubr.bf16.mxu0 0
        %843 = vmatmul.mubr.bf16.gmra.mxu0 %v799
        %v844 = vpop.f32.mrf.mxu0
        %v845 = vadd.f32 %v783, %v844
        %v846 = vpop.f32.mrf.mxu0
        %v847 = vpop.f32.mrf.mxu0
        %v848 = vadd.f32 %v783, %v847
        %v849 = vpop.f32.mrf.mxu0
        %850 = vmatprep.mubr.bf16.mxu0 0
        %851 = vmatmul.mubr.bf16.gmra.mxu0 %v802
        %v852 = vpop.f32.mrf.mxu0
        %v853 = vadd.f32 %v783, %v852
        %v854 = vpop.f32.mrf.mxu0
        %v855 = vpop.f32.mrf.mxu0
        %v856 = vadd.f32 %v783, %v855
        %v857 = vpop.f32.mrf.mxu0
        %858 = vmatprep.mubr.bf16.mxu0 0
        %859 = vmatmul.mubr.bf16.gmra.mxu0 %v805
        %v860 = vpop.f32.mrf.mxu0
        %v861 = vadd.f32 %v783, %v860
        %v862 = vpop.f32.mrf.mxu0
        %v863 = vpop.f32.mrf.mxu0
        %v864 = vadd.f32 %v783, %v863
        %v865 = vpop.f32.mrf.mxu0
        %866 = vmatprep.mubr.bf16.mxu0 0
        %867 = vmatmul.mubr.bf16.gmra.mxu0 %v808
        %v868 = vpop.f32.mrf.mxu0
        %v869 = vadd.f32 %v783, %v868
        %v870 = vpop.f32.mrf.mxu0
        %v871 = vpop.f32.mrf.mxu0
        %v872 = vadd.f32 %v783, %v871
        %v873 = vpop.f32.mrf.mxu0
        %874 = vdwg.mxu0
        %v875 = vsub.f32 0.0, %v845
        %v876 = vsub.f32 0.0, %v848
        %v877 = vsub.f32 0.0, %v853
        %v878 = vsub.f32 0.0, %v856
        %v879 = vsub.f32 0.0, %v861
        %v880 = vsub.f32 0.0, %v864
        %v881 = vsub.f32 0.0, %v869
        %v882 = vsub.f32 0.0, %v872
        %v883 = vmul.f32 %v875, 1.442695
        %v884 = vpow.pop %v883
        %v885 = vmul.f32 %v876, 1.442695
        %v886 = vpow.pop %v885
        %v887 = vmul.f32 %v877, 1.442695
        %v888 = vpow.pop %v887
        %v889 = vmul.f32 %v878, 1.442695
        %v890 = vpow.pop %v889
        %v891 = vmul.f32 %v879, 1.442695
        %v892 = vpow.pop %v891
        %v893 = vmul.f32 %v880, 1.442695
        %v894 = vpow.pop %v893
        %v895 = vmul.f32 %v881, 1.442695
        %v896 = vpow.pop %v895
        %v897 = vmul.f32 %v882, 1.442695
        %v898 = vpow.pop %v897
        %v899 = vadd.f32 %v884, 1.0
        %v900 = vadd.f32 %v886, 1.0
        %v901 = vadd.f32 %v888, 1.0
        %v902 = vadd.f32 %v890, 1.0
        %v903 = vadd.f32 %v892, 1.0
        %v904 = vadd.f32 %v894, 1.0
        %v905 = vadd.f32 %v896, 1.0
        %v906 = vadd.f32 %v898, 1.0
        %v907 = vrcp.pop %v899
        %v908 = vrcp.pop %v900
        %v909 = vrcp.pop %v901
        %v910 = vrcp.pop %v902
        %v911 = vrcp.pop %v903
        %v912 = vrcp.pop %v904
        %v913 = vrcp.pop %v905
        %v914 = vrcp.pop %v906
        %v915 = vmul.f32 %v845, %v907
        %v916 = vmul.f32 %v848, %v908
        %v917 = vmul.f32 %v853, %v909
        %v918 = vmul.f32 %v856, %v910
        %v919 = vmul.f32 %v861, %v911
        %v920 = vmul.f32 %v864, %v912
        %v921 = vmul.f32 %v869, %v913
        %v922 = vmul.f32 %v872, %v914
        %923 = vst [vmem:[#allocation2] sm:$0xff] 0.0
        %924 = vst [vmem:[#allocation2 + $0x8] sm:$0x3] 0.0
        %925 = vst [vmem:[#allocation2 + $0x10] sm:$0xff] 0.0
        %926 = vst [vmem:[#allocation2 + $0x18] sm:$0x3] 0.0
        %927 = vst [vmem:[#allocation2 + $0x20] sm:$0xff] 0.0
        %928 = vst [vmem:[#allocation2 + $0x28] sm:$0x3] 0.0
        %929 = vst [vmem:[#allocation2 + $0x30] sm:$0xff] 0.0
        %930 = vst [vmem:[#allocation2 + $0x38] sm:$0x3] 0.0
        %931 = vst [vmem:[#allocation2 + $0x40] sm:$0xff] 0.0
        %932 = vst [vmem:[#allocation2 + $0x48] sm:$0x3] 0.0
        %933 = vst [vmem:[#allocation2 + $0x50] sm:$0xff] 0.0
        %934 = vst [vmem:[#allocation2 + $0x58] sm:$0x3] 0.0
        %935 = vst [vmem:[#allocation2 + $0x60] sm:$0xff] 0.0
        %936 = vst [vmem:[#allocation2 + $0x68] sm:$0x3] 0.0
        %937 = vst [vmem:[#allocation2 + $0x70] sm:$0xff] 0.0
        %938 = vst [vmem:[#allocation2 + $0x78] sm:$0x3] 0.0
        %939 = vst [vmem:[#allocation2 + $0x80] sm:$0xff] 0.0
        %940 = vst [vmem:[#allocation2 + $0x88] sm:$0x3] 0.0
        %941 = vst [vmem:[#allocation2 + $0x90] sm:$0xff] 0.0
        %942 = vst [vmem:[#allocation2 + $0x98] sm:$0x3] 0.0
        %s943 = scalar_lea.vmem [#allocation2], 16
        %944 = vst [vmem:[%s943 + $0x1] sm:$0xff] %v915
        %945 = vst [vmem:[%s943 + $0x11] sm:$0xff] %v916
        %946 = vst [vmem:[%s943 + $0x21] sm:$0xff] %v917
        %947 = vst [vmem:[%s943 + $0x31] sm:$0xff] %v918
        %948 = vst [vmem:[%s943 + $0x41] sm:$0xff] %v919
        %949 = vst [vmem:[%s943 + $0x51] sm:$0xff] %v920
        %950 = vst [vmem:[%s943 + $0x61] sm:$0xff] %v921
        %951 = vst [vmem:[%s943 + $0x71] sm:$0xff] %v922
        %v952 = vld [vmem:[#allocation2] sm:$0xff]
        %v953 = vld [vmem:[#allocation2 + $0x10] sm:$0xff]
        %v954 = vld [vmem:[#allocation2 + $0x20] sm:$0xff]
        %v955 = vld [vmem:[#allocation2 + $0x30] sm:$0xff]
        %v956 = vld [vmem:[#allocation2 + $0x40] sm:$0xff]
        %v957 = vld [vmem:[#allocation2 + $0x50] sm:$0xff]
        %v958 = vld [vmem:[#allocation2 + $0x60] sm:$0xff]
        %v959 = vld [vmem:[#allocation2 + $0x70] sm:$0xff]
        %v960 = vld [vmem:[#allocation2 + $0x80] sm:$0xff]
        %v961 = vld [vmem:[#allocation2 + $0x90] sm:$0xff]
        %v962 = vld [vmem:[%s5] sm:$0x1]
        %v963 = vlaneseq
        %v964 = vshrl.u32 %v963, 7
        %v965 = vsub.s32 0, %v964
        %v966 = vrot.slane %v962, %v965
        %v967 = vmul.f32 %v952, %v966
        %v968 = vmul.f32 %v953, %v966
        %v969 = vmul.f32 %v954, %v966
        %v970 = vmul.f32 %v955, %v966
        %v971 = vmul.f32 %v956, %v966
        %v972 = vmul.f32 %v957, %v966
        %v973 = vmul.f32 %v958, %v966
        %v974 = vmul.f32 %v959, %v966
        %v975 = vadd.f32 %v967, 0.0
        %v976 = vadd.f32 %v968, 0.0
        %v977 = vadd.f32 %v969, 0.0
        %v978 = vadd.f32 %v970, 0.0
        %v979 = vadd.f32 %v971, 0.0
        %v980 = vadd.f32 %v972, 0.0
        %v981 = vadd.f32 %v973, 0.0
        %v982 = vadd.f32 %v974, 0.0
        %v983 = vld [vmem:[%s5 + $0x3] sm:$0x1]
        %v984 = vlaneseq
        %v985 = vshrl.u32 %v984, 7
        %v986 = vsub.s32 0, %v985
        %v987 = vrot.slane %v983, %v986
        %v988 = vmul.f32 %v953, %v987
        %v989 = vmul.f32 %v954, %v987
        %v990 = vmul.f32 %v955, %v987
        %v991 = vmul.f32 %v956, %v987
        %v992 = vmul.f32 %v957, %v987
        %v993 = vmul.f32 %v958, %v987
        %v994 = vmul.f32 %v959, %v987
        %v995 = vmul.f32 %v960, %v987
        %v996 = vadd.f32 %v975, %v988
        %v997 = vadd.f32 %v976, %v989
        %v998 = vadd.f32 %v977, %v990
        %v999 = vadd.f32 %v978, %v991
        %v1000 = vadd.f32 %v979, %v992
        %v1001 = vadd.f32 %v980, %v993
        %v1002 = vadd.f32 %v981, %v994
        %v1003 = vadd.f32 %v982, %v995
        %v1004 = vld [vmem:[%s5 + $0x6] sm:$0x1]
        %v1005 = vlaneseq
        %v1006 = vshrl.u32 %v1005, 7
        %v1007 = vsub.s32 0, %v1006
        %v1008 = vrot.slane %v1004, %v1007
        %v1009 = vmul.f32 %v954, %v1008
        %v1010 = vmul.f32 %v955, %v1008
        %v1011 = vmul.f32 %v956, %v1008
        %v1012 = vmul.f32 %v957, %v1008
        %v1013 = vmul.f32 %v958, %v1008
        %v1014 = vmul.f32 %v959, %v1008
        %v1015 = vmul.f32 %v960, %v1008
        %v1016 = vmul.f32 %v961, %v1008
        %v1017 = vadd.f32 %v996, %v1009
        %v1018 = vadd.f32 %v997, %v1010
        %v1019 = vadd.f32 %v998, %v1011
        %v1020 = vadd.f32 %v999, %v1012
        %v1021 = vadd.f32 %v1000, %v1013
        %v1022 = vadd.f32 %v1001, %v1014
        %v1023 = vadd.f32 %v1002, %v1015
        %v1024 = vadd.f32 %v1003, %v1016
        %v1025 = vld [vmem:[#allocation2 + $0x1] sm:$0xff]
        %v1026 = vld [vmem:[#allocation2 + $0x11] sm:$0xff]
        %v1027 = vld [vmem:[#allocation2 + $0x21] sm:$0xff]
        %v1028 = vld [vmem:[#allocation2 + $0x31] sm:$0xff]
        %v1029 = vld [vmem:[#allocation2 + $0x41] sm:$0xff]
        %v1030 = vld [vmem:[#allocation2 + $0x51] sm:$0xff]
        %v1031 = vld [vmem:[#allocation2 + $0x61] sm:$0xff]
        %v1032 = vld [vmem:[#allocation2 + $0x71] sm:$0xff]
        %v1033 = vld [vmem:[#allocation2 + $0x81] sm:$0xff]
        %v1034 = vld [vmem:[#allocation2 + $0x91] sm:$0xff]
        %v1035 = vld [vmem:[%s5 + $0x1] sm:$0x1]
        %v1036 = vlaneseq
        %v1037 = vshrl.u32 %v1036, 7
        %v1038 = vsub.s32 0, %v1037
        %v1039 = vrot.slane %v1035, %v1038
        %v1040 = vmul.f32 %v1025, %v1039
        %v1041 = vmul.f32 %v1026, %v1039
        %v1042 = vmul.f32 %v1027, %v1039
        %v1043 = vmul.f32 %v1028, %v1039
        %v1044 = vmul.f32 %v1029, %v1039
        %v1045 = vmul.f32 %v1030, %v1039
        %v1046 = vmul.f32 %v1031, %v1039
        %v1047 = vmul.f32 %v1032, %v1039
        %v1048 = vadd.f32 %v1017, %v1040
        %v1049 = vadd.f32 %v1018, %v1041
        %v1050 = vadd.f32 %v1019, %v1042
        %v1051 = vadd.f32 %v1020, %v1043
        %v1052 = vadd.f32 %v1021, %v1044
        %v1053 = vadd.f32 %v1022, %v1045
        %v1054 = vadd.f32 %v1023, %v1046
        %v1055 = vadd.f32 %v1024, %v1047
        %v1056 = vld [vmem:[%s5 + $0x4] sm:$0x1]
        %v1057 = vlaneseq
        %v1058 = vshrl.u32 %v1057, 7
        %v1059 = vsub.s32 0, %v1058
        %v1060 = vrot.slane %v1056, %v1059
        %v1061 = vmul.f32 %v1026, %v1060
        %v1062 = vmul.f32 %v1027, %v1060
        %v1063 = vmul.f32 %v1028, %v1060
        %v1064 = vmul.f32 %v1029, %v1060
        %v1065 = vmul.f32 %v1030, %v1060
        %v1066 = vmul.f32 %v1031, %v1060
        %v1067 = vmul.f32 %v1032, %v1060
        %v1068 = vmul.f32 %v1033, %v1060
        %v1069 = vadd.f32 %v1048, %v1061
        %v1070 = vadd.f32 %v1049, %v1062
        %v1071 = vadd.f32 %v1050, %v1063
        %v1072 = vadd.f32 %v1051, %v1064
        %v1073 = vadd.f32 %v1052, %v1065
        %v1074 = vadd.f32 %v1053, %v1066
        %v1075 = vadd.f32 %v1054, %v1067
        %v1076 = vadd.f32 %v1055, %v1068
        %v1077 = vld [vmem:[%s5 + $0x7] sm:$0x1]
        %v1078 = vlaneseq
        %v1079 = vshrl.u32 %v1078, 7
        %v1080 = vsub.s32 0, %v1079
        %v1081 = vrot.slane %v1077, %v1080
        %v1082 = vmul.f32 %v1027, %v1081
        %v1083 = vmul.f32 %v1028, %v1081
        %v1084 = vmul.f32 %v1029, %v1081
        %v1085 = vmul.f32 %v1030, %v1081
        %v1086 = vmul.f32 %v1031, %v1081
        %v1087 = vmul.f32 %v1032, %v1081
        %v1088 = vmul.f32 %v1033, %v1081
        %v1089 = vmul.f32 %v1034, %v1081
        %v1090 = vadd.f32 %v1069, %v1082
        %v1091 = vadd.f32 %v1070, %v1083
        %v1092 = vadd.f32 %v1071, %v1084
        %v1093 = vadd.f32 %v1072, %v1085
        %v1094 = vadd.f32 %v1073, %v1086
        %v1095 = vadd.f32 %v1074, %v1087
        %v1096 = vadd.f32 %v1075, %v1088
        %v1097 = vadd.f32 %v1076, %v1089
        %v1098 = vld [vmem:[#allocation2 + $0x2] sm:$0xff]
        %v1099 = vld [vmem:[#allocation2 + $0x12] sm:$0xff]
        %v1100 = vld [vmem:[#allocation2 + $0x22] sm:$0xff]
        %v1101 = vld [vmem:[#allocation2 + $0x32] sm:$0xff]
        %v1102 = vld [vmem:[#allocation2 + $0x42] sm:$0xff]
        %v1103 = vld [vmem:[#allocation2 + $0x52] sm:$0xff]
        %v1104 = vld [vmem:[#allocation2 + $0x62] sm:$0xff]
        %v1105 = vld [vmem:[#allocation2 + $0x72] sm:$0xff]
        %v1106 = vld [vmem:[#allocation2 + $0x82] sm:$0xff]
        %v1107 = vld [vmem:[#allocation2 + $0x92] sm:$0xff]
        %v1108 = vld [vmem:[%s5 + $0x2] sm:$0x1]
        %v1109 = vlaneseq
        %v1110 = vshrl.u32 %v1109, 7
        %v1111 = vsub.s32 0, %v1110
        %v1112 = vrot.slane %v1108, %v1111
        %v1113 = vmul.f32 %v1098, %v1112
        %v1114 = vmul.f32 %v1099, %v1112
        %v1115 = vmul.f32 %v1100, %v1112
        %v1116 = vmul.f32 %v1101, %v1112
        %v1117 = vmul.f32 %v1102, %v1112
        %v1118 = vmul.f32 %v1103, %v1112
        %v1119 = vmul.f32 %v1104, %v1112
        %v1120 = vmul.f32 %v1105, %v1112
        %v1121 = vadd.f32 %v1090, %v1113
        %v1122 = vadd.f32 %v1091, %v1114
        %v1123 = vadd.f32 %v1092, %v1115
        %v1124 = vadd.f32 %v1093, %v1116
        %v1125 = vadd.f32 %v1094, %v1117
        %v1126 = vadd.f32 %v1095, %v1118
        %v1127 = vadd.f32 %v1096, %v1119
        %v1128 = vadd.f32 %v1097, %v1120
        %v1129 = vld [vmem:[%s5 + $0x5] sm:$0x1]
        %v1130 = vlaneseq
        %v1131 = vshrl.u32 %v1130, 7
        %v1132 = vsub.s32 0, %v1131
        %v1133 = vrot.slane %v1129, %v1132
        %v1134 = vmul.f32 %v1099, %v1133
        %v1135 = vmul.f32 %v1100, %v1133
        %v1136 = vmul.f32 %v1101, %v1133
        %v1137 = vmul.f32 %v1102, %v1133
        %v1138 = vmul.f32 %v1103, %v1133
        %v1139 = vmul.f32 %v1104, %v1133
        %v1140 = vmul.f32 %v1105, %v1133
        %v1141 = vmul.f32 %v1106, %v1133
        %v1142 = vadd.f32 %v1121, %v1134
        %v1143 = vadd.f32 %v1122, %v1135
        %v1144 = vadd.f32 %v1123, %v1136
        %v1145 = vadd.f32 %v1124, %v1137
        %v1146 = vadd.f32 %v1125, %v1138
        %v1147 = vadd.f32 %v1126, %v1139
        %v1148 = vadd.f32 %v1127, %v1140
        %v1149 = vadd.f32 %v1128, %v1141
        %v1150 = vld [vmem:[%s5 + $0x8] sm:$0x1]
        %v1151 = vlaneseq
        %v1152 = vshrl.u32 %v1151, 7
        %v1153 = vsub.s32 0, %v1152
        %v1154 = vrot.slane %v1150, %v1153
        %v1155 = vmul.f32 %v1100, %v1154
        %v1156 = vmul.f32 %v1101, %v1154
        %v1157 = vmul.f32 %v1102, %v1154
        %v1158 = vmul.f32 %v1103, %v1154
        %v1159 = vmul.f32 %v1104, %v1154
        %v1160 = vmul.f32 %v1105, %v1154
        %v1161 = vmul.f32 %v1106, %v1154
        %v1162 = vmul.f32 %v1107, %v1154
        %v1163 = vadd.f32 %v1142, %v1155
        %v1164 = vadd.f32 %v1143, %v1156
        %v1165 = vadd.f32 %v1144, %v1157
        %v1166 = vadd.f32 %v1145, %v1158
        %v1167 = vadd.f32 %v1146, %v1159
        %v1168 = vadd.f32 %v1147, %v1160
        %v1169 = vadd.f32 %v1148, %v1161
        %v1170 = vadd.f32 %v1149, %v1162
        %v1171 = vsub.f32 0.0, %v1163
        %v1172 = vsub.f32 0.0, %v1164
        %v1173 = vsub.f32 0.0, %v1165
        %v1174 = vsub.f32 0.0, %v1166
        %v1175 = vsub.f32 0.0, %v1167
        %v1176 = vsub.f32 0.0, %v1168
        %v1177 = vsub.f32 0.0, %v1169
        %v1178 = vsub.f32 0.0, %v1170
        %v1179 = vmul.f32 %v1171, 1.442695
        %v1180 = vpow.pop %v1179
        %v1181 = vmul.f32 %v1172, 1.442695
        %v1182 = vpow.pop %v1181
        %v1183 = vmul.f32 %v1173, 1.442695
        %v1184 = vpow.pop %v1183
        %v1185 = vmul.f32 %v1174, 1.442695
        %v1186 = vpow.pop %v1185
        %v1187 = vmul.f32 %v1175, 1.442695
        %v1188 = vpow.pop %v1187
        %v1189 = vmul.f32 %v1176, 1.442695
        %v1190 = vpow.pop %v1189
        %v1191 = vmul.f32 %v1177, 1.442695
        %v1192 = vpow.pop %v1191
        %v1193 = vmul.f32 %v1178, 1.442695
        %v1194 = vpow.pop %v1193
        %v1195 = vadd.f32 %v1180, 1.0
        %v1196 = vadd.f32 %v1182, 1.0
        %v1197 = vadd.f32 %v1184, 1.0
        %v1198 = vadd.f32 %v1186, 1.0
        %v1199 = vadd.f32 %v1188, 1.0
        %v1200 = vadd.f32 %v1190, 1.0
        %v1201 = vadd.f32 %v1192, 1.0
        %v1202 = vadd.f32 %v1194, 1.0
        %v1203 = vrcp.pop %v1195
        %v1204 = vrcp.pop %v1196
        %v1205 = vrcp.pop %v1197
        %v1206 = vrcp.pop %v1198
        %v1207 = vrcp.pop %v1199
        %v1208 = vrcp.pop %v1200
        %v1209 = vrcp.pop %v1201
        %v1210 = vrcp.pop %v1202
        %v1211 = vmul.f32 %v1163, %v1203
        %v1212 = vmul.f32 %v1164, %v1204
        %v1213 = vmul.f32 %v1165, %v1205
        %v1214 = vmul.f32 %v1166, %v1206
        %v1215 = vmul.f32 %v1167, %v1207
        %v1216 = vmul.f32 %v1168, %v1208
        %v1217 = vmul.f32 %v1169, %v1209
        %v1218 = vmul.f32 %v1170, %v1210
        %v1219 = vadd.f32 %v1211, %v1212
        %v1220 = vadd.f32 %v1219, %v1213
        %v1221 = vadd.f32 %v1220, %v1214
        %v1222 = vadd.f32 %v1221, %v1215
        %v1223 = vadd.f32 %v1222, %v1216
        %v1224 = vadd.f32 %v1223, %v1217
        %v1225 = vadd.f32 %v1224, %v1218
        %v1226 = vrot.slane %v1225, 4
        %v1227 = vadd.f32 %v1225, %v1226
        %v1228 = vrot.slane %v1227, 2
        %v1229 = vadd.f32 %v1227, %v1228
        %v1230 = vrot.slane %v1229, 1
        %v1231 = vadd.f32 %v1229, %v1230
        %v1232 = vrcp.pop 64.0
        %v1233 = vmul.f32 %v1231, %v1232
        %v1234 = vpack.c.bf16 %v1233, %v1233
        %v1235 = vld [vmem:[%s6] sm:$0xf]
        %v1236 = vld [vmem:[%s6 + $0x4] sm:$0xf]
        %v1237 = vld [vmem:[%s6 + $0x8] sm:$0xf]
        %v1238 = vld [vmem:[%s6 + $0xc] sm:$0xf]
        %v1239 = vld [vmem:[%s6 + $0x10] sm:$0xf]
        %v1240 = vld [vmem:[%s6 + $0x14] sm:$0xf]
        %v1241 = vld [vmem:[%s6 + $0x18] sm:$0xf]
        %v1242 = vld [vmem:[%s6 + $0x1c] sm:$0xf]
        %v1243 = vld [vmem:[%s6 + $0x20] sm:$0xf]
        %v1244 = vld [vmem:[%s6 + $0x24] sm:$0xf]
        %v1245 = vld [vmem:[%s6 + $0x28] sm:$0xf]
        %v1246 = vld [vmem:[%s6 + $0x2c] sm:$0xf]
        %v1247 = vld [vmem:[%s6 + $0x30] sm:$0xf]
        %v1248 = vld [vmem:[%s6 + $0x34] sm:$0xf]
        %v1249 = vld [vmem:[%s6 + $0x38] sm:$0xf]
        %v1250 = vld [vmem:[%s6 + $0x3c] sm:$0xf]
        %v1251 = vld [vmem:[%s7] sm:$0x1]
        %v1268 = vunpack.c.l.b16 %v1235
        %v1269 = vunpack.c.l.b16 %v1236
        %v1270 = vunpack.c.l.b16 %v1237
        %v1271 = vunpack.c.l.b16 %v1238
        %v1272 = vunpack.c.l.b16 %v1239
        %v1273 = vunpack.c.l.b16 %v1240
        %v1274 = vunpack.c.l.b16 %v1241
        %v1275 = vunpack.c.l.b16 %v1242
        %v1276 = vunpack.c.l.b16 %v1243
        %v1277 = vunpack.c.l.b16 %v1244
        %v1278 = vunpack.c.l.b16 %v1245
        %v1279 = vunpack.c.l.b16 %v1246
        %v1280 = vunpack.c.l.b16 %v1247
        %v1281 = vunpack.c.l.b16 %v1248
        %v1282 = vunpack.c.l.b16 %v1249
        %v1283 = vunpack.c.l.b16 %v1250
        %v1284 = vpack.c.b16 %v1269, %v1268
        %v1285 = vpack.c.b16 %v1271, %v1270
        %v1286 = vpack.c.b16 %v1273, %v1272
        %v1287 = vpack.c.b16 %v1275, %v1274
        %v1288 = vpack.c.b16 %v1277, %v1276
        %v1289 = vpack.c.b16 %v1279, %v1278
        %v1290 = vpack.c.b16 %v1281, %v1280
        %v1291 = vpack.c.b16 %v1283, %v1282
        %1300 = vmatprep.subr.bf16.mxu0 0
        %1301 = vmatpush1.bf16.msra.mxu0 %v1291
        %1302 = vmatprep.subr.bf16.mxu0 0
        %1303 = vmatpush1.bf16.msra.mxu0 %v1290
        %1304 = vmatprep.subr.bf16.mxu0 0
        %1305 = vmatpush1.bf16.msra.mxu0 %v1289
        %1306 = vmatprep.subr.bf16.mxu0 0
        %1307 = vmatpush1.bf16.msra.mxu0 %v1288
        %1308 = vmatprep.subr.bf16.mxu0 0
        %1309 = vmatpush1.bf16.msra.mxu0 %v1287
        %1310 = vmatprep.subr.bf16.mxu0 0
        %1311 = vmatpush1.bf16.msra.mxu0 %v1286
        %1312 = vmatprep.subr.bf16.mxu0 0
        %1313 = vmatpush1.bf16.msra.mxu0 %v1285
        %1314 = vmatprep.subr.bf16.mxu0 0
        %1315 = vmatpush1.bf16.msra.mxu0 %v1284
        %1316 = vmatprep.subr.bf16.mxu0 0
        %1317 = vmatpush2.bf16.msra.mxu0 0
        %1318 = vmatprep.subr.bf16.mxu0 0
        %1319 = vmatpush2.bf16.msra.mxu0 0
        %1320 = vmatprep.subr.bf16.mxu0 0
        %1321 = vmatpush2.bf16.msra.mxu0 0
        %1322 = vmatprep.subr.bf16.mxu0 0
        %1323 = vmatpush2.bf16.msra.mxu0 0
        %1324 = vmatprep.subr.bf16.mxu0 0
        %1325 = vmatpush2.bf16.msra.mxu0 0
        %1326 = vmatprep.subr.bf16.mxu0 0
        %1327 = vmatpush2.bf16.msra.mxu0 0
        %1328 = vmatprep.subr.bf16.mxu0 0
        %1329 = vmatpush2.bf16.msra.mxu0 0
        %1330 = vmatprep.subr.bf16.mxu0 0
        %1331 = vmatpush2.bf16.msra.mxu0 0
        %1332 = vmatprep.mubr.bf16.mxu0 0
        %1333 = vmatmul.mubr.bf16.gmra.mxu0 %v1234
        %v1334 = vpop.f32.mrf.mxu0
        %v1335 = vadd.f32 %v1251, %v1334
        %v1336 = vpop.f32.mrf.mxu0
        %v1337 = vpop.f32.mrf.mxu0
        %v1338 = vpop.f32.mrf.mxu0
        %1339 = vdwg.mxu0
        %v1340 = vsub.f32 0.0, %v1335
        %v1341 = vmul.f32 %v1340, 1.442695
        %v1342 = vpow.pop %v1341
        %v1343 = vadd.f32 %v1342, 1.0
        %v1344 = vrcp.pop %v1343
        %v1345 = vmul.f32 %v1335, %v1344
        %v1346 = vpack.c.bf16 %v1345, %v1345
        %v1347 = vld [vmem:[%s8] sm:$0xf]
        %v1348 = vld [vmem:[%s9] sm:$0x1]
        %vm1349 = vcmask 64512
        %v1351 = vsel %vm1349, %v1346, 0
        %vm1353 = vcmask 1043456
        %v1355 = vsel %vm1353, %v1347, 0
        %1357 = vmatprep.subr.bf16.mxu0 0
        %1358 = vmatpush1.bf16.msra.mxu0 0
        %1359 = vmatprep.subr.bf16.mxu0 0
        %1360 = vmatpush1.bf16.msra.mxu0 0
        %1361 = vmatprep.subr.bf16.mxu0 0
        %1362 = vmatpush1.bf16.msra.mxu0 0
        %1363 = vmatprep.subr.bf16.mxu0 0
        %1364 = vmatpush1.bf16.msra.mxu0 0
        %1365 = vmatprep.subr.bf16.mxu0 0
        %1366 = vmatpush1.bf16.msra.mxu0 0
        %1367 = vmatprep.subr.bf16.mxu0 0
        %1368 = vmatpush1.bf16.msra.mxu0 0
        %1369 = vmatprep.subr.bf16.mxu0 0
        %1370 = vmatpush1.bf16.msra.mxu0 0
        %1371 = vmatprep.subr.bf16.mxu0 0
        %1372 = vmatpush1.bf16.msra.mxu0 %v1355
        %1373 = vmatprep.subr.bf16.mxu0 0
        %1374 = vmatpush2.bf16.msra.mxu0 0
        %1375 = vmatprep.subr.bf16.mxu0 0
        %1376 = vmatpush2.bf16.msra.mxu0 0
        %1377 = vmatprep.subr.bf16.mxu0 0
        %1378 = vmatpush2.bf16.msra.mxu0 0
        %1379 = vmatprep.subr.bf16.mxu0 0
        %1380 = vmatpush2.bf16.msra.mxu0 0
        %1381 = vmatprep.subr.bf16.mxu0 0
        %1382 = vmatpush2.bf16.msra.mxu0 0
        %1383 = vmatprep.subr.bf16.mxu0 0
        %1384 = vmatpush2.bf16.msra.mxu0 0
        %1385 = vmatprep.subr.bf16.mxu0 0
        %1386 = vmatpush2.bf16.msra.mxu0 0
        %1387 = vmatprep.subr.bf16.mxu0 0
        %1388 = vmatpush2.bf16.msra.mxu0 0
        %1389 = vmatprep.mubr.bf16.mxu0 0
        %1390 = vmatmul.mubr.bf16.gmra.mxu0 %v1351
        %v1391 = vpop.f32.mrf.mxu0
        %v1392 = vadd.f32 %v1348, %v1391
        %v1393 = vpop.f32.mrf.mxu0
        %v1394 = vpop.f32.mrf.mxu0
        %v1395 = vpop.f32.mrf.mxu0
        %1396 = vdwg.mxu0
        %v1397 = vsub.f32 0.0, %v1392
        %v1398 = vmul.f32 %v1397, 1.442695
        %v1399 = vpow.pop %v1398
        %v1400 = vadd.f32 %v1399, 1.0
        %v1401 = vrcp.pop %v1400
        %v1402 = vlaneseq
        %v1403 = vshrl.u32 %v1402, 7
        %v1404 = vsub.s32 0, %v1403
        %v1405 = vrot.slane %v1401, %v1404
        %v1406 = vmul.f32 %v1211, %v1405
        %v1407 = vmul.f32 %v1212, %v1405
        %v1408 = vmul.f32 %v1213, %v1405
        %v1409 = vmul.f32 %v1214, %v1405
        %v1410 = vmul.f32 %v1215, %v1405
        %v1411 = vmul.f32 %v1216, %v1405
        %v1412 = vmul.f32 %v1217, %v1405
        %v1413 = vmul.f32 %v1218, %v1405
        %v1414 = vpack.c.bf16 %v1407, %v1406
        %v1415 = vpack.c.bf16 %v1409, %v1408
        %v1416 = vpack.c.bf16 %v1411, %v1410
        %v1417 = vpack.c.bf16 %v1413, %v1412
        %v1418 = vld [vmem:[%s10] sm:$0xf]
        %v1419 = vld [vmem:[%s10 + $0x4] sm:$0xf]
        %v1420 = vld [vmem:[%s10 + $0x8] sm:$0xf]
        %v1421 = vld [vmem:[%s10 + $0xc] sm:$0xf]
        %v1422 = vld [vmem:[%s10 + $0x10] sm:$0xf]
        %v1423 = vld [vmem:[%s10 + $0x14] sm:$0xf]
        %v1424 = vld [vmem:[%s10 + $0x18] sm:$0xf]
        %v1425 = vld [vmem:[%s10 + $0x1c] sm:$0xf]
        %v1426 = vld [vmem:[%s10 + $0x20] sm:$0xf]
        %v1427 = vld [vmem:[%s10 + $0x24] sm:$0xf]
        %v1428 = vld [vmem:[%s10 + $0x28] sm:$0xf]
        %v1429 = vld [vmem:[%s10 + $0x2c] sm:$0xf]
        %v1430 = vld [vmem:[%s10 + $0x30] sm:$0xf]
        %v1431 = vld [vmem:[%s10 + $0x34] sm:$0xf]
        %v1432 = vld [vmem:[%s10 + $0x38] sm:$0xf]
        %v1433 = vld [vmem:[%s10 + $0x3c] sm:$0xf]
        %v1434 = vld [vmem:[%s11] sm:$0x1]
        %v1436 = vlaneseq
        %v1437 = vshrl.u32 %v1436, 7
        %v1438 = vsub.s32 0, %v1437
        %v1439 = vrot.slane %v1434, %v1438
        %v1457 = vunpack.c.l.b16 %v1418
        %v1458 = vunpack.c.l.b16 %v1419
        %v1459 = vunpack.c.l.b16 %v1420
        %v1460 = vunpack.c.l.b16 %v1421
        %v1461 = vunpack.c.l.b16 %v1422
        %v1462 = vunpack.c.l.b16 %v1423
        %v1463 = vunpack.c.l.b16 %v1424
        %v1464 = vunpack.c.l.b16 %v1425
        %v1465 = vunpack.c.l.b16 %v1426
        %v1466 = vunpack.c.l.b16 %v1427
        %v1467 = vunpack.c.l.b16 %v1428
        %v1468 = vunpack.c.l.b16 %v1429
        %v1469 = vunpack.c.l.b16 %v1430
        %v1470 = vunpack.c.l.b16 %v1431
        %v1471 = vunpack.c.l.b16 %v1432
        %v1472 = vunpack.c.l.b16 %v1433
        %v1473 = vpack.c.b16 %v1458, %v1457
        %v1474 = vpack.c.b16 %v1460, %v1459
        %v1475 = vpack.c.b16 %v1462, %v1461
        %v1476 = vpack.c.b16 %v1464, %v1463
        %v1477 = vpack.c.b16 %v1466, %v1465
        %v1478 = vpack.c.b16 %v1468, %v1467
        %v1479 = vpack.c.b16 %v1470, %v1469
        %v1480 = vpack.c.b16 %v1472, %v1471
        %1489 = vmatprep.subr.bf16.mxu0 0
        %1490 = vmatpush1.bf16.msra.mxu0 %v1480
        %1491 = vmatprep.subr.bf16.mxu0 0
        %1492 = vmatpush1.bf16.msra.mxu0 %v1479
        %1493 = vmatprep.subr.bf16.mxu0 0
        %1494 = vmatpush1.bf16.msra.mxu0 %v1478
        %1495 = vmatprep.subr.bf16.mxu0 0
        %1496 = vmatpush1.bf16.msra.mxu0 %v1477
        %1497 = vmatprep.subr.bf16.mxu0 0
        %1498 = vmatpush1.bf16.msra.mxu0 %v1476
        %1499 = vmatprep.subr.bf16.mxu0 0
        %1500 = vmatpush1.bf16.msra.mxu0 %v1475
        %1501 = vmatprep.subr.bf16.mxu0 0
        %1502 = vmatpush1.bf16.msra.mxu0 %v1474
        %1503 = vmatprep.subr.bf16.mxu0 0
        %1504 = vmatpush1.bf16.msra.mxu0 %v1473
        %1505 = vmatprep.subr.bf16.mxu0 0
        %1506 = vmatpush2.bf16.msra.mxu0 0
        %1507 = vmatprep.subr.bf16.mxu0 0
        %1508 = vmatpush2.bf16.msra.mxu0 0
        %1509 = vmatprep.subr.bf16.mxu0 0
        %1510 = vmatpush2.bf16.msra.mxu0 0
        %1511 = vmatprep.subr.bf16.mxu0 0
        %1512 = vmatpush2.bf16.msra.mxu0 0
        %1513 = vmatprep.subr.bf16.mxu0 0
        %1514 = vmatpush2.bf16.msra.mxu0 0
        %1515 = vmatprep.subr.bf16.mxu0 0
        %1516 = vmatpush2.bf16.msra.mxu0 0
        %1517 = vmatprep.subr.bf16.mxu0 0
        %1518 = vmatpush2.bf16.msra.mxu0 0
        %1519 = vmatprep.subr.bf16.mxu0 0
        %1520 = vmatpush2.bf16.msra.mxu0 0
        %1521 = vmatprep.mubr.bf16.mxu0 0
        %1522 = vmatmul.mubr.bf16.gmra.mxu0 %v1414
        %v1523 = vpop.f32.mrf.mxu0
        %v1524 = vadd.f32 %v1439, %v1523
        %v1525 = vpop.f32.mrf.mxu0
        %v1526 = vpop.f32.mrf.mxu0
        %v1527 = vadd.f32 %v1439, %v1526
        %v1528 = vpop.f32.mrf.mxu0
        %1529 = vmatprep.mubr.bf16.mxu0 0
        %1530 = vmatmul.mubr.bf16.gmra.mxu0 %v1415
        %v1531 = vpop.f32.mrf.mxu0
        %v1532 = vadd.f32 %v1439, %v1531
        %v1533 = vpop.f32.mrf.mxu0
        %v1534 = vpop.f32.mrf.mxu0
        %v1535 = vadd.f32 %v1439, %v1534
        %v1536 = vpop.f32.mrf.mxu0
        %1537 = vmatprep.mubr.bf16.mxu0 0
        %1538 = vmatmul.mubr.bf16.gmra.mxu0 %v1416
        %v1539 = vpop.f32.mrf.mxu0
        %v1540 = vadd.f32 %v1439, %v1539
        %v1541 = vpop.f32.mrf.mxu0
        %v1542 = vpop.f32.mrf.mxu0
        %v1543 = vadd.f32 %v1439, %v1542
        %v1544 = vpop.f32.mrf.mxu0
        %1545 = vmatprep.mubr.bf16.mxu0 0
        %1546 = vmatmul.mubr.bf16.gmra.mxu0 %v1417
        %v1547 = vpop.f32.mrf.mxu0
        %v1548 = vadd.f32 %v1439, %v1547
        %v1549 = vpop.f32.mrf.mxu0
        %v1550 = vpop.f32.mrf.mxu0
        %v1551 = vadd.f32 %v1439, %v1550
        %v1552 = vpop.f32.mrf.mxu0
        %1553 = vdwg.mxu0
        %v1554 = vadd.f32 %v1524, %v762
        %v1555 = vadd.f32 %v1527, %v763
        %v1556 = vadd.f32 %v1532, %v764
        %v1557 = vadd.f32 %v1535, %v765
        %v1558 = vadd.f32 %v1540, %v766
        %v1559 = vadd.f32 %v1543, %v767
        %v1560 = vadd.f32 %v1548, %v768
        %v1561 = vadd.f32 %v1551, %v769
        %v1562 = vpack.c.bf16 %v1555, %v1554
        %v1563 = vpack.c.bf16 %v1557, %v1556
        %v1564 = vpack.c.bf16 %v1559, %v1558
        %v1565 = vpack.c.bf16 %v1561, %v1560
        %v1566 = vld [vmem:[%s12] sm:$0xf]
        %v1567 = vld [vmem:[%s12 + $0x4] sm:$0xf]
        %v1568 = vld [vmem:[%s12 + $0x8] sm:$0xf]
        %v1569 = vld [vmem:[%s12 + $0xc] sm:$0xf]
        %v1570 = vld [vmem:[%s13] sm:$0x1]
        %v1572 = vlaneseq
        %v1573 = vshrl.u32 %v1572, 7
        %v1574 = vsub.s32 0, %v1573
        %v1575 = vrot.slane %v1570, %v1574
        %v1581 = vunpack.c.l.b16 %v1566
        %v1582 = vunpack.c.l.b16 %v1567
        %v1583 = vunpack.c.l.b16 %v1568
        %v1584 = vunpack.c.l.b16 %v1569
        %v1585 = vpack.c.b16 %v1582, %v1581
        %v1586 = vpack.c.b16 %v1584, %v1583
        %v1590 = vsel %vm797, %v1562, 0
        %v1593 = vsel %vm797, %v1563, 0
        %v1596 = vsel %vm797, %v1564, 0
        %v1599 = vsel %vm797, %v1565, 0
        %1601 = vmatprep.subr.bf16.mxu0 0
        %1602 = vmatpush1.bf16.msra.mxu0 0
        %1603 = vmatprep.subr.bf16.mxu0 0
        %1604 = vmatpush1.bf16.msra.mxu0 0
        %1605 = vmatprep.subr.bf16.mxu0 0
        %1606 = vmatpush1.bf16.msra.mxu0 0
        %1607 = vmatprep.subr.bf16.mxu0 0
        %1608 = vmatpush1.bf16.msra.mxu0 0
        %1609 = vmatprep.subr.bf16.mxu0 0
        %1610 = vmatpush1.bf16.msra.mxu0 0
        %1611 = vmatprep.subr.bf16.mxu0 0
        %1612 = vmatpush1.bf16.msra.mxu0 0
        %1613 = vmatprep.subr.bf16.mxu0 0
        %1614 = vmatpush1.bf16.msra.mxu0 %v1586
        %1615 = vmatprep.subr.bf16.mxu0 0
        %1616 = vmatpush1.bf16.msra.mxu0 %v1585
        %1617 = vmatprep.subr.bf16.mxu0 0
        %1618 = vmatpush2.bf16.msra.mxu0 0
        %1619 = vmatprep.subr.bf16.mxu0 0
        %1620 = vmatpush2.bf16.msra.mxu0 0
        %1621 = vmatprep.subr.bf16.mxu0 0
        %1622 = vmatpush2.bf16.msra.mxu0 0
        %1623 = vmatprep.subr.bf16.mxu0 0
        %1624 = vmatpush2.bf16.msra.mxu0 0
        %1625 = vmatprep.subr.bf16.mxu0 0
        %1626 = vmatpush2.bf16.msra.mxu0 0
        %1627 = vmatprep.subr.bf16.mxu0 0
        %1628 = vmatpush2.bf16.msra.mxu0 0
        %1629 = vmatprep.subr.bf16.mxu0 0
        %1630 = vmatpush2.bf16.msra.mxu0 0
        %1631 = vmatprep.subr.bf16.mxu0 0
        %1632 = vmatpush2.bf16.msra.mxu0 0
        %1633 = vmatprep.mubr.bf16.mxu0 0
        %1634 = vmatmul.mubr.bf16.gmra.mxu0 %v1590
        %v1635 = vpop.f32.mrf.mxu0
        %v1636 = vadd.f32 %v1575, %v1635
        %v1637 = vpop.f32.mrf.mxu0
        %v1638 = vpop.f32.mrf.mxu0
        %v1639 = vadd.f32 %v1575, %v1638
        %v1640 = vpop.f32.mrf.mxu0
        %1641 = vmatprep.mubr.bf16.mxu0 0
        %1642 = vmatmul.mubr.bf16.gmra.mxu0 %v1593
        %v1643 = vpop.f32.mrf.mxu0
        %v1644 = vadd.f32 %v1575, %v1643
        %v1645 = vpop.f32.mrf.mxu0
        %v1646 = vpop.f32.mrf.mxu0
        %v1647 = vadd.f32 %v1575, %v1646
        %v1648 = vpop.f32.mrf.mxu0
        %1649 = vmatprep.mubr.bf16.mxu0 0
        %1650 = vmatmul.mubr.bf16.gmra.mxu0 %v1596
        %v1651 = vpop.f32.mrf.mxu0
        %v1652 = vadd.f32 %v1575, %v1651
        %v1653 = vpop.f32.mrf.mxu0
        %v1654 = vpop.f32.mrf.mxu0
        %v1655 = vadd.f32 %v1575, %v1654
        %v1656 = vpop.f32.mrf.mxu0
        %1657 = vmatprep.mubr.bf16.mxu0 0
        %1658 = vmatmul.mubr.bf16.gmra.mxu0 %v1599
        %v1659 = vpop.f32.mrf.mxu0
        %v1660 = vadd.f32 %v1575, %v1659
        %v1661 = vpop.f32.mrf.mxu0
        %v1662 = vpop.f32.mrf.mxu0
        %v1663 = vadd.f32 %v1575, %v1662
        %v1664 = vpop.f32.mrf.mxu0
        %1665 = vdwg.mxu0
        %v1666 = vsub.f32 0.0, %v1636
        %v1667 = vsub.f32 0.0, %v1639
        %v1668 = vsub.f32 0.0, %v1644
        %v1669 = vsub.f32 0.0, %v1647
        %v1670 = vsub.f32 0.0, %v1652
        %v1671 = vsub.f32 0.0, %v1655
        %v1672 = vsub.f32 0.0, %v1660
        %v1673 = vsub.f32 0.0, %v1663
        %v1674 = vmul.f32 %v1666, 1.442695
        %v1675 = vpow.pop %v1674
        %v1676 = vmul.f32 %v1667, 1.442695
        %v1677 = vpow.pop %v1676
        %v1678 = vmul.f32 %v1668, 1.442695
        %v1679 = vpow.pop %v1678
        %v1680 = vmul.f32 %v1669, 1.442695
        %v1681 = vpow.pop %v1680
        %v1682 = vmul.f32 %v1670, 1.442695
        %v1683 = vpow.pop %v1682
        %v1684 = vmul.f32 %v1671, 1.442695
        %v1685 = vpow.pop %v1684
        %v1686 = vmul.f32 %v1672, 1.442695
        %v1687 = vpow.pop %v1686
        %v1688 = vmul.f32 %v1673, 1.442695
        %v1689 = vpow.pop %v1688
        %v1690 = vadd.f32 %v1675, 1.0
        %v1691 = vadd.f32 %v1677, 1.0
        %v1692 = vadd.f32 %v1679, 1.0
        %v1693 = vadd.f32 %v1681, 1.0
        %v1694 = vadd.f32 %v1683, 1.0
        %v1695 = vadd.f32 %v1685, 1.0
        %v1696 = vadd.f32 %v1687, 1.0
        %v1697 = vadd.f32 %v1689, 1.0
        %v1698 = vrcp.pop %v1690
        %v1699 = vrcp.pop %v1691
        %v1700 = vrcp.pop %v1692
        %v1701 = vrcp.pop %v1693
        %v1702 = vrcp.pop %v1694
        %v1703 = vrcp.pop %v1695
        %v1704 = vrcp.pop %v1696
        %v1705 = vrcp.pop %v1697
        %v1706 = vmul.f32 %v1636, %v1698
        %v1707 = vmul.f32 %v1639, %v1699
        %v1708 = vmul.f32 %v1644, %v1700
        %v1709 = vmul.f32 %v1647, %v1701
        %v1710 = vmul.f32 %v1652, %v1702
        %v1711 = vmul.f32 %v1655, %v1703
        %v1712 = vmul.f32 %v1660, %v1704
        %v1713 = vmul.f32 %v1663, %v1705
        %v1714 = vadd.f32 %v1706, %v1707
        %v1715 = vadd.f32 %v1714, %v1708
        %v1716 = vadd.f32 %v1715, %v1709
        %v1717 = vadd.f32 %v1716, %v1710
        %v1718 = vadd.f32 %v1717, %v1711
        %v1719 = vadd.f32 %v1718, %v1712
        %v1720 = vadd.f32 %v1719, %v1713
        %v1721 = vrot.slane %v1720, 4
        %v1722 = vadd.f32 %v1720, %v1721
        %v1723 = vrot.slane %v1722, 2
        %v1724 = vadd.f32 %v1722, %v1723
        %v1725 = vrot.slane %v1724, 1
        %v1726 = vadd.f32 %v1724, %v1725
        %v1727 = vmul.f32 %v1726, %v1232
        %v1728 = vpack.c.bf16 %v1727, %v1727
        %v1729 = vld [vmem:[%s14] sm:$0xff]
        %v1730 = vld [vmem:[%s14 + $0x8] sm:$0xff]
        %v1731 = vld [vmem:[%s14 + $0x10] sm:$0xff]
        %v1732 = vld [vmem:[%s14 + $0x18] sm:$0xff]
        %v1733 = vld [vmem:[%s14 + $0x20] sm:$0xff]
        %v1734 = vld [vmem:[%s14 + $0x28] sm:$0xff]
        %v1735 = vld [vmem:[%s14 + $0x30] sm:$0xff]
        %v1736 = vld [vmem:[%s14 + $0x38] sm:$0xff]
        %v1737 = vld [vmem:[%s14 + $0x40] sm:$0xff]
        %v1738 = vld [vmem:[%s14 + $0x48] sm:$0xff]
        %v1739 = vld [vmem:[%s14 + $0x50] sm:$0xff]
        %v1740 = vld [vmem:[%s14 + $0x58] sm:$0xff]
        %v1741 = vld [vmem:[%s14 + $0x60] sm:$0xff]
        %v1742 = vld [vmem:[%s14 + $0x68] sm:$0xff]
        %v1743 = vld [vmem:[%s14 + $0x70] sm:$0xff]
        %v1744 = vld [vmem:[%s14 + $0x78] sm:$0xff]
        %v1745 = vld [vmem:[%s14 + $0x80] sm:$0xff]
        %v1746 = vld [vmem:[%s14 + $0x88] sm:$0xff]
        %v1747 = vld [vmem:[%s14 + $0x90] sm:$0xff]
        %v1748 = vld [vmem:[%s14 + $0x98] sm:$0xff]
        %v1749 = vld [vmem:[%s14 + $0xa0] sm:$0xff]
        %v1750 = vld [vmem:[%s14 + $0xa8] sm:$0xff]
        %v1751 = vld [vmem:[%s14 + $0xb0] sm:$0xff]
        %v1752 = vld [vmem:[%s14 + $0xb8] sm:$0xff]
        %v1753 = vld [vmem:[%s14 + $0xc0] sm:$0xff]
        %v1754 = vld [vmem:[%s14 + $0xc8] sm:$0xff]
        %v1755 = vld [vmem:[%s14 + $0xd0] sm:$0xff]
        %v1756 = vld [vmem:[%s14 + $0xd8] sm:$0xff]
        %v1757 = vld [vmem:[%s14 + $0xe0] sm:$0xff]
        %v1758 = vld [vmem:[%s14 + $0xe8] sm:$0xff]
        %v1759 = vld [vmem:[%s14 + $0xf0] sm:$0xff]
        %v1760 = vld [vmem:[%s14 + $0xf8] sm:$0xff]
        %v1761 = vld [vmem:[%s14 + $0x100] sm:$0xff]
        %v1762 = vld [vmem:[%s14 + $0x108] sm:$0xff]
        %v1763 = vld [vmem:[%s14 + $0x110] sm:$0xff]
        %v1764 = vld [vmem:[%s14 + $0x118] sm:$0xff]
        %v1765 = vld [vmem:[%s14 + $0x120] sm:$0xff]
        %v1766 = vld [vmem:[%s14 + $0x128] sm:$0xff]
        %v1767 = vld [vmem:[%s14 + $0x130] sm:$0xff]
        %v1768 = vld [vmem:[%s14 + $0x138] sm:$0xff]
        %v1769 = vld [vmem:[%s14 + $0x140] sm:$0xff]
        %v1770 = vld [vmem:[%s14 + $0x148] sm:$0xff]
        %v1771 = vld [vmem:[%s14 + $0x150] sm:$0xff]
        %v1772 = vld [vmem:[%s14 + $0x158] sm:$0xff]
        %v1773 = vld [vmem:[%s14 + $0x160] sm:$0xff]
        %v1774 = vld [vmem:[%s14 + $0x168] sm:$0xff]
        %v1775 = vld [vmem:[%s14 + $0x170] sm:$0xff]
        %v1776 = vld [vmem:[%s14 + $0x178] sm:$0xff]
        %v1777 = vld [vmem:[%s14 + $0x180] sm:$0xff]
        %v1778 = vld [vmem:[%s14 + $0x188] sm:$0xff]
        %v1779 = vld [vmem:[%s14 + $0x190] sm:$0xff]
        %v1780 = vld [vmem:[%s14 + $0x198] sm:$0xff]
        %v1781 = vld [vmem:[%s14 + $0x1a0] sm:$0xff]
        %v1782 = vld [vmem:[%s14 + $0x1a8] sm:$0xff]
        %v1783 = vld [vmem:[%s14 + $0x1b0] sm:$0xff]
        %v1784 = vld [vmem:[%s14 + $0x1b8] sm:$0xff]
        %v1785 = vld [vmem:[%s14 + $0x1c0] sm:$0xff]
        %v1786 = vld [vmem:[%s14 + $0x1c8] sm:$0xff]
        %v1787 = vld [vmem:[%s14 + $0x1d0] sm:$0xff]
        %v1788 = vld [vmem:[%s14 + $0x1d8] sm:$0xff]
        %v1789 = vld [vmem:[%s14 + $0x1e0] sm:$0xff]
        %v1790 = vld [vmem:[%s14 + $0x1e8] sm:$0xff]
        %v1791 = vld [vmem:[%s14 + $0x1f0] sm:$0xff]
        %v1792 = vld [vmem:[%s14 + $0x1f8] sm:$0xff]
        %v1793 = vld [vmem:[%s15] sm:$0xff]
        %v1858 = vunpack.c.l.b16 %v1729
        %v1859 = vunpack.c.h.b16 %v1729
        %v1860 = vunpack.c.l.b16 %v1730
        %v1861 = vunpack.c.h.b16 %v1730
        %v1862 = vunpack.c.l.b16 %v1731
        %v1863 = vunpack.c.h.b16 %v1731
        %v1864 = vunpack.c.l.b16 %v1732
        %v1865 = vunpack.c.h.b16 %v1732
        %v1866 = vunpack.c.l.b16 %v1733
        %v1867 = vunpack.c.h.b16 %v1733
        %v1868 = vunpack.c.l.b16 %v1734
        %v1869 = vunpack.c.h.b16 %v1734
        %v1870 = vunpack.c.l.b16 %v1735
        %v1871 = vunpack.c.h.b16 %v1735
        %v1872 = vunpack.c.l.b16 %v1736
        %v1873 = vunpack.c.h.b16 %v1736
        %v1874 = vunpack.c.l.b16 %v1737
        %v1875 = vunpack.c.h.b16 %v1737
        %v1876 = vunpack.c.l.b16 %v1738
        %v1877 = vunpack.c.h.b16 %v1738
        %v1878 = vunpack.c.l.b16 %v1739
        %v1879 = vunpack.c.h.b16 %v1739
        %v1880 = vunpack.c.l.b16 %v1740
        %v1881 = vunpack.c.h.b16 %v1740
        %v1882 = vunpack.c.l.b16 %v1741
        %v1883 = vunpack.c.h.b16 %v1741
        %v1884 = vunpack.c.l.b16 %v1742
        %v1885 = vunpack.c.h.b16 %v1742
        %v1886 = vunpack.c.l.b16 %v1743
        %v1887 = vunpack.c.h.b16 %v1743
        %v1888 = vunpack.c.l.b16 %v1744
        %v1889 = vunpack.c.h.b16 %v1744
        %v1890 = vunpack.c.l.b16 %v1745
        %v1891 = vunpack.c.h.b16 %v1745
        %v1892 = vunpack.c.l.b16 %v1746
        %v1893 = vunpack.c.h.b16 %v1746
        %v1894 = vunpack.c.l.b16 %v1747
        %v1895 = vunpack.c.h.b16 %v1747
        %v1896 = vunpack.c.l.b16 %v1748
        %v1897 = vunpack.c.h.b16 %v1748
        %v1898 = vunpack.c.l.b16 %v1749
        %v1899 = vunpack.c.h.b16 %v1749
        %v1900 = vunpack.c.l.b16 %v1750
        %v1901 = vunpack.c.h.b16 %v1750
        %v1902 = vunpack.c.l.b16 %v1751
        %v1903 = vunpack.c.h.b16 %v1751
        %v1904 = vunpack.c.l.b16 %v1752
        %v1905 = vunpack.c.h.b16 %v1752
        %v1906 = vunpack.c.l.b16 %v1753
        %v1907 = vunpack.c.h.b16 %v1753
        %v1908 = vunpack.c.l.b16 %v1754
        %v1909 = vunpack.c.h.b16 %v1754
        %v1910 = vunpack.c.l.b16 %v1755
        %v1911 = vunpack.c.h.b16 %v1755
        %v1912 = vunpack.c.l.b16 %v1756
        %v1913 = vunpack.c.h.b16 %v1756
        %v1914 = vunpack.c.l.b16 %v1757
        %v1915 = vunpack.c.h.b16 %v1757
        %v1916 = vunpack.c.l.b16 %v1758
        %v1917 = vunpack.c.h.b16 %v1758
        %v1918 = vunpack.c.l.b16 %v1759
        %v1919 = vunpack.c.h.b16 %v1759
        %v1920 = vunpack.c.l.b16 %v1760
        %v1921 = vunpack.c.h.b16 %v1760
        %v1922 = vunpack.c.l.b16 %v1761
        %v1923 = vunpack.c.h.b16 %v1761
        %v1924 = vunpack.c.l.b16 %v1762
        %v1925 = vunpack.c.h.b16 %v1762
        %v1926 = vunpack.c.l.b16 %v1763
        %v1927 = vunpack.c.h.b16 %v1763
        %v1928 = vunpack.c.l.b16 %v1764
        %v1929 = vunpack.c.h.b16 %v1764
        %v1930 = vunpack.c.l.b16 %v1765
        %v1931 = vunpack.c.h.b16 %v1765
        %v1932 = vunpack.c.l.b16 %v1766
        %v1933 = vunpack.c.h.b16 %v1766
        %v1934 = vunpack.c.l.b16 %v1767
        %v1935 = vunpack.c.h.b16 %v1767
        %v1936 = vunpack.c.l.b16 %v1768
        %v1937 = vunpack.c.h.b16 %v1768
        %v1938 = vunpack.c.l.b16 %v1769
        %v1939 = vunpack.c.h.b16 %v1769
        %v1940 = vunpack.c.l.b16 %v1770
        %v1941 = vunpack.c.h.b16 %v1770
        %v1942 = vunpack.c.l.b16 %v1771
        %v1943 = vunpack.c.h.b16 %v1771
        %v1944 = vunpack.c.l.b16 %v1772
        %v1945 = vunpack.c.h.b16 %v1772
        %v1946 = vunpack.c.l.b16 %v1773
        %v1947 = vunpack.c.h.b16 %v1773
        %v1948 = vunpack.c.l.b16 %v1774
        %v1949 = vunpack.c.h.b16 %v1774
        %v1950 = vunpack.c.l.b16 %v1775
        %v1951 = vunpack.c.h.b16 %v1775
        %v1952 = vunpack.c.l.b16 %v1776
        %v1953 = vunpack.c.h.b16 %v1776
        %v1954 = vunpack.c.l.b16 %v1777
        %v1955 = vunpack.c.h.b16 %v1777
        %v1956 = vunpack.c.l.b16 %v1778
        %v1957 = vunpack.c.h.b16 %v1778
        %v1958 = vunpack.c.l.b16 %v1779
        %v1959 = vunpack.c.h.b16 %v1779
        %v1960 = vunpack.c.l.b16 %v1780
        %v1961 = vunpack.c.h.b16 %v1780
        %v1962 = vunpack.c.l.b16 %v1781
        %v1963 = vunpack.c.h.b16 %v1781
        %v1964 = vunpack.c.l.b16 %v1782
        %v1965 = vunpack.c.h.b16 %v1782
        %v1966 = vunpack.c.l.b16 %v1783
        %v1967 = vunpack.c.h.b16 %v1783
        %v1968 = vunpack.c.l.b16 %v1784
        %v1969 = vunpack.c.h.b16 %v1784
        %v1970 = vunpack.c.l.b16 %v1785
        %v1971 = vunpack.c.h.b16 %v1785
        %v1972 = vunpack.c.l.b16 %v1786
        %v1973 = vunpack.c.h.b16 %v1786
        %v1974 = vunpack.c.l.b16 %v1787
        %v1975 = vunpack.c.h.b16 %v1787
        %v1976 = vunpack.c.l.b16 %v1788
        %v1977 = vunpack.c.h.b16 %v1788
        %v1978 = vunpack.c.l.b16 %v1789
        %v1979 = vunpack.c.h.b16 %v1789
        %v1980 = vunpack.c.l.b16 %v1790
        %v1981 = vunpack.c.h.b16 %v1790
        %v1982 = vunpack.c.l.b16 %v1791
        %v1983 = vunpack.c.h.b16 %v1791
        %v1984 = vunpack.c.l.b16 %v1792
        %v1985 = vunpack.c.h.b16 %v1792
        %v1986 = vpack.c.b16 %v1866, %v1858
        %v1987 = vpack.c.b16 %v1867, %v1859
        %v1988 = vpack.c.b16 %v1868, %v1860
        %v1989 = vpack.c.b16 %v1869, %v1861
        %v1990 = vpack.c.b16 %v1870, %v1862
        %v1991 = vpack.c.b16 %v1871, %v1863
        %v1992 = vpack.c.b16 %v1872, %v1864
        %v1993 = vpack.c.b16 %v1873, %v1865
        %v1994 = vpack.c.b16 %v1882, %v1874
        %v1995 = vpack.c.b16 %v1883, %v1875
        %v1996 = vpack.c.b16 %v1884, %v1876
        %v1997 = vpack.c.b16 %v1885, %v1877
        %v1998 = vpack.c.b16 %v1886, %v1878
        %v1999 = vpack.c.b16 %v1887, %v1879
        %v2000 = vpack.c.b16 %v1888, %v1880
        %v2001 = vpack.c.b16 %v1889, %v1881
        %v2002 = vpack.c.b16 %v1898, %v1890
        %v2003 = vpack.c.b16 %v1899, %v1891
        %v2004 = vpack.c.b16 %v1900, %v1892
        %v2005 = vpack.c.b16 %v1901, %v1893
        %v2006 = vpack.c.b16 %v1902, %v1894
        %v2007 = vpack.c.b16 %v1903, %v1895
        %v2008 = vpack.c.b16 %v1904, %v1896
        %v2009 = vpack.c.b16 %v1905, %v1897
        %v2010 = vpack.c.b16 %v1914, %v1906
        %v2011 = vpack.c.b16 %v1915, %v1907
        %v2012 = vpack.c.b16 %v1916, %v1908
        %v2013 = vpack.c.b16 %v1917, %v1909
        %v2014 = vpack.c.b16 %v1918, %v1910
        %v2015 = vpack.c.b16 %v1919, %v1911
        %v2016 = vpack.c.b16 %v1920, %v1912
        %v2017 = vpack.c.b16 %v1921, %v1913
        %v2018 = vpack.c.b16 %v1930, %v1922
        %v2019 = vpack.c.b16 %v1931, %v1923
        %v2020 = vpack.c.b16 %v1932, %v1924
        %v2021 = vpack.c.b16 %v1933, %v1925
        %v2022 = vpack.c.b16 %v1934, %v1926
        %v2023 = vpack.c.b16 %v1935, %v1927
        %v2024 = vpack.c.b16 %v1936, %v1928
        %v2025 = vpack.c.b16 %v1937, %v1929
        %v2026 = vpack.c.b16 %v1946, %v1938
        %v2027 = vpack.c.b16 %v1947, %v1939
        %v2028 = vpack.c.b16 %v1948, %v1940
        %v2029 = vpack.c.b16 %v1949, %v1941
        %v2030 = vpack.c.b16 %v1950, %v1942
        %v2031 = vpack.c.b16 %v1951, %v1943
        %v2032 = vpack.c.b16 %v1952, %v1944
        %v2033 = vpack.c.b16 %v1953, %v1945
        %v2034 = vpack.c.b16 %v1962, %v1954
        %v2035 = vpack.c.b16 %v1963, %v1955
        %v2036 = vpack.c.b16 %v1964, %v1956
        %v2037 = vpack.c.b16 %v1965, %v1957
        %v2038 = vpack.c.b16 %v1966, %v1958
        %v2039 = vpack.c.b16 %v1967, %v1959
        %v2040 = vpack.c.b16 %v1968, %v1960
        %v2041 = vpack.c.b16 %v1969, %v1961
        %v2042 = vpack.c.b16 %v1978, %v1970
        %v2043 = vpack.c.b16 %v1979, %v1971
        %v2044 = vpack.c.b16 %v1980, %v1972
        %v2045 = vpack.c.b16 %v1981, %v1973
        %v2046 = vpack.c.b16 %v1982, %v1974
        %v2047 = vpack.c.b16 %v1983, %v1975
        %v2048 = vpack.c.b16 %v1984, %v1976
        %v2049 = vpack.c.b16 %v1985, %v1977
        %v2115 = vlaneseq
        %v2116 = vshrl.u32 %v2115, 7
        %v2117 = vsub.s32 0, %v2116
        %v2118 = vrot.slane %v1793, %v2117
        %v2119 = vlaneseq
        %v2120 = vshrl.u32 %v2119, 7
        %v2121 = vsub.s32 1, %v2120
        %v2122 = vrot.slane %v1793, %v2121
        %v2123 = vlaneseq
        %v2124 = vshrl.u32 %v2123, 7
        %v2125 = vsub.s32 2, %v2124
        %v2126 = vrot.slane %v1793, %v2125
        %v2127 = vlaneseq
        %v2128 = vshrl.u32 %v2127, 7
        %v2129 = vsub.s32 3, %v2128
        %v2130 = vrot.slane %v1793, %v2129
        %v2131 = vlaneseq
        %v2132 = vshrl.u32 %v2131, 7
        %v2133 = vsub.s32 4, %v2132
        %v2134 = vrot.slane %v1793, %v2133
        %v2135 = vlaneseq
        %v2136 = vshrl.u32 %v2135, 7
        %v2137 = vsub.s32 5, %v2136
        %v2138 = vrot.slane %v1793, %v2137
        %v2139 = vlaneseq
        %v2140 = vshrl.u32 %v2139, 7
        %v2141 = vsub.s32 6, %v2140
        %v2142 = vrot.slane %v1793, %v2141
        %v2143 = vlaneseq
        %v2144 = vshrl.u32 %v2143, 7
        %v2145 = vsub.s32 7, %v2144
        %v2146 = vrot.slane %v1793, %v2145
        %2155 = vmatprep.subr.bf16.mxu0 %v2043
        %2156 = vmatpush1.bf16.msra.mxu0 %v2042
        %2157 = vmatprep.subr.bf16.mxu0 %v2035
        %2158 = vmatpush1.bf16.msra.mxu0 %v2034
        %2159 = vmatprep.subr.bf16.mxu0 %v2027
        %2160 = vmatpush1.bf16.msra.mxu0 %v2026
        %2161 = vmatprep.subr.bf16.mxu0 %v2019
        %2162 = vmatpush1.bf16.msra.mxu0 %v2018
        %2163 = vmatprep.subr.bf16.mxu0 %v2011
        %2164 = vmatpush1.bf16.msra.mxu0 %v2010
        %2165 = vmatprep.subr.bf16.mxu0 %v2003
        %2166 = vmatpush1.bf16.msra.mxu0 %v2002
        %2167 = vmatprep.subr.bf16.mxu0 %v1995
        %2168 = vmatpush1.bf16.msra.mxu0 %v1994
        %2169 = vmatprep.subr.bf16.mxu0 %v1987
        %2170 = vmatpush1.bf16.msra.mxu0 %v1986
        %2171 = vmatprep.subr.bf16.mxu0 0
        %2172 = vmatpush2.bf16.msra.mxu0 0
        %2173 = vmatprep.subr.bf16.mxu0 0
        %2174 = vmatpush2.bf16.msra.mxu0 0
        %2175 = vmatprep.subr.bf16.mxu0 0
        %2176 = vmatpush2.bf16.msra.mxu0 0
        %2177 = vmatprep.subr.bf16.mxu0 0
        %2178 = vmatpush2.bf16.msra.mxu0 0
        %2179 = vmatprep.subr.bf16.mxu0 0
        %2180 = vmatpush2.bf16.msra.mxu0 0
        %2181 = vmatprep.subr.bf16.mxu0 0
        %2182 = vmatpush2.bf16.msra.mxu0 0
        %2183 = vmatprep.subr.bf16.mxu0 0
        %2184 = vmatpush2.bf16.msra.mxu0 0
        %2185 = vmatprep.subr.bf16.mxu0 0
        %2186 = vmatpush2.bf16.msra.mxu0 0
        %2187 = vmatprep.mubr.bf16.mxu0 0
        %2188 = vmatmul.mubr.bf16.gmra.mxu0 %v1728
        %v2189 = vpop.f32.mrf.mxu0
        %v2190 = vadd.f32 %v2118, %v2189
        %v2191 = vpop.f32.mrf.mxu0
        %v2192 = vadd.f32 %v2122, %v2191
        %v2193 = vpop.f32.mrf.mxu0
        %v2194 = vpop.f32.mrf.mxu0
        %2195 = vdwg.mxu0
        %2196 = vmatprep.subr.bf16.mxu0 %v2045
        %2197 = vmatpush1.bf16.msra.mxu0 %v2044
        %2198 = vmatprep.subr.bf16.mxu0 %v2037
        %2199 = vmatpush1.bf16.msra.mxu0 %v2036
        %2200 = vmatprep.subr.bf16.mxu0 %v2029
        %2201 = vmatpush1.bf16.msra.mxu0 %v2028
        %2202 = vmatprep.subr.bf16.mxu0 %v2021
        %2203 = vmatpush1.bf16.msra.mxu0 %v2020
        %2204 = vmatprep.subr.bf16.mxu0 %v2013
        %2205 = vmatpush1.bf16.msra.mxu0 %v2012
        %2206 = vmatprep.subr.bf16.mxu0 %v2005
        %2207 = vmatpush1.bf16.msra.mxu0 %v2004
        %2208 = vmatprep.subr.bf16.mxu0 %v1997
        %2209 = vmatpush1.bf16.msra.mxu0 %v1996
        %2210 = vmatprep.subr.bf16.mxu0 %v1989
        %2211 = vmatpush1.bf16.msra.mxu0 %v1988
        %2212 = vmatprep.subr.bf16.mxu0 0
        %2213 = vmatpush2.bf16.msra.mxu0 0
        %2214 = vmatprep.subr.bf16.mxu0 0
        %2215 = vmatpush2.bf16.msra.mxu0 0
        %2216 = vmatprep.subr.bf16.mxu0 0
        %2217 = vmatpush2.bf16.msra.mxu0 0
        %2218 = vmatprep.subr.bf16.mxu0 0
        %2219 = vmatpush2.bf16.msra.mxu0 0
        %2220 = vmatprep.subr.bf16.mxu0 0
        %2221 = vmatpush2.bf16.msra.mxu0 0
        %2222 = vmatprep.subr.bf16.mxu0 0
        %2223 = vmatpush2.bf16.msra.mxu0 0
        %2224 = vmatprep.subr.bf16.mxu0 0
        %2225 = vmatpush2.bf16.msra.mxu0 0
        %2226 = vmatprep.subr.bf16.mxu0 0
        %2227 = vmatpush2.bf16.msra.mxu0 0
        %2228 = vmatprep.mubr.bf16.mxu0 0
        %2229 = vmatmul.mubr.bf16.gmra.mxu0 %v1728
        %v2230 = vpop.f32.mrf.mxu0
        %v2231 = vadd.f32 %v2126, %v2230
        %v2232 = vpop.f32.mrf.mxu0
        %v2233 = vadd.f32 %v2130, %v2232
        %v2234 = vpop.f32.mrf.mxu0
        %v2235 = vpop.f32.mrf.mxu0
        %2236 = vdwg.mxu0
        %2237 = vmatprep.subr.bf16.mxu0 %v2047
        %2238 = vmatpush1.bf16.msra.mxu0 %v2046
        %2239 = vmatprep.subr.bf16.mxu0 %v2039
        %2240 = vmatpush1.bf16.msra.mxu0 %v2038
        %2241 = vmatprep.subr.bf16.mxu0 %v2031
        %2242 = vmatpush1.bf16.msra.mxu0 %v2030
        %2243 = vmatprep.subr.bf16.mxu0 %v2023
        %2244 = vmatpush1.bf16.msra.mxu0 %v2022
        %2245 = vmatprep.subr.bf16.mxu0 %v2015
        %2246 = vmatpush1.bf16.msra.mxu0 %v2014
        %2247 = vmatprep.subr.bf16.mxu0 %v2007
        %2248 = vmatpush1.bf16.msra.mxu0 %v2006
        %2249 = vmatprep.subr.bf16.mxu0 %v1999
        %2250 = vmatpush1.bf16.msra.mxu0 %v1998
        %2251 = vmatprep.subr.bf16.mxu0 %v1991
        %2252 = vmatpush1.bf16.msra.mxu0 %v1990
        %2253 = vmatprep.subr.bf16.mxu0 0
        %2254 = vmatpush2.bf16.msra.mxu0 0
        %2255 = vmatprep.subr.bf16.mxu0 0
        %2256 = vmatpush2.bf16.msra.mxu0 0
        %2257 = vmatprep.subr.bf16.mxu0 0
        %2258 = vmatpush2.bf16.msra.mxu0 0
        %2259 = vmatprep.subr.bf16.mxu0 0
        %2260 = vmatpush2.bf16.msra.mxu0 0
        %2261 = vmatprep.subr.bf16.mxu0 0
        %2262 = vmatpush2.bf16.msra.mxu0 0
        %2263 = vmatprep.subr.bf16.mxu0 0
        %2264 = vmatpush2.bf16.msra.mxu0 0
        %2265 = vmatprep.subr.bf16.mxu0 0
        %2266 = vmatpush2.bf16.msra.mxu0 0
        %2267 = vmatprep.subr.bf16.mxu0 0
        %2268 = vmatpush2.bf16.msra.mxu0 0
        %2269 = vmatprep.mubr.bf16.mxu0 0
        %2270 = vmatmul.mubr.bf16.gmra.mxu0 %v1728
        %v2271 = vpop.f32.mrf.mxu0
        %v2272 = vadd.f32 %v2134, %v2271
        %v2273 = vpop.f32.mrf.mxu0
        %v2274 = vadd.f32 %v2138, %v2273
        %v2275 = vpop.f32.mrf.mxu0
        %v2276 = vpop.f32.mrf.mxu0
        %2277 = vdwg.mxu0
        %2278 = vmatprep.subr.bf16.mxu0 %v2049
        %2279 = vmatpush1.bf16.msra.mxu0 %v2048
        %2280 = vmatprep.subr.bf16.mxu0 %v2041
        %2281 = vmatpush1.bf16.msra.mxu0 %v2040
        %2282 = vmatprep.subr.bf16.mxu0 %v2033
        %2283 = vmatpush1.bf16.msra.mxu0 %v2032
        %2284 = vmatprep.subr.bf16.mxu0 %v2025
        %2285 = vmatpush1.bf16.msra.mxu0 %v2024
        %2286 = vmatprep.subr.bf16.mxu0 %v2017
        %2287 = vmatpush1.bf16.msra.mxu0 %v2016
        %2288 = vmatprep.subr.bf16.mxu0 %v2009
        %2289 = vmatpush1.bf16.msra.mxu0 %v2008
        %2290 = vmatprep.subr.bf16.mxu0 %v2001
        %2291 = vmatpush1.bf16.msra.mxu0 %v2000
        %2292 = vmatprep.subr.bf16.mxu0 %v1993
        %2293 = vmatpush1.bf16.msra.mxu0 %v1992
        %2294 = vmatprep.subr.bf16.mxu0 0
        %2295 = vmatpush2.bf16.msra.mxu0 0
        %2296 = vmatprep.subr.bf16.mxu0 0
        %2297 = vmatpush2.bf16.msra.mxu0 0
        %2298 = vmatprep.subr.bf16.mxu0 0
        %2299 = vmatpush2.bf16.msra.mxu0 0
        %2300 = vmatprep.subr.bf16.mxu0 0
        %2301 = vmatpush2.bf16.msra.mxu0 0
        %2302 = vmatprep.subr.bf16.mxu0 0
        %2303 = vmatpush2.bf16.msra.mxu0 0
        %2304 = vmatprep.subr.bf16.mxu0 0
        %2305 = vmatpush2.bf16.msra.mxu0 0
        %2306 = vmatprep.subr.bf16.mxu0 0
        %2307 = vmatpush2.bf16.msra.mxu0 0
        %2308 = vmatprep.subr.bf16.mxu0 0
        %2309 = vmatpush2.bf16.msra.mxu0 0
        %2310 = vmatprep.mubr.bf16.mxu0 0
        %2311 = vmatmul.mubr.bf16.gmra.mxu0 %v1728
        %v2312 = vpop.f32.mrf.mxu0
        %v2313 = vadd.f32 %v2142, %v2312
        %v2314 = vpop.f32.mrf.mxu0
        %v2315 = vadd.f32 %v2146, %v2314
        %v2316 = vpop.f32.mrf.mxu0
        %v2317 = vpop.f32.mrf.mxu0
        %2318 = vdwg.mxu0
        %v2319 = vld [vmem:[%s16] sm:$0xff]
        %v2320 = vld [vmem:[%s16 + $0x8] sm:$0xff]
        %v2321 = vld [vmem:[%s16 + $0x10] sm:$0xff]
        %v2322 = vld [vmem:[%s16 + $0x18] sm:$0xff]
        %v2323 = vld [vmem:[%s16 + $0x20] sm:$0xff]
        %v2324 = vld [vmem:[%s16 + $0x28] sm:$0xff]
        %v2325 = vld [vmem:[%s16 + $0x30] sm:$0xff]
        %v2326 = vld [vmem:[%s16 + $0x38] sm:$0xff]
        %v2327 = vld [vmem:[%s16 + $0x40] sm:$0xff]
        %v2328 = vld [vmem:[%s16 + $0x48] sm:$0xff]
        %v2329 = vld [vmem:[%s16 + $0x50] sm:$0xff]
        %v2330 = vld [vmem:[%s16 + $0x58] sm:$0xff]
        %v2331 = vld [vmem:[%s16 + $0x60] sm:$0xff]
        %v2332 = vld [vmem:[%s16 + $0x68] sm:$0xff]
        %v2333 = vld [vmem:[%s16 + $0x70] sm:$0xff]
        %v2334 = vld [vmem:[%s16 + $0x78] sm:$0xff]
        %v2335 = vld [vmem:[%s16 + $0x80] sm:$0xff]
        %v2336 = vld [vmem:[%s16 + $0x88] sm:$0xff]
        %v2337 = vld [vmem:[%s16 + $0x90] sm:$0xff]
        %v2338 = vld [vmem:[%s16 + $0x98] sm:$0xff]
        %v2339 = vld [vmem:[%s16 + $0xa0] sm:$0xff]
        %v2340 = vld [vmem:[%s16 + $0xa8] sm:$0xff]
        %v2341 = vld [vmem:[%s16 + $0xb0] sm:$0xff]
        %v2342 = vld [vmem:[%s16 + $0xb8] sm:$0xff]
        %v2343 = vld [vmem:[%s16 + $0xc0] sm:$0xff]
        %v2344 = vld [vmem:[%s16 + $0xc8] sm:$0xff]
        %v2345 = vld [vmem:[%s16 + $0xd0] sm:$0xff]
        %v2346 = vld [vmem:[%s16 + $0xd8] sm:$0xff]
        %v2347 = vld [vmem:[%s16 + $0xe0] sm:$0xff]
        %v2348 = vld [vmem:[%s16 + $0xe8] sm:$0xff]
        %v2349 = vld [vmem:[%s16 + $0xf0] sm:$0xff]
        %v2350 = vld [vmem:[%s16 + $0xf8] sm:$0xff]
        %v2351 = vld [vmem:[%s16 + $0x100] sm:$0xff]
        %v2352 = vld [vmem:[%s16 + $0x108] sm:$0xff]
        %v2353 = vld [vmem:[%s16 + $0x110] sm:$0xff]
        %v2354 = vld [vmem:[%s16 + $0x118] sm:$0xff]
        %v2355 = vld [vmem:[%s16 + $0x120] sm:$0xff]
        %v2356 = vld [vmem:[%s16 + $0x128] sm:$0xff]
        %v2357 = vld [vmem:[%s16 + $0x130] sm:$0xff]
        %v2358 = vld [vmem:[%s16 + $0x138] sm:$0xff]
        %v2359 = vld [vmem:[%s16 + $0x140] sm:$0xff]
        %v2360 = vld [vmem:[%s16 + $0x148] sm:$0xff]
        %v2361 = vld [vmem:[%s16 + $0x150] sm:$0xff]
        %v2362 = vld [vmem:[%s16 + $0x158] sm:$0xff]
        %v2363 = vld [vmem:[%s16 + $0x160] sm:$0xff]
        %v2364 = vld [vmem:[%s16 + $0x168] sm:$0xff]
        %v2365 = vld [vmem:[%s16 + $0x170] sm:$0xff]
        %v2366 = vld [vmem:[%s16 + $0x178] sm:$0xff]
        %v2367 = vld [vmem:[%s16 + $0x180] sm:$0xff]
        %v2368 = vld [vmem:[%s16 + $0x188] sm:$0xff]
        %v2369 = vld [vmem:[%s16 + $0x190] sm:$0xff]
        %v2370 = vld [vmem:[%s16 + $0x198] sm:$0xff]
        %v2371 = vld [vmem:[%s16 + $0x1a0] sm:$0xff]
        %v2372 = vld [vmem:[%s16 + $0x1a8] sm:$0xff]
        %v2373 = vld [vmem:[%s16 + $0x1b0] sm:$0xff]
        %v2374 = vld [vmem:[%s16 + $0x1b8] sm:$0xff]
        %v2375 = vld [vmem:[%s16 + $0x1c0] sm:$0xff]
        %v2376 = vld [vmem:[%s16 + $0x1c8] sm:$0xff]
        %v2377 = vld [vmem:[%s16 + $0x1d0] sm:$0xff]
        %v2378 = vld [vmem:[%s16 + $0x1d8] sm:$0xff]
        %v2379 = vld [vmem:[%s16 + $0x1e0] sm:$0xff]
        %v2380 = vld [vmem:[%s16 + $0x1e8] sm:$0xff]
        %v2381 = vld [vmem:[%s16 + $0x1f0] sm:$0xff]
        %v2382 = vld [vmem:[%s16 + $0x1f8] sm:$0xff]
        %v2383 = vld [vmem:[%s16 + $0x200] sm:$0xff]
        %v2384 = vld [vmem:[%s16 + $0x208] sm:$0xff]
        %v2385 = vld [vmem:[%s16 + $0x210] sm:$0xff]
        %v2386 = vld [vmem:[%s16 + $0x218] sm:$0xff]
        %v2387 = vld [vmem:[%s16 + $0x220] sm:$0xff]
        %v2388 = vld [vmem:[%s16 + $0x228] sm:$0xff]
        %v2389 = vld [vmem:[%s16 + $0x230] sm:$0xff]
        %v2390 = vld [vmem:[%s16 + $0x238] sm:$0xff]
        %v2391 = vld [vmem:[%s16 + $0x240] sm:$0xff]
        %v2392 = vld [vmem:[%s16 + $0x248] sm:$0xff]
        %v2393 = vld [vmem:[%s16 + $0x250] sm:$0xff]
        %v2394 = vld [vmem:[%s16 + $0x258] sm:$0xff]
        %v2395 = vld [vmem:[%s16 + $0x260] sm:$0xff]
        %v2396 = vld [vmem:[%s16 + $0x268] sm:$0xff]
        %v2397 = vld [vmem:[%s16 + $0x270] sm:$0xff]
        %v2398 = vld [vmem:[%s16 + $0x278] sm:$0xff]
        %v2399 = vld [vmem:[%s16 + $0x280] sm:$0xff]
        %v2400 = vld [vmem:[%s16 + $0x288] sm:$0xff]
        %v2401 = vld [vmem:[%s16 + $0x290] sm:$0xff]
        %v2402 = vld [vmem:[%s16 + $0x298] sm:$0xff]
        %v2403 = vld [vmem:[%s16 + $0x2a0] sm:$0xff]
        %v2404 = vld [vmem:[%s16 + $0x2a8] sm:$0xff]
        %v2405 = vld [vmem:[%s16 + $0x2b0] sm:$0xff]
        %v2406 = vld [vmem:[%s16 + $0x2b8] sm:$0xff]
        %v2407 = vld [vmem:[%s16 + $0x2c0] sm:$0xff]
        %v2408 = vld [vmem:[%s16 + $0x2c8] sm:$0xff]
        %v2409 = vld [vmem:[%s16 + $0x2d0] sm:$0xff]
        %v2410 = vld [vmem:[%s16 + $0x2d8] sm:$0xff]
        %v2411 = vld [vmem:[%s16 + $0x2e0] sm:$0xff]
        %v2412 = vld [vmem:[%s16 + $0x2e8] sm:$0xff]
        %v2413 = vld [vmem:[%s16 + $0x2f0] sm:$0xff]
        %v2414 = vld [vmem:[%s16 + $0x2f8] sm:$0xff]
        %v2415 = vld [vmem:[%s16 + $0x300] sm:$0xff]
        %v2416 = vld [vmem:[%s16 + $0x308] sm:$0xff]
        %v2417 = vld [vmem:[%s16 + $0x310] sm:$0xff]
        %v2418 = vld [vmem:[%s16 + $0x318] sm:$0xff]
        %v2419 = vld [vmem:[%s16 + $0x320] sm:$0xff]
        %v2420 = vld [vmem:[%s16 + $0x328] sm:$0xff]
        %v2421 = vld [vmem:[%s16 + $0x330] sm:$0xff]
        %v2422 = vld [vmem:[%s16 + $0x338] sm:$0xff]
        %v2423 = vld [vmem:[%s16 + $0x340] sm:$0xff]
        %v2424 = vld [vmem:[%s16 + $0x348] sm:$0xff]
        %v2425 = vld [vmem:[%s16 + $0x350] sm:$0xff]
        %v2426 = vld [vmem:[%s16 + $0x358] sm:$0xff]
        %v2427 = vld [vmem:[%s16 + $0x360] sm:$0xff]
        %v2428 = vld [vmem:[%s16 + $0x368] sm:$0xff]
        %v2429 = vld [vmem:[%s16 + $0x370] sm:$0xff]
        %v2430 = vld [vmem:[%s16 + $0x378] sm:$0xff]
        %v2431 = vld [vmem:[%s16 + $0x380] sm:$0xff]
        %v2432 = vld [vmem:[%s16 + $0x388] sm:$0xff]
        %v2433 = vld [vmem:[%s16 + $0x390] sm:$0xff]
        %v2434 = vld [vmem:[%s16 + $0x398] sm:$0xff]
        %v2435 = vld [vmem:[%s16 + $0x3a0] sm:$0xff]
        %v2436 = vld [vmem:[%s16 + $0x3a8] sm:$0xff]
        %v2437 = vld [vmem:[%s16 + $0x3b0] sm:$0xff]
        %v2438 = vld [vmem:[%s16 + $0x3b8] sm:$0xff]
        %v2439 = vld [vmem:[%s16 + $0x3c0] sm:$0xff]
        %v2440 = vld [vmem:[%s16 + $0x3c8] sm:$0xff]
        %v2441 = vld [vmem:[%s16 + $0x3d0] sm:$0xff]
        %v2442 = vld [vmem:[%s16 + $0x3d8] sm:$0xff]
        %v2443 = vld [vmem:[%s16 + $0x3e0] sm:$0xff]
        %v2444 = vld [vmem:[%s17] sm:$0x1]
        %vm2445 = vcmask 850944
        %v2447 = vsel %vm2445, %v2315, 0
        %2449 = vmatprep.subr.mxu0 0.0
        %2450 = vmatpush1.msra.mxu0 %v2334
        %2451 = vmatprep.subr.mxu0 0.0
        %2452 = vmatpush1.msra.mxu0 %v2333
        %2453 = vmatprep.subr.mxu0 0.0
        %2454 = vmatpush1.msra.mxu0 %v2332
        %2455 = vmatprep.subr.mxu0 0.0
        %2456 = vmatpush1.msra.mxu0 %v2331
        %2457 = vmatprep.subr.mxu0 0.0
        %2458 = vmatpush1.msra.mxu0 %v2330
        %2459 = vmatprep.subr.mxu0 0.0
        %2460 = vmatpush1.msra.mxu0 %v2329
        %2461 = vmatprep.subr.mxu0 0.0
        %2462 = vmatpush1.msra.mxu0 %v2328
        %2463 = vmatprep.subr.mxu0 0.0
        %2464 = vmatpush1.msra.mxu0 %v2327
        %2465 = vmatprep.subr.mxu0 0.0
        %2466 = vmatpush1.msra.mxu0 %v2326
        %2467 = vmatprep.subr.mxu0 0.0
        %2468 = vmatpush1.msra.mxu0 %v2325
        %2469 = vmatprep.subr.mxu0 0.0
        %2470 = vmatpush1.msra.mxu0 %v2324
        %2471 = vmatprep.subr.mxu0 0.0
        %2472 = vmatpush1.msra.mxu0 %v2323
        %2473 = vmatprep.subr.mxu0 0.0
        %2474 = vmatpush1.msra.mxu0 %v2322
        %2475 = vmatprep.subr.mxu0 0.0
        %2476 = vmatpush1.msra.mxu0 %v2321
        %2477 = vmatprep.subr.mxu0 0.0
        %2478 = vmatpush1.msra.mxu0 %v2320
        %2479 = vmatprep.subr.mxu0 0.0
        %2480 = vmatpush1.msra.mxu0 %v2319
        %2481 = vmatprep.subr.mxu0 0.0
        %2482 = vmatpush2.msra.mxu0 %v2350
        %2483 = vmatprep.subr.mxu0 0.0
        %2484 = vmatpush2.msra.mxu0 %v2349
        %2485 = vmatprep.subr.mxu0 0.0
        %2486 = vmatpush2.msra.mxu0 %v2348
        %2487 = vmatprep.subr.mxu0 0.0
        %2488 = vmatpush2.msra.mxu0 %v2347
        %2489 = vmatprep.subr.mxu0 0.0
        %2490 = vmatpush2.msra.mxu0 %v2346
        %2491 = vmatprep.subr.mxu0 0.0
        %2492 = vmatpush2.msra.mxu0 %v2345
        %2493 = vmatprep.subr.mxu0 0.0
        %2494 = vmatpush2.msra.mxu0 %v2344
        %2495 = vmatprep.subr.mxu0 0.0
        %2496 = vmatpush2.msra.mxu0 %v2343
        %2497 = vmatprep.subr.mxu0 0.0
        %2498 = vmatpush2.msra.mxu0 %v2342
        %2499 = vmatprep.subr.mxu0 0.0
        %2500 = vmatpush2.msra.mxu0 %v2341
        %2501 = vmatprep.subr.mxu0 0.0
        %2502 = vmatpush2.msra.mxu0 %v2340
        %2503 = vmatprep.subr.mxu0 0.0
        %2504 = vmatpush2.msra.mxu0 %v2339
        %2505 = vmatprep.subr.mxu0 0.0
        %2506 = vmatpush2.msra.mxu0 %v2338
        %2507 = vmatprep.subr.mxu0 0.0
        %2508 = vmatpush2.msra.mxu0 %v2337
        %2509 = vmatprep.subr.mxu0 0.0
        %2510 = vmatpush2.msra.mxu0 %v2336
        %2511 = vmatprep.subr.mxu0 0.0
        %2512 = vmatpush2.msra.mxu0 %v2335
        %2513 = vmatprep.mubr.f32.mxu0 %v2192
        %2514 = vmatmul.mubr.f32.gmra.mxu0 %v2190
        %v2515 = vpop.f32.mrf.mxu0
        %v2516 = vadd.f32 %v2444, %v2515
        %v2517 = vpop.f32.mrf.mxu0
        %2518 = vdwg.mxu0
        %2519 = vmatprep.subr.mxu0 0.0
        %2520 = vmatpush1.msra.mxu0 %v2366
        %2521 = vmatprep.subr.mxu0 0.0
        %2522 = vmatpush1.msra.mxu0 %v2365
        %2523 = vmatprep.subr.mxu0 0.0
        %2524 = vmatpush1.msra.mxu0 %v2364
        %2525 = vmatprep.subr.mxu0 0.0
        %2526 = vmatpush1.msra.mxu0 %v2363
        %2527 = vmatprep.subr.mxu0 0.0
        %2528 = vmatpush1.msra.mxu0 %v2362
        %2529 = vmatprep.subr.mxu0 0.0
        %2530 = vmatpush1.msra.mxu0 %v2361
        %2531 = vmatprep.subr.mxu0 0.0
        %2532 = vmatpush1.msra.mxu0 %v2360
        %2533 = vmatprep.subr.mxu0 0.0
        %2534 = vmatpush1.msra.mxu0 %v2359
        %2535 = vmatprep.subr.mxu0 0.0
        %2536 = vmatpush1.msra.mxu0 %v2358
        %2537 = vmatprep.subr.mxu0 0.0
        %2538 = vmatpush1.msra.mxu0 %v2357
        %2539 = vmatprep.subr.mxu0 0.0
        %2540 = vmatpush1.msra.mxu0 %v2356
        %2541 = vmatprep.subr.mxu0 0.0
        %2542 = vmatpush1.msra.mxu0 %v2355
        %2543 = vmatprep.subr.mxu0 0.0
        %2544 = vmatpush1.msra.mxu0 %v2354
        %2545 = vmatprep.subr.mxu0 0.0
        %2546 = vmatpush1.msra.mxu0 %v2353
        %2547 = vmatprep.subr.mxu0 0.0
        %2548 = vmatpush1.msra.mxu0 %v2352
        %2549 = vmatprep.subr.mxu0 0.0
        %2550 = vmatpush1.msra.mxu0 %v2351
        %2551 = vmatprep.subr.mxu0 0.0
        %2552 = vmatpush2.msra.mxu0 %v2382
        %2553 = vmatprep.subr.mxu0 0.0
        %2554 = vmatpush2.msra.mxu0 %v2381
        %2555 = vmatprep.subr.mxu0 0.0
        %2556 = vmatpush2.msra.mxu0 %v2380
        %2557 = vmatprep.subr.mxu0 0.0
        %2558 = vmatpush2.msra.mxu0 %v2379
        %2559 = vmatprep.subr.mxu0 0.0
        %2560 = vmatpush2.msra.mxu0 %v2378
        %2561 = vmatprep.subr.mxu0 0.0
        %2562 = vmatpush2.msra.mxu0 %v2377
        %2563 = vmatprep.subr.mxu0 0.0
        %2564 = vmatpush2.msra.mxu0 %v2376
        %2565 = vmatprep.subr.mxu0 0.0
        %2566 = vmatpush2.msra.mxu0 %v2375
        %2567 = vmatprep.subr.mxu0 0.0
        %2568 = vmatpush2.msra.mxu0 %v2374
        %2569 = vmatprep.subr.mxu0 0.0
        %2570 = vmatpush2.msra.mxu0 %v2373
        %2571 = vmatprep.subr.mxu0 0.0
        %2572 = vmatpush2.msra.mxu0 %v2372
        %2573 = vmatprep.subr.mxu0 0.0
        %2574 = vmatpush2.msra.mxu0 %v2371
        %2575 = vmatprep.subr.mxu0 0.0
        %2576 = vmatpush2.msra.mxu0 %v2370
        %2577 = vmatprep.subr.mxu0 0.0
        %2578 = vmatpush2.msra.mxu0 %v2369
        %2579 = vmatprep.subr.mxu0 0.0
        %2580 = vmatpush2.msra.mxu0 %v2368
        %2581 = vmatprep.subr.mxu0 0.0
        %2582 = vmatpush2.msra.mxu0 %v2367
        %2583 = vmatprep.mubr.f32.mxu0 %v2233
        %2584 = vmatmul.mubr.f32.gmra.mxu0 %v2231
        %v2585 = vpop.f32.mrf.mxu0
        %v2586 = vadd.f32 %v2516, %v2585
        %v2587 = vpop.f32.mrf.mxu0
        %2588 = vdwg.mxu0
        %2589 = vmatprep.subr.mxu0 0.0
        %2590 = vmatpush1.msra.mxu0 %v2398
        %2591 = vmatprep.subr.mxu0 0.0
        %2592 = vmatpush1.msra.mxu0 %v2397
        %2593 = vmatprep.subr.mxu0 0.0
        %2594 = vmatpush1.msra.mxu0 %v2396
        %2595 = vmatprep.subr.mxu0 0.0
        %2596 = vmatpush1.msra.mxu0 %v2395
        %2597 = vmatprep.subr.mxu0 0.0
        %2598 = vmatpush1.msra.mxu0 %v2394
        %2599 = vmatprep.subr.mxu0 0.0
        %2600 = vmatpush1.msra.mxu0 %v2393
        %2601 = vmatprep.subr.mxu0 0.0
        %2602 = vmatpush1.msra.mxu0 %v2392
        %2603 = vmatprep.subr.mxu0 0.0
        %2604 = vmatpush1.msra.mxu0 %v2391
        %2605 = vmatprep.subr.mxu0 0.0
        %2606 = vmatpush1.msra.mxu0 %v2390
        %2607 = vmatprep.subr.mxu0 0.0
        %2608 = vmatpush1.msra.mxu0 %v2389
        %2609 = vmatprep.subr.mxu0 0.0
        %2610 = vmatpush1.msra.mxu0 %v2388
        %2611 = vmatprep.subr.mxu0 0.0
        %2612 = vmatpush1.msra.mxu0 %v2387
        %2613 = vmatprep.subr.mxu0 0.0
        %2614 = vmatpush1.msra.mxu0 %v2386
        %2615 = vmatprep.subr.mxu0 0.0
        %2616 = vmatpush1.msra.mxu0 %v2385
        %2617 = vmatprep.subr.mxu0 0.0
        %2618 = vmatpush1.msra.mxu0 %v2384
        %2619 = vmatprep.subr.mxu0 0.0
        %2620 = vmatpush1.msra.mxu0 %v2383
        %2621 = vmatprep.subr.mxu0 0.0
        %2622 = vmatpush2.msra.mxu0 %v2414
        %2623 = vmatprep.subr.mxu0 0.0
        %2624 = vmatpush2.msra.mxu0 %v2413
        %2625 = vmatprep.subr.mxu0 0.0
        %2626 = vmatpush2.msra.mxu0 %v2412
        %2627 = vmatprep.subr.mxu0 0.0
        %2628 = vmatpush2.msra.mxu0 %v2411
        %2629 = vmatprep.subr.mxu0 0.0
        %2630 = vmatpush2.msra.mxu0 %v2410
        %2631 = vmatprep.subr.mxu0 0.0
        %2632 = vmatpush2.msra.mxu0 %v2409
        %2633 = vmatprep.subr.mxu0 0.0
        %2634 = vmatpush2.msra.mxu0 %v2408
        %2635 = vmatprep.subr.mxu0 0.0
        %2636 = vmatpush2.msra.mxu0 %v2407
        %2637 = vmatprep.subr.mxu0 0.0
        %2638 = vmatpush2.msra.mxu0 %v2406
        %2639 = vmatprep.subr.mxu0 0.0
        %2640 = vmatpush2.msra.mxu0 %v2405
        %2641 = vmatprep.subr.mxu0 0.0
        %2642 = vmatpush2.msra.mxu0 %v2404
        %2643 = vmatprep.subr.mxu0 0.0
        %2644 = vmatpush2.msra.mxu0 %v2403
        %2645 = vmatprep.subr.mxu0 0.0
        %2646 = vmatpush2.msra.mxu0 %v2402
        %2647 = vmatprep.subr.mxu0 0.0
        %2648 = vmatpush2.msra.mxu0 %v2401
        %2649 = vmatprep.subr.mxu0 0.0
        %2650 = vmatpush2.msra.mxu0 %v2400
        %2651 = vmatprep.subr.mxu0 0.0
        %2652 = vmatpush2.msra.mxu0 %v2399
        %2653 = vmatprep.mubr.f32.mxu0 %v2274
        %2654 = vmatmul.mubr.f32.gmra.mxu0 %v2272
        %v2655 = vpop.f32.mrf.mxu0
        %v2656 = vadd.f32 %v2586, %v2655
        %v2657 = vpop.f32.mrf.mxu0
        %2658 = vdwg.mxu0
        %2659 = vmatprep.subr.mxu0 0.0
        %2660 = vmatpush1.msra.mxu0 %v2430
        %2661 = vmatprep.subr.mxu0 0.0
        %2662 = vmatpush1.msra.mxu0 %v2429
        %2663 = vmatprep.subr.mxu0 0.0
        %2664 = vmatpush1.msra.mxu0 %v2428
        %2665 = vmatprep.subr.mxu0 0.0
        %2666 = vmatpush1.msra.mxu0 %v2427
        %2667 = vmatprep.subr.mxu0 0.0
        %2668 = vmatpush1.msra.mxu0 %v2426
        %2669 = vmatprep.subr.mxu0 0.0
        %2670 = vmatpush1.msra.mxu0 %v2425
        %2671 = vmatprep.subr.mxu0 0.0
        %2672 = vmatpush1.msra.mxu0 %v2424
        %2673 = vmatprep.subr.mxu0 0.0
        %2674 = vmatpush1.msra.mxu0 %v2423
        %2675 = vmatprep.subr.mxu0 0.0
        %2676 = vmatpush1.msra.mxu0 %v2422
        %2677 = vmatprep.subr.mxu0 0.0
        %2678 = vmatpush1.msra.mxu0 %v2421
        %2679 = vmatprep.subr.mxu0 0.0
        %2680 = vmatpush1.msra.mxu0 %v2420
        %2681 = vmatprep.subr.mxu0 0.0
        %2682 = vmatpush1.msra.mxu0 %v2419
        %2683 = vmatprep.subr.mxu0 0.0
        %2684 = vmatpush1.msra.mxu0 %v2418
        %2685 = vmatprep.subr.mxu0 0.0
        %2686 = vmatpush1.msra.mxu0 %v2417
        %2687 = vmatprep.subr.mxu0 0.0
        %2688 = vmatpush1.msra.mxu0 %v2416
        %2689 = vmatprep.subr.mxu0 0.0
        %2690 = vmatpush1.msra.mxu0 %v2415
        %2691 = vmatprep.subr.mxu0 0.0
        %2692 = vmatpush2.msra.mxu0 0.0
        %2693 = vmatprep.subr.mxu0 0.0
        %2694 = vmatpush2.msra.mxu0 0.0
        %2695 = vmatprep.subr.mxu0 0.0
        %2696 = vmatpush2.msra.mxu0 0.0
        %2697 = vmatprep.subr.mxu0 0.0
        %2698 = vmatpush2.msra.mxu0 %v2443
        %2699 = vmatprep.subr.mxu0 0.0
        %2700 = vmatpush2.msra.mxu0 %v2442
        %2701 = vmatprep.subr.mxu0 0.0
        %2702 = vmatpush2.msra.mxu0 %v2441
        %2703 = vmatprep.subr.mxu0 0.0
        %2704 = vmatpush2.msra.mxu0 %v2440
        %2705 = vmatprep.subr.mxu0 0.0
        %2706 = vmatpush2.msra.mxu0 %v2439
        %2707 = vmatprep.subr.mxu0 0.0
        %2708 = vmatpush2.msra.mxu0 %v2438
        %2709 = vmatprep.subr.mxu0 0.0
        %2710 = vmatpush2.msra.mxu0 %v2437
        %2711 = vmatprep.subr.mxu0 0.0
        %2712 = vmatpush2.msra.mxu0 %v2436
        %2713 = vmatprep.subr.mxu0 0.0
        %2714 = vmatpush2.msra.mxu0 %v2435
        %2715 = vmatprep.subr.mxu0 0.0
        %2716 = vmatpush2.msra.mxu0 %v2434
        %2717 = vmatprep.subr.mxu0 0.0
        %2718 = vmatpush2.msra.mxu0 %v2433
        %2719 = vmatprep.subr.mxu0 0.0
        %2720 = vmatpush2.msra.mxu0 %v2432
        %2721 = vmatprep.subr.mxu0 0.0
        %2722 = vmatpush2.msra.mxu0 %v2431
        %2723 = vmatprep.mubr.f32.mxu0 %v2447
        %2724 = vmatmul.mubr.f32.gmra.mxu0 %v2313
        %v2725 = vpop.f32.mrf.mxu0
        %v2726 = vadd.f32 %v2656, %v2725
        %v2727 = vpop.f32.mrf.mxu0
        %2728 = vdwg.mxu0
        %vm2729 = vcmask 24576
        %2730 = vst.msk [vmem:[%s567] sm:$0x1] %vm2729, %v2726
        %s2731 = sand.u32 %s423, 1
        %s2732 = scalar_lea.sflag [#allocation4], %s2731
        %s2733 = sand.u32 %s423, 1
        %s2734 = scalar_lea.vmem [#allocation3], %s2733
        // Predicated region
        $region93: #{efficientnet_pretrain_forward.1} parent=91 // pred_check
          %p2735 = pneg %p433
        $region94: #{efficientnet_pretrain_forward.1} parent=91 // pred_check_branch
          %2737 = sbr.rel (%p2735) target = $region96
        $region95: #{efficientnet_pretrain_forward.1} parent=91 // pred_region
          %s2739 = ssub.s32 16, 16
          %2740 = vsyncadd %s2732, %s2739
          %s2741 = smul.addr %s32, 16
          %s2742 = scalar_lea.hbm %s18, %s2741
          %s2744 = sshll.u32 %s2734, 4
          %s2745 = int_to_ptr.vmem [resolvable:$true] %s2744
          %2747 = dma.vmem_to_hbm [thread:$0]  %s2745, 16, %s2742, %s2732
        $region96: #{efficientnet_pretrain_forward.1} parent=91 // pred_fallthru
          _
      $region92: #{efficientnet_pretrain_forward.1} parent=5 // pred_fallthru
        _
      %p2748 = scmp.le.s32.totalorder 2, %s27
      // Predicated region
      $region97: #{efficientnet_pretrain_forward.1} parent=5 // pred_check
        %p2749 = pneg %p2748
      $region98: #{efficientnet_pretrain_forward.1} parent=5 // pred_check_branch
        %2751 = sbr.rel (%p2749) target = $region100
      $region99: #{efficientnet_pretrain_forward.1} parent=5 // pred_region
        %s2752 = ssub.s32 %s27, 2
        // Predicated region
        $region101: #{efficientnet_pretrain_forward.1} parent=99 // pred_check
          %p2753 = pneg %p439
        $region102: #{efficientnet_pretrain_forward.1} parent=99 // pred_check_branch
          %2755 = sbr.rel (%p2753) target = $region104
        $region103: #{efficientnet_pretrain_forward.1} parent=99 // pred_region
          %s2756 = sand.u32 %s424, 1
          %s2757 = scalar_lea.sflag [#allocation4], %s2756
          %s2758 = sand.u32 %s424, 1
          %s2759 = scalar_lea.vmem [#allocation3], %s2758
          %2760 = dma.done %s2757, 16
        $region104: #{efficientnet_pretrain_forward.1} parent=99 // pred_fallthru
          _
      $region100: #{efficientnet_pretrain_forward.1} parent=5 // pred_fallthru
        _
    $region6: #{efficientnet_pretrain_forward.1} parent=1 // loop_footer
      %s31 = sadd.s32 1, %s27
    $region7: #{efficientnet_pretrain_forward.1} parent=1 // loop_footer_branch
      %26 = sbr.rel target = $region3
    $region8: #{efficientnet_pretrain_forward.1} parent=1 // loop_exit
      _
    %2761 = vsyncpa [#allocation4], 1
    %s2762 = scalar_lea.sflag [#allocation4], 1
    %2763 = vsyncpa %s2762, 1

</llo_original>
